<compile_context>
chip_gen: v7x
topology: tpu7x:2x2x1
jax: 0.10.0
libtpu: 0.0.40
codegen_flags: <defaults>
</compile_context>

<pallas_src>
import numpy as np
import jax
import jax.numpy as jnp
from jax.experimental import pallas as pl
from jax.experimental.pallas import tpu as pltpu

# Module-level constants from the PyTorch file (only `scale` is used).
h_resolution = 64
l_resolution = 32
scale = int(h_resolution // l_resolution)   # = 2

LANES = 128   # lane width of every activation row
C0 = 8        # column offset of real pixels inside the 128-lane row (>= max dilation)


# ---------------------------------------------------------------------------
# Structural constants (numpy) used to build the per-layer matrices
# ---------------------------------------------------------------------------
def _row_shift_tensor(H, d):
    """T[kh, ho, hi] = 1 iff hi == ho + (kh-1)*d and 0 <= hi < H (zero row pad)."""
    T = np.zeros((3, H, H), np.float32)
    for kh in range(3):
        for ho in range(H):
            hi = ho + (kh - 1) * d
            if 0 <= hi < H:
                T[kh, ho, hi] = 1.0
    return T


def _col_shift_matrix(dw):
    """S[win, wout] = 1 iff win == wout + dw  (right-multiply => lane shift)."""
    S = np.zeros((LANES, LANES), np.float32)
    for wout in range(LANES):
        win = wout + dw
        if 0 <= win < LANES:
            S[win, wout] = 1.0
    return S


def _col_mask(W):
    m = np.zeros((1, LANES), np.float32)
    m[0, C0:C0 + W] = 1.0
    return m


def _shuffle_mats(C, Hl, Wl, r):
    """PixelShuffle as  Out = sum_j (PR[j] @ Y) @ PC[j]  (PyTorch semantics)."""
    Hh = Hl * r
    PR = np.zeros((r, C * Hh, C * r * r * Hl), np.float32)
    PC = np.zeros((r, LANES, LANES), np.float32)
    for j in range(r):
        for c in range(C):
            for i in range(r):
                for h in range(Hl):
                    PR[j, c * Hh + r * h + i, (c * r * r + i * r + j) * Hl + h] = 1.0
        for w in range(Wl):
            PC[j, C0 + w, C0 + r * w + j] = 1.0
    return PR, PC


def _cubic_weight(d, a=-0.75):
    d = np.abs(d)
    return np.where(
        d <= 1.0, (a + 2.0) * d**3 - (a + 3.0) * d**2 + 1.0,
        np.where(d < 2.0, a * d**3 - 5.0 * a * d**2 + 8.0 * a * d - 4.0 * a, 0.0))


def _bicubic_matrix(n_in, n_out):
    """(n_out, n_in) bicubic interp matrix, align_corners=True, a=-0.75,
    border-replicate clamping (matches torch.nn.functional.interpolate)."""
    W = np.zeros((n_out, n_in), np.float64)
    if n_out == 1 or n_in == 1:
        W[:, 0] = 1.0
        return W.astype(np.float32)
    ratio = (n_in - 1) / (n_out - 1)
    for o in range(n_out):
        src = o * ratio
        i0 = int(np.floor(src))
        t = src - i0
        for k in range(-1, 3):
            idx = min(max(i0 + k, 0), n_in - 1)
            W[o, idx] += _cubic_weight(k - t)
    return W.astype(np.float32)


# ---------------------------------------------------------------------------
# Parameter init (synthetic, PyTorch OIHW layout) and matrix preparation
# ---------------------------------------------------------------------------
def init_params(num_bands, upscale_factor, key):
    def conv_p(k, ksize, cin, cout):
        kw_, kb_ = jax.random.split(k)
        w = 0.1 * jax.random.normal(kw_, (cout, cin, ksize, ksize), jnp.float32)
        b = 0.01 * jax.random.normal(kb_, (cout,), jnp.float32)
        return w, b

    B, r = num_bands, upscale_factor
    keys = jax.random.split(key, 7)
    p = {}
    p["sfeb_w1"], p["sfeb_b1"] = conv_p(keys[0], 3, B, B)
    p["sfeb_w2"], p["sfeb_b2"] = conv_p(keys[1], 3, B, B * r * r)
    p["sfeb_w3"], p["sfeb_b3"] = conv_p(keys[2], 3, B, B)
    p["upconv_w"], p["upconv_b"] = conv_p(keys[3], 1, 3, B)
    p["cf1_w"], p["cf1_b"] = conv_p(keys[4], 3, B, B)          # dilated, d=4
    p["cf3_w"], p["cf3_b"] = conv_p(keys[5], 3, B, B)
    p["bc_w"], p["bc_b"] = conv_p(keys[6], 3, B, B)
    # self.conv_sr3 exists in __init__ but is unused in forward -> not created.
    return p


def prepare_constants(params, num_bands, r, H_lr, W_lr):
    """One-time preprocessing of all weights into the structured matrices."""
    B = num_bands
    H_hr, W_hr = H_lr * r, W_lr * r
    bf = jnp.bfloat16

    def conv_mats(w, H, d):                       # (3, Cout*H, Cin*H)
        T = jnp.asarray(_row_shift_tensor(H, d))
        M = jnp.einsum("oikl,kab->loaib", w, T)
        return M.reshape(3, w.shape[0] * H, w.shape[1] * H).astype(bf)

    def bias_col(b, H):                           # (Cout*H, 1) f32
        return jnp.repeat(b, H).reshape(-1, 1).astype(jnp.float32)

    c = {}
    c["m1"] = conv_mats(params["sfeb_w1"], H_lr, 1); c["b1"] = bias_col(params["sfeb_b1"], H_lr)
    c["m2"] = conv_mats(params["sfeb_w2"], H_lr, 1); c["b2"] = bias_col(params["sfeb_b2"], H_lr)
    PR, PC = _shuffle_mats(B, H_lr, W_lr, r)
    c["pr"] = jnp.asarray(PR, bf); c["pc"] = jnp.asarray(PC, bf)
    c["m3"] = conv_mats(params["sfeb_w3"], H_hr, 1); c["b3"] = bias_col(params["sfeb_b3"], H_hr)
    eye_h = jnp.eye(H_hr, dtype=jnp.float32)
    c["mu"] = jnp.einsum("oi,ab->oaib", params["upconv_w"][:, :, 0, 0],
                         eye_h).reshape(B * H_hr, 3 * H_hr).astype(bf)
    c["bu"] = bias_col(params["upconv_b"], H_hr)
    c["m4"] = conv_mats(params["cf1_w"], H_hr, 4); c["b4"] = bias_col(params["cf1_b"], H_hr)
    c["m5"] = conv_mats(params["cf3_w"], H_hr, 1); c["b5"] = bias_col(params["cf3_b"], H_hr)
    Whm = _bicubic_matrix(H_lr, H_hr)             # (H_hr, H_lr)
    Wwm = _bicubic_matrix(W_lr, W_hr)             # (W_hr, W_lr)
    BH = np.zeros((B * H_hr, B * H_lr), np.float32)
    for cc in range(B):
        BH[cc * H_hr:(cc + 1) * H_hr, cc * H_lr:(cc + 1) * H_lr] = Whm
    BW = np.zeros((LANES, LANES), np.float32)
    BW[C0:C0 + W_lr, C0:C0 + W_hr] = Wwm.T
    c["bh"] = jnp.asarray(BH, bf); c["bw"] = jnp.asarray(BW, bf)
    c["m6"] = conv_mats(params["bc_w"], H_hr, 1); c["b6"] = bias_col(params["bc_b"], H_hr)
    c["s"] = jnp.asarray(np.stack([_col_shift_matrix(dw) for dw in (-1, 1, -4, 4)]), bf)
    c["mask_lr"] = jnp.asarray(_col_mask(W_lr))
    c["mask_hr"] = jnp.asarray(_col_mask(W_hr))
    return c


# ---------------------------------------------------------------------------
# The fused Pallas kernel
# ---------------------------------------------------------------------------
def _gmod_kernel(x_ref, sr3_ref, m1, b1, m2, b2, pr, pc, m3, b3, mu, bu,
                 m4, b4, m5, b5, bh, bw, m6, b6, s, mlr, mhr, o_ref):
    bf16 = jnp.bfloat16

    def dot32(a, b):
        return jnp.dot(a, b, preferred_element_type=jnp.float32)

    def conv(a_bf, m_ref, s_idx, b_ref, mask, leaky):
        acc = None
        for kw in range(3):
            t = dot32(m_ref[kw], a_bf)                 # rows: weights + dh taps
            si = s_idx[kw]
            if si is not None:                         # lanes: dw tap shift
                t = dot32(t.astype(bf16), s[si])
            acc = t if acc is None else acc + t
        y = (acc + b_ref[...]) * mask                  # bias + re-zero pad lanes
        if leaky:
            y = jnp.where(y >= 0, y, 0.01 * y)
        return y                                       # f32

    D1 = (0, None, 1)    # dilation 1 -> S[-1], identity, S[+1]
    D4 = (2, None, 3)    # dilation 4 -> S[-4], identity, S[+4]

    x = x_ref[...]                    # (B*H_lr, 128) bf16
    sr3v = sr3_ref[...]               # (3*H_hr, 128) bf16
    mask_lr = mlr[...]
    mask_hr = mhr[...]

    # --- SFEB: conv -> lrelu -> conv -> pixel-shuffle -> conv ---
    h = conv(x, m1, D1, b1, mask_lr, True)
    h = conv(h.astype(bf16), m2, D1, b2, mask_lr, False)
    hb = h.astype(bf16)
    hr = (dot32(dot32(pr[0], hb).astype(bf16), pc[0]) +
          dot32(dot32(pr[1], hb).astype(bf16), pc[1]))          # pixel shuffle
    sfeb = conv(hr.astype(bf16), m3, D1, b3, mask_hr, False)

    # --- upconv(sr3): 1x1 conv ---
    up = (dot32(mu[...], sr3v) + bu[...]) * mask_hr
    comb = (sfeb + up).astype(bf16)

    # --- smoothing branch: dilated(d=4) conv + conv, each LeakyReLU ---
    sm = conv(comb, m4, D4, b4, mask_hr, True)
    sm = conv(sm.astype(bf16), m5, D1, b5, mask_hr, True)

    # --- bicubic branch: separable bicubic as two matmuls, conv + residual ---
    bic = dot32(dot32(bh[...], x).astype(bf16), bw[...])
    bb = conv(bic.astype(bf16), m6, D1, b6, mask_hr, False) + bic

    o_ref[...] = (sm + bb).astype(o_ref.dtype)


def gmod_forward(x_nchw, sr3_nchw, consts, num_bands, r):
    N, B, H_lr, W_lr = x_nchw.shape
    H_hr, W_hr = H_lr * r, W_lr * r

    # Embed into the (C*H, 128) lane-padded layout (tiny glue, single fusion).
    xa = jnp.pad(x_nchw.reshape(N, B * H_lr, W_lr),
                 ((0, 0), (0, 0), (C0, LANES - C0 - W_lr))).astype(jnp.bfloat16)
    sa = jnp.pad(sr3_nchw.reshape(N, 3 * H_hr, W_hr),
                 ((0, 0), (0, 0), (C0, LANES - C0 - W_hr))).astype(jnp.bfloat16)

    const_order = ["m1", "b1", "m2", "b2", "pr", "pc", "m3", "b3", "mu", "bu",
                   "m4", "b4", "m5", "b5", "bh", "bw", "m6", "b6", "s",
                   "mask_lr", "mask_hr"]
    const_args = [consts[k] for k in const_order]

    def zero_map(nd):
        return lambda n, _nd=nd: (0,) * _nd

    in_specs = [
        pl.BlockSpec((pl.Squeezed(), B * H_lr, LANES), lambda n: (n, 0, 0)),
        pl.BlockSpec((pl.Squeezed(), 3 * H_hr, LANES), lambda n: (n, 0, 0)),
    ] + [pl.BlockSpec(a.shape, zero_map(a.ndim)) for a in const_args]

    out = pl.pallas_call(
        _gmod_kernel,
        out_shape=jax.ShapeDtypeStruct((N, B * H_hr, LANES), jnp.float32),
        grid=(N,),
        in_specs=in_specs,
        out_specs=pl.BlockSpec((pl.Squeezed(), B * H_hr, LANES), lambda n: (n, 0, 0)),
        compiler_params=pltpu.CompilerParams(dimension_semantics=("parallel",)),
    )(xa, sa, *const_args)

    return out.reshape(N, B, H_hr, LANES)[:, :, :, C0:C0 + W_hr]


# ---------------------------------------------------------------------------
# Plain-JAX reference (for a numerical self-check)
# ---------------------------------------------------------------------------
def _ref_conv(x, w, b, d=1, leaky=False):
    y = jax.lax.conv_general_dilated(
        x, w, window_strides=(1, 1), padding=((d, d), (d, d)),
        rhs_dilation=(d, d), dimension_numbers=("NCHW", "OIHW", "NCHW"),
        precision=jax.lax.Precision.HIGHEST)
    y = y + b[None, :, None, None]
    if leaky:
        y = jnp.where(y >= 0, y, 0.01 * y)
    return y


def _ref_pixel_shuffle(x, r):
    N, Cr2, H, W = x.shape
    C = Cr2 // (r * r)
    x = x.reshape(N, C, r, r, H, W).transpose(0, 1, 4, 2, 5, 3)
    return x.reshape(N, C, H * r, W * r)


def gmod_reference(x, sr3, params, r):
    h = _ref_conv(x, params["sfeb_w1"], params["sfeb_b1"], leaky=True)
    h = _ref_conv(h, params["sfeb_w2"], params["sfeb_b2"])
    h = _ref_pixel_shuffle(h, r)
    sfeb = _ref_conv(h, params["sfeb_w3"], params["sfeb_b3"])
    up = jnp.einsum("oi,nihw->nohw", params["upconv_w"][:, :, 0, 0], sr3,
                    precision=jax.lax.Precision.HIGHEST)
    up = up + params["upconv_b"][None, :, None, None]
    comb = sfeb + up
    sm = _ref_conv(comb, params["cf1_w"], params["cf1_b"], d=4, leaky=True)
    sm = _ref_conv(sm, params["cf3_w"], params["cf3_b"], leaky=True)
    Wh = jnp.asarray(_bicubic_matrix(x.shape[2], x.shape[2] * r))
    Ww = jnp.asarray(_bicubic_matrix(x.shape[3], x.shape[3] * r))
    bic = jnp.einsum("ih,nchw,jw->ncij", Wh, x, Ww,
                     precision=jax.lax.Precision.HIGHEST)
    bb = _ref_conv(bic, params["bc_w"], params["bc_b"]) + bic
    return sm + bb


# ---------------------------------------------------------------------------
if __name__ == "__main__":
    num_bands = 4
    r = scale                      # = 2
    N = 2
    H_lr = W_lr = 8                # low-res spatial
    H_hr, W_hr = H_lr * r, W_lr * r

    key = jax.random.PRNGKey(0)
    kx, ks, kp = jax.random.split(key, 3)
    x = jax.random.normal(kx, (N, num_bands, H_lr, W_lr), jnp.float32)
    sr3 = jax.random.normal(ks, (N, 3, H_hr, W_hr), jnp.float32)
    params = init_params(num_bands, r, kp)
    consts = prepare_constants(params, num_bands, r, H_lr, W_lr)   # once

    fwd = jax.jit(lambda a, b, c: gmod_forward(a, b, c, num_bands, r))
    out = fwd(x, sr3, consts)
    jax.block_until_ready(out)

    assert out.shape == (N, num_bands, H_hr, W_hr)
    assert bool(jnp.all(jnp.isfinite(out)))

    ref = gmod_reference(x, sr3, params, r)
    np.testing.assert_allclose(np.asarray(out), np.asarray(ref),
                               rtol=5e-2, atol=5e-2)   # bf16 MXU vs f32 ref
    print("KERNEL_OK")
</pallas_src>

<mosaic_0001>
module attributes {stable_mosaic.version = 11 : i64} {
  func.func @_gmod_kernel(%arg0: i32, %arg1: memref<1x32x128xbf16, #tpu.memory_space<vmem>>, %arg2: memref<1x48x128xbf16, #tpu.memory_space<vmem>>, %arg3: memref<3x32x32xbf16, #tpu.memory_space<vmem>>, %arg4: memref<32x1xf32, #tpu.memory_space<vmem>>, %arg5: memref<3x128x32xbf16, #tpu.memory_space<vmem>>, %arg6: memref<128x1xf32, #tpu.memory_space<vmem>>, %arg7: memref<2x64x128xbf16, #tpu.memory_space<vmem>>, %arg8: memref<2x128x128xbf16, #tpu.memory_space<vmem>>, %arg9: memref<3x64x64xbf16, #tpu.memory_space<vmem>>, %arg10: memref<64x1xf32, #tpu.memory_space<vmem>>, %arg11: memref<64x48xbf16, #tpu.memory_space<vmem>>, %arg12: memref<64x1xf32, #tpu.memory_space<vmem>>, %arg13: memref<3x64x64xbf16, #tpu.memory_space<vmem>>, %arg14: memref<64x1xf32, #tpu.memory_space<vmem>>, %arg15: memref<3x64x64xbf16, #tpu.memory_space<vmem>>, %arg16: memref<64x1xf32, #tpu.memory_space<vmem>>, %arg17: memref<64x32xbf16, #tpu.memory_space<vmem>>, %arg18: memref<128x128xbf16, #tpu.memory_space<vmem>>, %arg19: memref<3x64x64xbf16, #tpu.memory_space<vmem>>, %arg20: memref<64x1xf32, #tpu.memory_space<vmem>>, %arg21: memref<4x128x128xbf16, #tpu.memory_space<vmem>>, %arg22: memref<1x128xf32, #tpu.memory_space<vmem>>, %arg23: memref<1x128xf32, #tpu.memory_space<vmem>>, %arg24: memref<1x64x128xf32, #tpu.memory_space<vmem>>) attributes {dimension_semantics = [#tpu.dimension_semantics<parallel>], iteration_bounds = array<i64: 2>, scalar_prefetch = 0 : i64, scratch_operands = 0 : i64, tpu.core_type = #tpu.core_type<tc>, window_params = [{transform_indices = @transform_0, window_bounds = array<i64: 1, 32, 128>}, {transform_indices = @transform_1, window_bounds = array<i64: 1, 48, 128>}, {pipeline_mode = #tpu.pipeline_mode<synchronous>, transform_indices = @transform_2, window_bounds = array<i64: 3, 32, 32>}, {pipeline_mode = #tpu.pipeline_mode<synchronous>, transform_indices = @transform_3, window_bounds = array<i64: 32, 1>}, {pipeline_mode = #tpu.pipeline_mode<synchronous>, transform_indices = @transform_4, window_bounds = array<i64: 3, 128, 32>}, {pipeline_mode = #tpu.pipeline_mode<synchronous>, transform_indices = @transform_5, window_bounds = array<i64: 128, 1>}, {pipeline_mode = #tpu.pipeline_mode<synchronous>, transform_indices = @transform_6, window_bounds = array<i64: 2, 64, 128>}, {pipeline_mode = #tpu.pipeline_mode<synchronous>, transform_indices = @transform_7, window_bounds = array<i64: 2, 128, 128>}, {pipeline_mode = #tpu.pipeline_mode<synchronous>, transform_indices = @transform_8, window_bounds = array<i64: 3, 64, 64>}, {pipeline_mode = #tpu.pipeline_mode<synchronous>, transform_indices = @transform_9, window_bounds = array<i64: 64, 1>}, {pipeline_mode = #tpu.pipeline_mode<synchronous>, transform_indices = @transform_10, window_bounds = array<i64: 64, 48>}, {pipeline_mode = #tpu.pipeline_mode<synchronous>, transform_indices = @transform_11, window_bounds = array<i64: 64, 1>}, {pipeline_mode = #tpu.pipeline_mode<synchronous>, transform_indices = @transform_12, window_bounds = array<i64: 3, 64, 64>}, {pipeline_mode = #tpu.pipeline_mode<synchronous>, transform_indices = @transform_13, window_bounds = array<i64: 64, 1>}, {pipeline_mode = #tpu.pipeline_mode<synchronous>, transform_indices = @transform_14, window_bounds = array<i64: 3, 64, 64>}, {pipeline_mode = #tpu.pipeline_mode<synchronous>, transform_indices = @transform_15, window_bounds = array<i64: 64, 1>}, {pipeline_mode = #tpu.pipeline_mode<synchronous>, transform_indices = @transform_16, window_bounds = array<i64: 64, 32>}, {pipeline_mode = #tpu.pipeline_mode<synchronous>, transform_indices = @transform_17, window_bounds = array<i64: 128, 128>}, {pipeline_mode = #tpu.pipeline_mode<synchronous>, transform_indices = @transform_18, window_bounds = array<i64: 3, 64, 64>}, {pipeline_mode = #tpu.pipeline_mode<synchronous>, transform_indices = @transform_19, window_bounds = array<i64: 64, 1>}, {pipeline_mode = #tpu.pipeline_mode<synchronous>, transform_indices = @transform_20, window_bounds = array<i64: 4, 128, 128>}, {pipeline_mode = #tpu.pipeline_mode<synchronous>, transform_indices = @transform_21, window_bounds = array<i64: 1, 128>}, {pipeline_mode = #tpu.pipeline_mode<synchronous>, transform_indices = @transform_22, window_bounds = array<i64: 1, 128>}, {transform_indices = @transform_23, window_bounds = array<i64: 1, 64, 128>}]} {
    %c0 = arith.constant 0 : index
    %c0_0 = arith.constant 0 : index
    %c0_1 = arith.constant 0 : index
    %0 = vector.load %arg1[%c0, %c0_0, %c0_1] : memref<1x32x128xbf16, #tpu.memory_space<vmem>>, vector<1x32x128xbf16>
    %1 = vector.shape_cast %0 : vector<1x32x128xbf16> to vector<32x128xbf16>
    %c0_2 = arith.constant 0 : index
    %c0_3 = arith.constant 0 : index
    %c0_4 = arith.constant 0 : index
    %2 = vector.load %arg2[%c0_2, %c0_3, %c0_4] : memref<1x48x128xbf16, #tpu.memory_space<vmem>>, vector<1x48x128xbf16>
    %3 = vector.shape_cast %2 : vector<1x48x128xbf16> to vector<48x128xbf16>
    %c0_5 = arith.constant 0 : index
    %c0_6 = arith.constant 0 : index
    %4 = vector.load %arg22[%c0_5, %c0_6] : memref<1x128xf32, #tpu.memory_space<vmem>>, vector<1x128xf32>
    %c0_7 = arith.constant 0 : index
    %c0_8 = arith.constant 0 : index
    %5 = vector.load %arg23[%c0_7, %c0_8] : memref<1x128xf32, #tpu.memory_space<vmem>>, vector<1x128xf32>
    %c0_9 = arith.constant 0 : index
    %c0_10 = arith.constant 0 : index
    %c0_11 = arith.constant 0 : index
    %6 = vector.load %arg3[%c0_9, %c0_10, %c0_11] : memref<3x32x32xbf16, #tpu.memory_space<vmem>>, vector<1x32x32xbf16>
    %7 = vector.shape_cast %6 : vector<1x32x32xbf16> to vector<32x32xbf16>
    %cst = arith.constant dense<0.000000e+00> : vector<32x128xf32>
    %8 = tpu.matmul %7, %1, %cst {dimension_numbers = #tpu.dot_dimension_numbers<[1], [0], [0], [1], [0, 0, 1, 1], [], []>} : vector<32x32xbf16>, vector<32x128xbf16>, vector<32x128xf32> -> vector<32x128xf32>
    %9 = arith.truncf %8 : vector<32x128xf32> to vector<32x128xbf16>
    %c0_12 = arith.constant 0 : index
    %c0_13 = arith.constant 0 : index
    %c0_14 = arith.constant 0 : index
    %10 = vector.load %arg21[%c0_12, %c0_13, %c0_14] : memref<4x128x128xbf16, #tpu.memory_space<vmem>>, vector<1x128x128xbf16>
    %11 = vector.shape_cast %10 : vector<1x128x128xbf16> to vector<128x128xbf16>
    %cst_15 = arith.constant dense<0.000000e+00> : vector<32x128xf32>
    %12 = tpu.matmul %9, %11, %cst_15 {dimension_numbers = #tpu.dot_dimension_numbers<[1], [0], [0], [1], [0, 0, 1, 1], [], []>} : vector<32x128xbf16>, vector<128x128xbf16>, vector<32x128xf32> -> vector<32x128xf32>
    %c1 = arith.constant 1 : index
    %c0_16 = arith.constant 0 : index
    %c0_17 = arith.constant 0 : index
    %13 = vector.load %arg3[%c1, %c0_16, %c0_17] : memref<3x32x32xbf16, #tpu.memory_space<vmem>>, vector<1x32x32xbf16>
    %14 = vector.shape_cast %13 : vector<1x32x32xbf16> to vector<32x32xbf16>
    %cst_18 = arith.constant dense<0.000000e+00> : vector<32x128xf32>
    %15 = tpu.matmul %14, %1, %cst_18 {dimension_numbers = #tpu.dot_dimension_numbers<[1], [0], [0], [1], [0, 0, 1, 1], [], []>} : vector<32x32xbf16>, vector<32x128xbf16>, vector<32x128xf32> -> vector<32x128xf32>
    %16 = arith.addf %12, %15 : vector<32x128xf32>
    %c2 = arith.constant 2 : index
    %c0_19 = arith.constant 0 : index
    %c0_20 = arith.constant 0 : index
    %17 = vector.load %arg3[%c2, %c0_19, %c0_20] : memref<3x32x32xbf16, #tpu.memory_space<vmem>>, vector<1x32x32xbf16>
    %18 = vector.shape_cast %17 : vector<1x32x32xbf16> to vector<32x32xbf16>
    %cst_21 = arith.constant dense<0.000000e+00> : vector<32x128xf32>
    %19 = tpu.matmul %18, %1, %cst_21 {dimension_numbers = #tpu.dot_dimension_numbers<[1], [0], [0], [1], [0, 0, 1, 1], [], []>} : vector<32x32xbf16>, vector<32x128xbf16>, vector<32x128xf32> -> vector<32x128xf32>
    %20 = arith.truncf %19 : vector<32x128xf32> to vector<32x128xbf16>
    %c1_22 = arith.constant 1 : index
    %c0_23 = arith.constant 0 : index
    %c0_24 = arith.constant 0 : index
    %21 = vector.load %arg21[%c1_22, %c0_23, %c0_24] : memref<4x128x128xbf16, #tpu.memory_space<vmem>>, vector<1x128x128xbf16>
    %22 = vector.shape_cast %21 : vector<1x128x128xbf16> to vector<128x128xbf16>
    %cst_25 = arith.constant dense<0.000000e+00> : vector<32x128xf32>
    %23 = tpu.matmul %20, %22, %cst_25 {dimension_numbers = #tpu.dot_dimension_numbers<[1], [0], [0], [1], [0, 0, 1, 1], [], []>} : vector<32x128xbf16>, vector<128x128xbf16>, vector<32x128xf32> -> vector<32x128xf32>
    %24 = arith.addf %16, %23 : vector<32x128xf32>
    %c0_26 = arith.constant 0 : index
    %c0_27 = arith.constant 0 : index
    %25 = vector.load %arg4[%c0_26, %c0_27] : memref<32x1xf32, #tpu.memory_space<vmem>>, vector<32x1xf32>
    %26 = vector.broadcast %25 : vector<32x1xf32> to vector<32x128xf32>
    %27 = arith.addf %24, %26 : vector<32x128xf32>
    %28 = vector.broadcast %4 : vector<1x128xf32> to vector<32x128xf32>
    %29 = arith.mulf %27, %28 : vector<32x128xf32>
    %cst_28 = arith.constant 0.000000e+00 : f32
    %30 = vector.broadcast %cst_28 : f32 to vector<32x128xf32>
    %31 = arith.cmpf oge, %29, %30 : vector<32x128xf32>
    %cst_29 = arith.constant 0.00999999977 : f32
    %32 = vector.broadcast %cst_29 : f32 to vector<32x128xf32>
    %33 = arith.mulf %32, %29 : vector<32x128xf32>
    %34 = arith.select %31, %29, %33 : vector<32x128xi1>, vector<32x128xf32>
    %35 = arith.truncf %34 : vector<32x128xf32> to vector<32x128xbf16>
    %c0_30 = arith.constant 0 : index
    %c0_31 = arith.constant 0 : index
    %c0_32 = arith.constant 0 : index
    %36 = vector.load %arg5[%c0_30, %c0_31, %c0_32] : memref<3x128x32xbf16, #tpu.memory_space<vmem>>, vector<1x128x32xbf16>
    %37 = vector.shape_cast %36 : vector<1x128x32xbf16> to vector<128x32xbf16>
    %cst_33 = arith.constant dense<0.000000e+00> : vector<128x128xf32>
    %38 = tpu.matmul %37, %35, %cst_33 {dimension_numbers = #tpu.dot_dimension_numbers<[1], [0], [0], [1], [0, 0, 1, 1], [], []>} : vector<128x32xbf16>, vector<32x128xbf16>, vector<128x128xf32> -> vector<128x128xf32>
    %39 = arith.truncf %38 : vector<128x128xf32> to vector<128x128xbf16>
    %c0_34 = arith.constant 0 : index
    %c0_35 = arith.constant 0 : index
    %c0_36 = arith.constant 0 : index
    %40 = vector.load %arg21[%c0_34, %c0_35, %c0_36] : memref<4x128x128xbf16, #tpu.memory_space<vmem>>, vector<1x128x128xbf16>
    %41 = vector.shape_cast %40 : vector<1x128x128xbf16> to vector<128x128xbf16>
    %cst_37 = arith.constant dense<0.000000e+00> : vector<128x128xf32>
    %42 = tpu.matmul %39, %41, %cst_37 {dimension_numbers = #tpu.dot_dimension_numbers<[1], [0], [0], [1], [0, 0, 1, 1], [], []>} : vector<128x128xbf16>, vector<128x128xbf16>, vector<128x128xf32> -> vector<128x128xf32>
    %c1_38 = arith.constant 1 : index
    %c0_39 = arith.constant 0 : index
    %c0_40 = arith.constant 0 : index
    %43 = vector.load %arg5[%c1_38, %c0_39, %c0_40] : memref<3x128x32xbf16, #tpu.memory_space<vmem>>, vector<1x128x32xbf16>
    %44 = vector.shape_cast %43 : vector<1x128x32xbf16> to vector<128x32xbf16>
    %cst_41 = arith.constant dense<0.000000e+00> : vector<128x128xf32>
    %45 = tpu.matmul %44, %35, %cst_41 {dimension_numbers = #tpu.dot_dimension_numbers<[1], [0], [0], [1], [0, 0, 1, 1], [], []>} : vector<128x32xbf16>, vector<32x128xbf16>, vector<128x128xf32> -> vector<128x128xf32>
    %46 = arith.addf %42, %45 : vector<128x128xf32>
    %c2_42 = arith.constant 2 : index
    %c0_43 = arith.constant 0 : index
    %c0_44 = arith.constant 0 : index
    %47 = vector.load %arg5[%c2_42, %c0_43, %c0_44] : memref<3x128x32xbf16, #tpu.memory_space<vmem>>, vector<1x128x32xbf16>
    %48 = vector.shape_cast %47 : vector<1x128x32xbf16> to vector<128x32xbf16>
    %cst_45 = arith.constant dense<0.000000e+00> : vector<128x128xf32>
    %49 = tpu.matmul %48, %35, %cst_45 {dimension_numbers = #tpu.dot_dimension_numbers<[1], [0], [0], [1], [0, 0, 1, 1], [], []>} : vector<128x32xbf16>, vector<32x128xbf16>, vector<128x128xf32> -> vector<128x128xf32>
    %50 = arith.truncf %49 : vector<128x128xf32> to vector<128x128xbf16>
    %c1_46 = arith.constant 1 : index
    %c0_47 = arith.constant 0 : index
    %c0_48 = arith.constant 0 : index
    %51 = vector.load %arg21[%c1_46, %c0_47, %c0_48] : memref<4x128x128xbf16, #tpu.memory_space<vmem>>, vector<1x128x128xbf16>
    %52 = vector.shape_cast %51 : vector<1x128x128xbf16> to vector<128x128xbf16>
    %cst_49 = arith.constant dense<0.000000e+00> : vector<128x128xf32>
    %53 = tpu.matmul %50, %52, %cst_49 {dimension_numbers = #tpu.dot_dimension_numbers<[1], [0], [0], [1], [0, 0, 1, 1], [], []>} : vector<128x128xbf16>, vector<128x128xbf16>, vector<128x128xf32> -> vector<128x128xf32>
    %54 = arith.addf %46, %53 : vector<128x128xf32>
    %c0_50 = arith.constant 0 : index
    %c0_51 = arith.constant 0 : index
    %55 = vector.load %arg6[%c0_50, %c0_51] : memref<128x1xf32, #tpu.memory_space<vmem>>, vector<128x1xf32>
    %56 = vector.broadcast %55 : vector<128x1xf32> to vector<128x128xf32>
    %57 = arith.addf %54, %56 : vector<128x128xf32>
    %58 = vector.broadcast %4 : vector<1x128xf32> to vector<128x128xf32>
    %59 = arith.mulf %57, %58 : vector<128x128xf32>
    %60 = arith.truncf %59 : vector<128x128xf32> to vector<128x128xbf16>
    %c0_52 = arith.constant 0 : index
    %c0_53 = arith.constant 0 : index
    %c0_54 = arith.constant 0 : index
    %61 = vector.load %arg7[%c0_52, %c0_53, %c0_54] : memref<2x64x128xbf16, #tpu.memory_space<vmem>>, vector<1x64x128xbf16>
    %62 = vector.shape_cast %61 : vector<1x64x128xbf16> to vector<64x128xbf16>
    %cst_55 = arith.constant dense<0.000000e+00> : vector<64x128xf32>
    %63 = tpu.matmul %62, %60, %cst_55 {dimension_numbers = #tpu.dot_dimension_numbers<[1], [0], [0], [1], [0, 0, 1, 1], [], []>} : vector<64x128xbf16>, vector<128x128xbf16>, vector<64x128xf32> -> vector<64x128xf32>
    %64 = arith.truncf %63 : vector<64x128xf32> to vector<64x128xbf16>
    %c0_56 = arith.constant 0 : index
    %c0_57 = arith.constant 0 : index
    %c0_58 = arith.constant 0 : index
    %65 = vector.load %arg8[%c0_56, %c0_57, %c0_58] : memref<2x128x128xbf16, #tpu.memory_space<vmem>>, vector<1x128x128xbf16>
    %66 = vector.shape_cast %65 : vector<1x128x128xbf16> to vector<128x128xbf16>
    %cst_59 = arith.constant dense<0.000000e+00> : vector<64x128xf32>
    %67 = tpu.matmul %64, %66, %cst_59 {dimension_numbers = #tpu.dot_dimension_numbers<[1], [0], [0], [1], [0, 0, 1, 1], [], []>} : vector<64x128xbf16>, vector<128x128xbf16>, vector<64x128xf32> -> vector<64x128xf32>
    %c1_60 = arith.constant 1 : index
    %c0_61 = arith.constant 0 : index
    %c0_62 = arith.constant 0 : index
    %68 = vector.load %arg7[%c1_60, %c0_61, %c0_62] : memref<2x64x128xbf16, #tpu.memory_space<vmem>>, vector<1x64x128xbf16>
    %69 = vector.shape_cast %68 : vector<1x64x128xbf16> to vector<64x128xbf16>
    %cst_63 = arith.constant dense<0.000000e+00> : vector<64x128xf32>
    %70 = tpu.matmul %69, %60, %cst_63 {dimension_numbers = #tpu.dot_dimension_numbers<[1], [0], [0], [1], [0, 0, 1, 1], [], []>} : vector<64x128xbf16>, vector<128x128xbf16>, vector<64x128xf32> -> vector<64x128xf32>
    %71 = arith.truncf %70 : vector<64x128xf32> to vector<64x128xbf16>
    %c1_64 = arith.constant 1 : index
    %c0_65 = arith.constant 0 : index
    %c0_66 = arith.constant 0 : index
    %72 = vector.load %arg8[%c1_64, %c0_65, %c0_66] : memref<2x128x128xbf16, #tpu.memory_space<vmem>>, vector<1x128x128xbf16>
    %73 = vector.shape_cast %72 : vector<1x128x128xbf16> to vector<128x128xbf16>
    %cst_67 = arith.constant dense<0.000000e+00> : vector<64x128xf32>
    %74 = tpu.matmul %71, %73, %cst_67 {dimension_numbers = #tpu.dot_dimension_numbers<[1], [0], [0], [1], [0, 0, 1, 1], [], []>} : vector<64x128xbf16>, vector<128x128xbf16>, vector<64x128xf32> -> vector<64x128xf32>
    %75 = arith.addf %67, %74 : vector<64x128xf32>
    %76 = arith.truncf %75 : vector<64x128xf32> to vector<64x128xbf16>
    %c0_68 = arith.constant 0 : index
    %c0_69 = arith.constant 0 : index
    %c0_70 = arith.constant 0 : index
    %77 = vector.load %arg9[%c0_68, %c0_69, %c0_70] : memref<3x64x64xbf16, #tpu.memory_space<vmem>>, vector<1x64x64xbf16>
    %78 = vector.shape_cast %77 : vector<1x64x64xbf16> to vector<64x64xbf16>
    %cst_71 = arith.constant dense<0.000000e+00> : vector<64x128xf32>
    %79 = tpu.matmul %78, %76, %cst_71 {dimension_numbers = #tpu.dot_dimension_numbers<[1], [0], [0], [1], [0, 0, 1, 1], [], []>} : vector<64x64xbf16>, vector<64x128xbf16>, vector<64x128xf32> -> vector<64x128xf32>
    %80 = arith.truncf %79 : vector<64x128xf32> to vector<64x128xbf16>
    %c0_72 = arith.constant 0 : index
    %c0_73 = arith.constant 0 : index
    %c0_74 = arith.constant 0 : index
    %81 = vector.load %arg21[%c0_72, %c0_73, %c0_74] : memref<4x128x128xbf16, #tpu.memory_space<vmem>>, vector<1x128x128xbf16>
    %82 = vector.shape_cast %81 : vector<1x128x128xbf16> to vector<128x128xbf16>
    %cst_75 = arith.constant dense<0.000000e+00> : vector<64x128xf32>
    %83 = tpu.matmul %80, %82, %cst_75 {dimension_numbers = #tpu.dot_dimension_numbers<[1], [0], [0], [1], [0, 0, 1, 1], [], []>} : vector<64x128xbf16>, vector<128x128xbf16>, vector<64x128xf32> -> vector<64x128xf32>
    %c1_76 = arith.constant 1 : index
    %c0_77 = arith.constant 0 : index
    %c0_78 = arith.constant 0 : index
    %84 = vector.load %arg9[%c1_76, %c0_77, %c0_78] : memref<3x64x64xbf16, #tpu.memory_space<vmem>>, vector<1x64x64xbf16>
    %85 = vector.shape_cast %84 : vector<1x64x64xbf16> to vector<64x64xbf16>
    %cst_79 = arith.constant dense<0.000000e+00> : vector<64x128xf32>
    %86 = tpu.matmul %85, %76, %cst_79 {dimension_numbers = #tpu.dot_dimension_numbers<[1], [0], [0], [1], [0, 0, 1, 1], [], []>} : vector<64x64xbf16>, vector<64x128xbf16>, vector<64x128xf32> -> vector<64x128xf32>
    %87 = arith.addf %83, %86 : vector<64x128xf32>
    %c2_80 = arith.constant 2 : index
    %c0_81 = arith.constant 0 : index
    %c0_82 = arith.constant 0 : index
    %88 = vector.load %arg9[%c2_80, %c0_81, %c0_82] : memref<3x64x64xbf16, #tpu.memory_space<vmem>>, vector<1x64x64xbf16>
    %89 = vector.shape_cast %88 : vector<1x64x64xbf16> to vector<64x64xbf16>
    %cst_83 = arith.constant dense<0.000000e+00> : vector<64x128xf32>
    %90 = tpu.matmul %89, %76, %cst_83 {dimension_numbers = #tpu.dot_dimension_numbers<[1], [0], [0], [1], [0, 0, 1, 1], [], []>} : vector<64x64xbf16>, vector<64x128xbf16>, vector<64x128xf32> -> vector<64x128xf32>
    %91 = arith.truncf %90 : vector<64x128xf32> to vector<64x128xbf16>
    %c1_84 = arith.constant 1 : index
    %c0_85 = arith.constant 0 : index
    %c0_86 = arith.constant 0 : index
    %92 = vector.load %arg21[%c1_84, %c0_85, %c0_86] : memref<4x128x128xbf16, #tpu.memory_space<vmem>>, vector<1x128x128xbf16>
    %93 = vector.shape_cast %92 : vector<1x128x128xbf16> to vector<128x128xbf16>
    %cst_87 = arith.constant dense<0.000000e+00> : vector<64x128xf32>
    %94 = tpu.matmul %91, %93, %cst_87 {dimension_numbers = #tpu.dot_dimension_numbers<[1], [0], [0], [1], [0, 0, 1, 1], [], []>} : vector<64x128xbf16>, vector<128x128xbf16>, vector<64x128xf32> -> vector<64x128xf32>
    %95 = arith.addf %87, %94 : vector<64x128xf32>
    %c0_88 = arith.constant 0 : index
    %c0_89 = arith.constant 0 : index
    %96 = vector.load %arg10[%c0_88, %c0_89] : memref<64x1xf32, #tpu.memory_space<vmem>>, vector<64x1xf32>
    %97 = vector.broadcast %96 : vector<64x1xf32> to vector<64x128xf32>
    %98 = arith.addf %95, %97 : vector<64x128xf32>
    %99 = vector.broadcast %5 : vector<1x128xf32> to vector<64x128xf32>
    %100 = arith.mulf %98, %99 : vector<64x128xf32>
    %c0_90 = arith.constant 0 : index
    %c0_91 = arith.constant 0 : index
    %101 = vector.load %arg11[%c0_90, %c0_91] : memref<64x48xbf16, #tpu.memory_space<vmem>>, vector<64x48xbf16>
    %cst_92 = arith.constant dense<0.000000e+00> : vector<64x128xf32>
    %102 = tpu.matmul %101, %3, %cst_92 {dimension_numbers = #tpu.dot_dimension_numbers<[1], [0], [0], [1], [0, 0, 1, 1], [], []>} : vector<64x48xbf16>, vector<48x128xbf16>, vector<64x128xf32> -> vector<64x128xf32>
    %c0_93 = arith.constant 0 : index
    %c0_94 = arith.constant 0 : index
    %103 = vector.load %arg12[%c0_93, %c0_94] : memref<64x1xf32, #tpu.memory_space<vmem>>, vector<64x1xf32>
    %104 = vector.broadcast %103 : vector<64x1xf32> to vector<64x128xf32>
    %105 = arith.addf %102, %104 : vector<64x128xf32>
    %106 = vector.broadcast %5 : vector<1x128xf32> to vector<64x128xf32>
    %107 = arith.mulf %105, %106 : vector<64x128xf32>
    %108 = arith.addf %100, %107 : vector<64x128xf32>
    %109 = arith.truncf %108 : vector<64x128xf32> to vector<64x128xbf16>
    %c0_95 = arith.constant 0 : index
    %c0_96 = arith.constant 0 : index
    %c0_97 = arith.constant 0 : index
    %110 = vector.load %arg13[%c0_95, %c0_96, %c0_97] : memref<3x64x64xbf16, #tpu.memory_space<vmem>>, vector<1x64x64xbf16>
    %111 = vector.shape_cast %110 : vector<1x64x64xbf16> to vector<64x64xbf16>
    %cst_98 = arith.constant dense<0.000000e+00> : vector<64x128xf32>
    %112 = tpu.matmul %111, %109, %cst_98 {dimension_numbers = #tpu.dot_dimension_numbers<[1], [0], [0], [1], [0, 0, 1, 1], [], []>} : vector<64x64xbf16>, vector<64x128xbf16>, vector<64x128xf32> -> vector<64x128xf32>
    %113 = arith.truncf %112 : vector<64x128xf32> to vector<64x128xbf16>
    %c2_99 = arith.constant 2 : index
    %c0_100 = arith.constant 0 : index
    %c0_101 = arith.constant 0 : index
    %114 = vector.load %arg21[%c2_99, %c0_100, %c0_101] : memref<4x128x128xbf16, #tpu.memory_space<vmem>>, vector<1x128x128xbf16>
    %115 = vector.shape_cast %114 : vector<1x128x128xbf16> to vector<128x128xbf16>
    %cst_102 = arith.constant dense<0.000000e+00> : vector<64x128xf32>
    %116 = tpu.matmul %113, %115, %cst_102 {dimension_numbers = #tpu.dot_dimension_numbers<[1], [0], [0], [1], [0, 0, 1, 1], [], []>} : vector<64x128xbf16>, vector<128x128xbf16>, vector<64x128xf32> -> vector<64x128xf32>
    %c1_103 = arith.constant 1 : index
    %c0_104 = arith.constant 0 : index
    %c0_105 = arith.constant 0 : index
    %117 = vector.load %arg13[%c1_103, %c0_104, %c0_105] : memref<3x64x64xbf16, #tpu.memory_space<vmem>>, vector<1x64x64xbf16>
    %118 = vector.shape_cast %117 : vector<1x64x64xbf16> to vector<64x64xbf16>
    %cst_106 = arith.constant dense<0.000000e+00> : vector<64x128xf32>
    %119 = tpu.matmul %118, %109, %cst_106 {dimension_numbers = #tpu.dot_dimension_numbers<[1], [0], [0], [1], [0, 0, 1, 1], [], []>} : vector<64x64xbf16>, vector<64x128xbf16>, vector<64x128xf32> -> vector<64x128xf32>
    %120 = arith.addf %116, %119 : vector<64x128xf32>
    %c2_107 = arith.constant 2 : index
    %c0_108 = arith.constant 0 : index
    %c0_109 = arith.constant 0 : index
    %121 = vector.load %arg13[%c2_107, %c0_108, %c0_109] : memref<3x64x64xbf16, #tpu.memory_space<vmem>>, vector<1x64x64xbf16>
    %122 = vector.shape_cast %121 : vector<1x64x64xbf16> to vector<64x64xbf16>
    %cst_110 = arith.constant dense<0.000000e+00> : vector<64x128xf32>
    %123 = tpu.matmul %122, %109, %cst_110 {dimension_numbers = #tpu.dot_dimension_numbers<[1], [0], [0], [1], [0, 0, 1, 1], [], []>} : vector<64x64xbf16>, vector<64x128xbf16>, vector<64x128xf32> -> vector<64x128xf32>
    %124 = arith.truncf %123 : vector<64x128xf32> to vector<64x128xbf16>
    %c3 = arith.constant 3 : index
    %c0_111 = arith.constant 0 : index
    %c0_112 = arith.constant 0 : index
    %125 = vector.load %arg21[%c3, %c0_111, %c0_112] : memref<4x128x128xbf16, #tpu.memory_space<vmem>>, vector<1x128x128xbf16>
    %126 = vector.shape_cast %125 : vector<1x128x128xbf16> to vector<128x128xbf16>
    %cst_113 = arith.constant dense<0.000000e+00> : vector<64x128xf32>
    %127 = tpu.matmul %124, %126, %cst_113 {dimension_numbers = #tpu.dot_dimension_numbers<[1], [0], [0], [1], [0, 0, 1, 1], [], []>} : vector<64x128xbf16>, vector<128x128xbf16>, vector<64x128xf32> -> vector<64x128xf32>
    %128 = arith.addf %120, %127 : vector<64x128xf32>
    %c0_114 = arith.constant 0 : index
    %c0_115 = arith.constant 0 : index
    %129 = vector.load %arg14[%c0_114, %c0_115] : memref<64x1xf32, #tpu.memory_space<vmem>>, vector<64x1xf32>
    %130 = vector.broadcast %129 : vector<64x1xf32> to vector<64x128xf32>
    %131 = arith.addf %128, %130 : vector<64x128xf32>
    %132 = vector.broadcast %5 : vector<1x128xf32> to vector<64x128xf32>
    %133 = arith.mulf %131, %132 : vector<64x128xf32>
    %cst_116 = arith.constant 0.000000e+00 : f32
    %134 = vector.broadcast %cst_116 : f32 to vector<64x128xf32>
    %135 = arith.cmpf oge, %133, %134 : vector<64x128xf32>
    %cst_117 = arith.constant 0.00999999977 : f32
    %136 = vector.broadcast %cst_117 : f32 to vector<64x128xf32>
    %137 = arith.mulf %136, %133 : vector<64x128xf32>
    %138 = arith.select %135, %133, %137 : vector<64x128xi1>, vector<64x128xf32>
    %139 = arith.truncf %138 : vector<64x128xf32> to vector<64x128xbf16>
    %c0_118 = arith.constant 0 : index
    %c0_119 = arith.constant 0 : index
    %c0_120 = arith.constant 0 : index
    %140 = vector.load %arg15[%c0_118, %c0_119, %c0_120] : memref<3x64x64xbf16, #tpu.memory_space<vmem>>, vector<1x64x64xbf16>
    %141 = vector.shape_cast %140 : vector<1x64x64xbf16> to vector<64x64xbf16>
    %cst_121 = arith.constant dense<0.000000e+00> : vector<64x128xf32>
    %142 = tpu.matmul %141, %139, %cst_121 {dimension_numbers = #tpu.dot_dimension_numbers<[1], [0], [0], [1], [0, 0, 1, 1], [], []>} : vector<64x64xbf16>, vector<64x128xbf16>, vector<64x128xf32> -> vector<64x128xf32>
    %143 = arith.truncf %142 : vector<64x128xf32> to vector<64x128xbf16>
    %c0_122 = arith.constant 0 : index
    %c0_123 = arith.constant 0 : index
    %c0_124 = arith.constant 0 : index
    %144 = vector.load %arg21[%c0_122, %c0_123, %c0_124] : memref<4x128x128xbf16, #tpu.memory_space<vmem>>, vector<1x128x128xbf16>
    %145 = vector.shape_cast %144 : vector<1x128x128xbf16> to vector<128x128xbf16>
    %cst_125 = arith.constant dense<0.000000e+00> : vector<64x128xf32>
    %146 = tpu.matmul %143, %145, %cst_125 {dimension_numbers = #tpu.dot_dimension_numbers<[1], [0], [0], [1], [0, 0, 1, 1], [], []>} : vector<64x128xbf16>, vector<128x128xbf16>, vector<64x128xf32> -> vector<64x128xf32>
    %c1_126 = arith.constant 1 : index
    %c0_127 = arith.constant 0 : index
    %c0_128 = arith.constant 0 : index
    %147 = vector.load %arg15[%c1_126, %c0_127, %c0_128] : memref<3x64x64xbf16, #tpu.memory_space<vmem>>, vector<1x64x64xbf16>
    %148 = vector.shape_cast %147 : vector<1x64x64xbf16> to vector<64x64xbf16>
    %cst_129 = arith.constant dense<0.000000e+00> : vector<64x128xf32>
    %149 = tpu.matmul %148, %139, %cst_129 {dimension_numbers = #tpu.dot_dimension_numbers<[1], [0], [0], [1], [0, 0, 1, 1], [], []>} : vector<64x64xbf16>, vector<64x128xbf16>, vector<64x128xf32> -> vector<64x128xf32>
    %150 = arith.addf %146, %149 : vector<64x128xf32>
    %c2_130 = arith.constant 2 : index
    %c0_131 = arith.constant 0 : index
    %c0_132 = arith.constant 0 : index
    %151 = vector.load %arg15[%c2_130, %c0_131, %c0_132] : memref<3x64x64xbf16, #tpu.memory_space<vmem>>, vector<1x64x64xbf16>
    %152 = vector.shape_cast %151 : vector<1x64x64xbf16> to vector<64x64xbf16>
    %cst_133 = arith.constant dense<0.000000e+00> : vector<64x128xf32>
    %153 = tpu.matmul %152, %139, %cst_133 {dimension_numbers = #tpu.dot_dimension_numbers<[1], [0], [0], [1], [0, 0, 1, 1], [], []>} : vector<64x64xbf16>, vector<64x128xbf16>, vector<64x128xf32> -> vector<64x128xf32>
    %154 = arith.truncf %153 : vector<64x128xf32> to vector<64x128xbf16>
    %c1_134 = arith.constant 1 : index
    %c0_135 = arith.constant 0 : index
    %c0_136 = arith.constant 0 : index
    %155 = vector.load %arg21[%c1_134, %c0_135, %c0_136] : memref<4x128x128xbf16, #tpu.memory_space<vmem>>, vector<1x128x128xbf16>
    %156 = vector.shape_cast %155 : vector<1x128x128xbf16> to vector<128x128xbf16>
    %cst_137 = arith.constant dense<0.000000e+00> : vector<64x128xf32>
    %157 = tpu.matmul %154, %156, %cst_137 {dimension_numbers = #tpu.dot_dimension_numbers<[1], [0], [0], [1], [0, 0, 1, 1], [], []>} : vector<64x128xbf16>, vector<128x128xbf16>, vector<64x128xf32> -> vector<64x128xf32>
    %158 = arith.addf %150, %157 : vector<64x128xf32>
    %c0_138 = arith.constant 0 : index
    %c0_139 = arith.constant 0 : index
    %159 = vector.load %arg16[%c0_138, %c0_139] : memref<64x1xf32, #tpu.memory_space<vmem>>, vector<64x1xf32>
    %160 = vector.broadcast %159 : vector<64x1xf32> to vector<64x128xf32>
    %161 = arith.addf %158, %160 : vector<64x128xf32>
    %162 = vector.broadcast %5 : vector<1x128xf32> to vector<64x128xf32>
    %163 = arith.mulf %161, %162 : vector<64x128xf32>
    %cst_140 = arith.constant 0.000000e+00 : f32
    %164 = vector.broadcast %cst_140 : f32 to vector<64x128xf32>
    %165 = arith.cmpf oge, %163, %164 : vector<64x128xf32>
    %cst_141 = arith.constant 0.00999999977 : f32
    %166 = vector.broadcast %cst_141 : f32 to vector<64x128xf32>
    %167 = arith.mulf %166, %163 : vector<64x128xf32>
    %168 = arith.select %165, %163, %167 : vector<64x128xi1>, vector<64x128xf32>
    %c0_142 = arith.constant 0 : index
    %c0_143 = arith.constant 0 : index
    %169 = vector.load %arg17[%c0_142, %c0_143] : memref<64x32xbf16, #tpu.memory_space<vmem>>, vector<64x32xbf16>
    %cst_144 = arith.constant dense<0.000000e+00> : vector<64x128xf32>
    %170 = tpu.matmul %169, %1, %cst_144 {dimension_numbers = #tpu.dot_dimension_numbers<[1], [0], [0], [1], [0, 0, 1, 1], [], []>} : vector<64x32xbf16>, vector<32x128xbf16>, vector<64x128xf32> -> vector<64x128xf32>
    %171 = arith.truncf %170 : vector<64x128xf32> to vector<64x128xbf16>
    %c0_145 = arith.constant 0 : index
    %c0_146 = arith.constant 0 : index
    %172 = vector.load %arg18[%c0_145, %c0_146] : memref<128x128xbf16, #tpu.memory_space<vmem>>, vector<128x128xbf16>
    %cst_147 = arith.constant dense<0.000000e+00> : vector<64x128xf32>
    %173 = tpu.matmul %171, %172, %cst_147 {dimension_numbers = #tpu.dot_dimension_numbers<[1], [0], [0], [1], [0, 0, 1, 1], [], []>} : vector<64x128xbf16>, vector<128x128xbf16>, vector<64x128xf32> -> vector<64x128xf32>
    %174 = arith.truncf %173 : vector<64x128xf32> to vector<64x128xbf16>
    %c0_148 = arith.constant 0 : index
    %c0_149 = arith.constant 0 : index
    %c0_150 = arith.constant 0 : index
    %175 = vector.load %arg19[%c0_148, %c0_149, %c0_150] : memref<3x64x64xbf16, #tpu.memory_space<vmem>>, vector<1x64x64xbf16>
    %176 = vector.shape_cast %175 : vector<1x64x64xbf16> to vector<64x64xbf16>
    %cst_151 = arith.constant dense<0.000000e+00> : vector<64x128xf32>
    %177 = tpu.matmul %176, %174, %cst_151 {dimension_numbers = #tpu.dot_dimension_numbers<[1], [0], [0], [1], [0, 0, 1, 1], [], []>} : vector<64x64xbf16>, vector<64x128xbf16>, vector<64x128xf32> -> vector<64x128xf32>
    %178 = arith.truncf %177 : vector<64x128xf32> to vector<64x128xbf16>
    %c0_152 = arith.constant 0 : index
    %c0_153 = arith.constant 0 : index
    %c0_154 = arith.constant 0 : index
    %179 = vector.load %arg21[%c0_152, %c0_153, %c0_154] : memref<4x128x128xbf16, #tpu.memory_space<vmem>>, vector<1x128x128xbf16>
    %180 = vector.shape_cast %179 : vector<1x128x128xbf16> to vector<128x128xbf16>
    %cst_155 = arith.constant dense<0.000000e+00> : vector<64x128xf32>
    %181 = tpu.matmul %178, %180, %cst_155 {dimension_numbers = #tpu.dot_dimension_numbers<[1], [0], [0], [1], [0, 0, 1, 1], [], []>} : vector<64x128xbf16>, vector<128x128xbf16>, vector<64x128xf32> -> vector<64x128xf32>
    %c1_156 = arith.constant 1 : index
    %c0_157 = arith.constant 0 : index
    %c0_158 = arith.constant 0 : index
    %182 = vector.load %arg19[%c1_156, %c0_157, %c0_158] : memref<3x64x64xbf16, #tpu.memory_space<vmem>>, vector<1x64x64xbf16>
    %183 = vector.shape_cast %182 : vector<1x64x64xbf16> to vector<64x64xbf16>
    %cst_159 = arith.constant dense<0.000000e+00> : vector<64x128xf32>
    %184 = tpu.matmul %183, %174, %cst_159 {dimension_numbers = #tpu.dot_dimension_numbers<[1], [0], [0], [1], [0, 0, 1, 1], [], []>} : vector<64x64xbf16>, vector<64x128xbf16>, vector<64x128xf32> -> vector<64x128xf32>
    %185 = arith.addf %181, %184 : vector<64x128xf32>
    %c2_160 = arith.constant 2 : index
    %c0_161 = arith.constant 0 : index
    %c0_162 = arith.constant 0 : index
    %186 = vector.load %arg19[%c2_160, %c0_161, %c0_162] : memref<3x64x64xbf16, #tpu.memory_space<vmem>>, vector<1x64x64xbf16>
    %187 = vector.shape_cast %186 : vector<1x64x64xbf16> to vector<64x64xbf16>
    %cst_163 = arith.constant dense<0.000000e+00> : vector<64x128xf32>
    %188 = tpu.matmul %187, %174, %cst_163 {dimension_numbers = #tpu.dot_dimension_numbers<[1], [0], [0], [1], [0, 0, 1, 1], [], []>} : vector<64x64xbf16>, vector<64x128xbf16>, vector<64x128xf32> -> vector<64x128xf32>
    %189 = arith.truncf %188 : vector<64x128xf32> to vector<64x128xbf16>
    %c1_164 = arith.constant 1 : index
    %c0_165 = arith.constant 0 : index
    %c0_166 = arith.constant 0 : index
    %190 = vector.load %arg21[%c1_164, %c0_165, %c0_166] : memref<4x128x128xbf16, #tpu.memory_space<vmem>>, vector<1x128x128xbf16>
    %191 = vector.shape_cast %190 : vector<1x128x128xbf16> to vector<128x128xbf16>
    %cst_167 = arith.constant dense<0.000000e+00> : vector<64x128xf32>
    %192 = tpu.matmul %189, %191, %cst_167 {dimension_numbers = #tpu.dot_dimension_numbers<[1], [0], [0], [1], [0, 0, 1, 1], [], []>} : vector<64x128xbf16>, vector<128x128xbf16>, vector<64x128xf32> -> vector<64x128xf32>
    %193 = arith.addf %185, %192 : vector<64x128xf32>
    %c0_168 = arith.constant 0 : index
    %c0_169 = arith.constant 0 : index
    %194 = vector.load %arg20[%c0_168, %c0_169] : memref<64x1xf32, #tpu.memory_space<vmem>>, vector<64x1xf32>
    %195 = vector.broadcast %194 : vector<64x1xf32> to vector<64x128xf32>
    %196 = arith.addf %193, %195 : vector<64x128xf32>
    %197 = vector.broadcast %5 : vector<1x128xf32> to vector<64x128xf32>
    %198 = arith.mulf %196, %197 : vector<64x128xf32>
    %199 = arith.addf %198, %173 : vector<64x128xf32>
    %200 = arith.addf %168, %199 : vector<64x128xf32>
    %c0_170 = arith.constant 0 : index
    %c0_171 = arith.constant 0 : index
    %c0_172 = arith.constant 0 : index
    %201 = vector.load %arg24[%c0_170, %c0_171, %c0_172] : memref<1x64x128xf32, #tpu.memory_space<vmem>>, vector<1x64x128xf32>
    %202 = vector.shape_cast %201 : vector<1x64x128xf32> to vector<64x128xf32>
    %203 = vector.shape_cast %200 : vector<64x128xf32> to vector<1x64x128xf32>
    tpu.vector_store %arg24[%c0_170, %c0_171, %c0_172], %203 {strides = array<i32>} : memref<1x64x128xf32, #tpu.memory_space<vmem>>, vector<1x64x128xf32>,
    return
  }
  func.func @transform_0(%arg0: i32) -> (i32, i32, i32) {
    %c0_i32 = arith.constant 0 : i32
    %c0_i32_0 = arith.constant 0 : i32
    %c0_i32_1 = arith.constant 0 : i32
    return %arg0, %c0_i32, %c0_i32_0 : i32, i32, i32
  }
  func.func @transform_1(%arg0: i32) -> (i32, i32, i32) {
    %c0_i32 = arith.constant 0 : i32
    %c0_i32_0 = arith.constant 0 : i32
    %c0_i32_1 = arith.constant 0 : i32
    return %arg0, %c0_i32, %c0_i32_0 : i32, i32, i32
  }
  func.func @transform_2(%arg0: i32) -> (i32, i32, i32) {
    %c0_i32 = arith.constant 0 : i32
    %c0_i32_0 = arith.constant 0 : i32
    %c0_i32_1 = arith.constant 0 : i32
    %c0_i32_2 = arith.constant 0 : i32
    return %c0_i32, %c0_i32_0, %c0_i32_1 : i32, i32, i32
  }
  func.func @transform_3(%arg0: i32) -> (i32, i32) {
    %c0_i32 = arith.constant 0 : i32
    %c0_i32_0 = arith.constant 0 : i32
    %c0_i32_1 = arith.constant 0 : i32
    return %c0_i32, %c0_i32_0 : i32, i32
  }
  func.func @transform_4(%arg0: i32) -> (i32, i32, i32) {
    %c0_i32 = arith.constant 0 : i32
    %c0_i32_0 = arith.constant 0 : i32
    %c0_i32_1 = arith.constant 0 : i32
    %c0_i32_2 = arith.constant 0 : i32
    return %c0_i32, %c0_i32_0, %c0_i32_1 : i32, i32, i32
  }
  func.func @transform_5(%arg0: i32) -> (i32, i32) {
    %c0_i32 = arith.constant 0 : i32
    %c0_i32_0 = arith.constant 0 : i32
    %c0_i32_1 = arith.constant 0 : i32
    return %c0_i32, %c0_i32_0 : i32, i32
  }
  func.func @transform_6(%arg0: i32) -> (i32, i32, i32) {
    %c0_i32 = arith.constant 0 : i32
    %c0_i32_0 = arith.constant 0 : i32
    %c0_i32_1 = arith.constant 0 : i32
    %c0_i32_2 = arith.constant 0 : i32
    return %c0_i32, %c0_i32_0, %c0_i32_1 : i32, i32, i32
  }
  func.func @transform_7(%arg0: i32) -> (i32, i32, i32) {
    %c0_i32 = arith.constant 0 : i32
    %c0_i32_0 = arith.constant 0 : i32
    %c0_i32_1 = arith.constant 0 : i32
    %c0_i32_2 = arith.constant 0 : i32
    return %c0_i32, %c0_i32_0, %c0_i32_1 : i32, i32, i32
  }
  func.func @transform_8(%arg0: i32) -> (i32, i32, i32) {
    %c0_i32 = arith.constant 0 : i32
    %c0_i32_0 = arith.constant 0 : i32
    %c0_i32_1 = arith.constant 0 : i32
    %c0_i32_2 = arith.constant 0 : i32
    return %c0_i32, %c0_i32_0, %c0_i32_1 : i32, i32, i32
  }
  func.func @transform_9(%arg0: i32) -> (i32, i32) {
    %c0_i32 = arith.constant 0 : i32
    %c0_i32_0 = arith.constant 0 : i32
    %c0_i32_1 = arith.constant 0 : i32
    return %c0_i32, %c0_i32_0 : i32, i32
  }
  func.func @transform_10(%arg0: i32) -> (i32, i32) {
    %c0_i32 = arith.constant 0 : i32
    %c0_i32_0 = arith.constant 0 : i32
    %c0_i32_1 = arith.constant 0 : i32
    return %c0_i32, %c0_i32_0 : i32, i32
  }
  func.func @transform_11(%arg0: i32) -> (i32, i32) {
    %c0_i32 = arith.constant 0 : i32
    %c0_i32_0 = arith.constant 0 : i32
    %c0_i32_1 = arith.constant 0 : i32
    return %c0_i32, %c0_i32_0 : i32, i32
  }
  func.func @transform_12(%arg0: i32) -> (i32, i32, i32) {
    %c0_i32 = arith.constant 0 : i32
    %c0_i32_0 = arith.constant 0 : i32
    %c0_i32_1 = arith.constant 0 : i32
    %c0_i32_2 = arith.constant 0 : i32
    return %c0_i32, %c0_i32_0, %c0_i32_1 : i32, i32, i32
  }
  func.func @transform_13(%arg0: i32) -> (i32, i32) {
    %c0_i32 = arith.constant 0 : i32
    %c0_i32_0 = arith.constant 0 : i32
    %c0_i32_1 = arith.constant 0 : i32
    return %c0_i32, %c0_i32_0 : i32, i32
  }
  func.func @transform_14(%arg0: i32) -> (i32, i32, i32) {
    %c0_i32 = arith.constant 0 : i32
    %c0_i32_0 = arith.constant 0 : i32
    %c0_i32_1 = arith.constant 0 : i32
    %c0_i32_2 = arith.constant 0 : i32
    return %c0_i32, %c0_i32_0, %c0_i32_1 : i32, i32, i32
  }
  func.func @transform_15(%arg0: i32) -> (i32, i32) {
    %c0_i32 = arith.constant 0 : i32
    %c0_i32_0 = arith.constant 0 : i32
    %c0_i32_1 = arith.constant 0 : i32
    return %c0_i32, %c0_i32_0 : i32, i32
  }
  func.func @transform_16(%arg0: i32) -> (i32, i32) {
    %c0_i32 = arith.constant 0 : i32
    %c0_i32_0 = arith.constant 0 : i32
    %c0_i32_1 = arith.constant 0 : i32
    return %c0_i32, %c0_i32_0 : i32, i32
  }
  func.func @transform_17(%arg0: i32) -> (i32, i32) {
    %c0_i32 = arith.constant 0 : i32
    %c0_i32_0 = arith.constant 0 : i32
    %c0_i32_1 = arith.constant 0 : i32
    return %c0_i32, %c0_i32_0 : i32, i32
  }
  func.func @transform_18(%arg0: i32) -> (i32, i32, i32) {
    %c0_i32 = arith.constant 0 : i32
    %c0_i32_0 = arith.constant 0 : i32
    %c0_i32_1 = arith.constant 0 : i32
    %c0_i32_2 = arith.constant 0 : i32
    return %c0_i32, %c0_i32_0, %c0_i32_1 : i32, i32, i32
  }
  func.func @transform_19(%arg0: i32) -> (i32, i32) {
    %c0_i32 = arith.constant 0 : i32
    %c0_i32_0 = arith.constant 0 : i32
    %c0_i32_1 = arith.constant 0 : i32
    return %c0_i32, %c0_i32_0 : i32, i32
  }
  func.func @transform_20(%arg0: i32) -> (i32, i32, i32) {
    %c0_i32 = arith.constant 0 : i32
    %c0_i32_0 = arith.constant 0 : i32
    %c0_i32_1 = arith.constant 0 : i32
    %c0_i32_2 = arith.constant 0 : i32
    return %c0_i32, %c0_i32_0, %c0_i32_1 : i32, i32, i32
  }
  func.func @transform_21(%arg0: i32) -> (i32, i32) {
    %c0_i32 = arith.constant 0 : i32
    %c0_i32_0 = arith.constant 0 : i32
    %c0_i32_1 = arith.constant 0 : i32
    return %c0_i32, %c0_i32_0 : i32, i32
  }
  func.func @transform_22(%arg0: i32) -> (i32, i32) {
    %c0_i32 = arith.constant 0 : i32
    %c0_i32_0 = arith.constant 0 : i32
    %c0_i32_1 = arith.constant 0 : i32
    return %c0_i32, %c0_i32_0 : i32, i32
  }
  func.func @transform_23(%arg0: i32) -> (i32, i32, i32) {
    %c0_i32 = arith.constant 0 : i32
    %c0_i32_0 = arith.constant 0 : i32
    %c0_i32_1 = arith.constant 0 : i32
    return %arg0, %c0_i32, %c0_i32_0 : i32, i32, i32
  }
}

</mosaic_0001>

<llo_original>
// kernel: _lambda_.1
$region0: #{_lambda_.1}
  #allocation0 [shape = 'u32[]', space=smem, size = 0x4, offset = 0x4, fixed_abs, tag = 'smem constant byte address 0x4 - core index']
  #allocation1 [shape = 'u32[144,128]{1,0:T(1,128)}', space=vmem, size = 0x12000, scoped, tag = 'internal scratch']
  %s0 = inlined_call_operand.vmem [shape: bf16[2,32,128], index: 0, kind: input, shape index: {}]
  %s1 = inlined_call_operand.vmem [shape: bf16[2,48,128], index: 1, kind: input, shape index: {}]
  %s2 = inlined_call_operand.vmem [shape: bf16[3,32,32], index: 2, kind: input, shape index: {}]
  %s3 = inlined_call_operand.vmem [shape: f32[32,1], index: 3, kind: input, shape index: {}]
  %s4 = inlined_call_operand.vmem [shape: bf16[3,128,32], index: 4, kind: input, shape index: {}]
  %s5 = inlined_call_operand.vmem [shape: f32[128,1], index: 5, kind: input, shape index: {}]
  %s6 = inlined_call_operand.vmem [shape: bf16[2,64,128], index: 6, kind: input, shape index: {}]
  %s7 = inlined_call_operand.vmem [shape: bf16[2,128,128], index: 7, kind: input, shape index: {}]
  %s8 = inlined_call_operand.vmem [shape: bf16[3,64,64], index: 8, kind: input, shape index: {}]
  %s9 = inlined_call_operand.vmem [shape: f32[64,1], index: 9, kind: input, shape index: {}]
  %s10 = inlined_call_operand.vmem [shape: bf16[64,48], index: 10, kind: input, shape index: {}]
  %s11 = inlined_call_operand.vmem [shape: f32[64,1], index: 11, kind: input, shape index: {}]
  %s12 = inlined_call_operand.vmem [shape: bf16[3,64,64], index: 12, kind: input, shape index: {}]
  %s13 = inlined_call_operand.vmem [shape: f32[64,1], index: 13, kind: input, shape index: {}]
  %s14 = inlined_call_operand.vmem [shape: bf16[3,64,64], index: 14, kind: input, shape index: {}]
  %s15 = inlined_call_operand.vmem [shape: f32[64,1], index: 15, kind: input, shape index: {}]
  %s16 = inlined_call_operand.vmem [shape: bf16[64,32], index: 16, kind: input, shape index: {}]
  %s17 = inlined_call_operand.vmem [shape: bf16[128,128], index: 17, kind: input, shape index: {}]
  %s18 = inlined_call_operand.vmem [shape: bf16[3,64,64], index: 18, kind: input, shape index: {}]
  %s19 = inlined_call_operand.vmem [shape: f32[64,1], index: 19, kind: input, shape index: {}]
  %s20 = inlined_call_operand.vmem [shape: bf16[4,128,128], index: 20, kind: input, shape index: {}]
  %s21 = inlined_call_operand.vmem [shape: f32[1,128], index: 21, kind: input, shape index: {}]
  %s22 = inlined_call_operand.vmem [shape: f32[1,128], index: 22, kind: input, shape index: {}]
  %s23 = inlined_call_operand.vmem [shape: f32[2,64,128], index: 23, kind: output, shape index: {}]
  %s24 = sld [smem:[#allocation0]]
  $region125: #{_lambda_.1} parent=0
    _
  %s26 = ssub.s32 1, %s24
  %s27 = scalar_select 0, %s26, %s24
  loop: start=0, step=1, limit=4
  $region2: #{_lambda_.1} parent=0 // loop_pre_header
    _
  $region3: #{_lambda_.1} parent=0 // loop_header
    %s29 = sphi 0, %s33
    %p30 = scmp.ge.s32.totalorder %s29, 4
    %s39 = sphi 0, %s41
    %s42 = sphi 0, %s39
    %s43 = sphi 0, %s42
    %s59 = sphi 0, %s43
    %s65 = sphi 0, %s67
    %s68 = sphi 0, %s65
    %s69 = sphi 0, %s68
    %s85 = sphi 0, %s69
    %s89 = sphi 0, %s89
    %s91 = sphi 0, %s89
    %s92 = sphi 0, %s91
    %s106 = sphi 0, %s92
    %s110 = sphi 0, %s110
    %s112 = sphi 0, %s110
    %s113 = sphi 0, %s112
    %s127 = sphi 0, %s113
    %s131 = sphi 0, %s131
    %s133 = sphi 0, %s131
    %s134 = sphi 0, %s133
    %s148 = sphi 0, %s134
    %s152 = sphi 0, %s152
    %s154 = sphi 0, %s152
    %s155 = sphi 0, %s154
    %s169 = sphi 0, %s155
    %s173 = sphi 0, %s173
    %s175 = sphi 0, %s173
    %s176 = sphi 0, %s175
    %s190 = sphi 0, %s176
    %s194 = sphi 0, %s194
    %s196 = sphi 0, %s194
    %s197 = sphi 0, %s196
    %s211 = sphi 0, %s197
    %s215 = sphi 0, %s215
    %s217 = sphi 0, %s215
    %s218 = sphi 0, %s217
    %s232 = sphi 0, %s218
    %s236 = sphi 0, %s236
    %s238 = sphi 0, %s236
    %s239 = sphi 0, %s238
    %s253 = sphi 0, %s239
    %s257 = sphi 0, %s257
    %s259 = sphi 0, %s257
    %s260 = sphi 0, %s259
    %s274 = sphi 0, %s260
    %s278 = sphi 0, %s278
    %s280 = sphi 0, %s278
    %s281 = sphi 0, %s280
    %s295 = sphi 0, %s281
    %s299 = sphi 0, %s299
    %s301 = sphi 0, %s299
    %s302 = sphi 0, %s301
    %s316 = sphi 0, %s302
    %s320 = sphi 0, %s320
    %s322 = sphi 0, %s320
    %s323 = sphi 0, %s322
    %s337 = sphi 0, %s323
    %s341 = sphi 0, %s341
    %s343 = sphi 0, %s341
    %s344 = sphi 0, %s343
    %s358 = sphi 0, %s344
    %s362 = sphi 0, %s362
    %s364 = sphi 0, %s362
    %s365 = sphi 0, %s364
    %s379 = sphi 0, %s365
    %s383 = sphi 0, %s383
    %s385 = sphi 0, %s383
    %s386 = sphi 0, %s385
    %s400 = sphi 0, %s386
    %s404 = sphi 0, %s404
    %s406 = sphi 0, %s404
    %s407 = sphi 0, %s406
    %s421 = sphi 0, %s407
    %s425 = sphi 0, %s425
    %s427 = sphi 0, %s425
    %s428 = sphi 0, %s427
    %s442 = sphi 0, %s428
    %s446 = sphi 0, %s446
    %s448 = sphi 0, %s446
    %s449 = sphi 0, %s448
    %s463 = sphi 0, %s449
    %s467 = sphi 0, %s467
    %s469 = sphi 0, %s467
    %s470 = sphi 0, %s469
    %s484 = sphi 0, %s470
    %s488 = sphi 0, %s488
    %s490 = sphi 0, %s488
    %s491 = sphi 0, %s490
    %s505 = sphi 0, %s491
    %s509 = sphi 0, %s509
    %s511 = sphi 0, %s509
    %s512 = sphi 0, %s511
    %s526 = sphi 0, %s512
    %s532 = sphi 0, %s534
    %s535 = sphi 0, %s532
    %s536 = sphi 0, %s535
    %s552 = sphi 0, %s536
  $region4: #{_lambda_.1} parent=0 // loop_header_branch
    %32 = sbr.rel (%p30) target = $region8
  $region5: #{_lambda_.1} parent=0 // loop_body
    %s34 = ssub.s32 %s29, 1
    %s35 = ssub.s32 %s29, 2
    %s36 = sadd.s32 %s29, 1
    %s37 = ssub.s32 %s29, %s36
    %p38 = scmp.eq.s32.totalorder %s37, 0
    %s40 = sadd.s32 %s39, 1
    %s41 = scalar_select %p38, %s39, %s40
    %p44 = pneg %p38
    %p45 = scmp.eq.s32.totalorder %s29, 1
    %p46 = por %p44, %p45
    %p47 = scmp.ne.s32.totalorder %s39, %s42
    %p48 = scmp.eq.s32.totalorder %s29, 0
    %p49 = por %p47, %p48
    %p50 = scmp.ne.s32.totalorder %s39, %s42
    %p51 = scmp.eq.s32.totalorder %s34, 1
    %p52 = por %p50, %p51
    %p53 = scmp.ne.s32.totalorder %s42, %s43
    %p54 = scmp.eq.s32.totalorder %s34, 0
    %p55 = por %p53, %p54
    %p56 = scmp.ne.s32.totalorder %s42, %s43
    %p57 = scmp.eq.s32.totalorder %s35, 1
    %p58 = por %p56, %p57
    %p60 = scmp.ne.s32.totalorder %s43, %s59
    %p61 = scmp.eq.s32.totalorder %s35, 0
    %p62 = por %p60, %p61
    %s63 = ssub.s32 %s29, %s36
    %p64 = scmp.eq.s32.totalorder %s63, 0
    %s66 = sadd.s32 %s65, 1
    %s67 = scalar_select %p64, %s65, %s66
    %p70 = pneg %p64
    %p71 = scmp.eq.s32.totalorder %s29, 1
    %p72 = por %p70, %p71
    %p73 = scmp.ne.s32.totalorder %s65, %s68
    %p74 = scmp.eq.s32.totalorder %s29, 0
    %p75 = por %p73, %p74
    %p76 = scmp.ne.s32.totalorder %s65, %s68
    %p77 = scmp.eq.s32.totalorder %s34, 1
    %p78 = por %p76, %p77
    %p79 = scmp.ne.s32.totalorder %s68, %s69
    %p80 = scmp.eq.s32.totalorder %s34, 0
    %p81 = por %p79, %p80
    %p82 = scmp.ne.s32.totalorder %s68, %s69
    %p83 = scmp.eq.s32.totalorder %s35, 1
    %p84 = por %p82, %p83
    %p86 = scmp.ne.s32.totalorder %s69, %s85
    %p87 = scmp.eq.s32.totalorder %s35, 0
    %p88 = por %p86, %p87
    %s90 = sadd.s32 %s89, 1
    %p93 = scmp.eq.s32.totalorder %s29, 1
    %p94 = scmp.ne.s32.totalorder %s89, %s91
    %p95 = scmp.eq.s32.totalorder %s29, 0
    %p96 = por %p94, %p95
    %p97 = scmp.ne.s32.totalorder %s89, %s91
    %p98 = scmp.eq.s32.totalorder %s34, 1
    %p99 = por %p97, %p98
    %p100 = scmp.ne.s32.totalorder %s91, %s92
    %p101 = scmp.eq.s32.totalorder %s34, 0
    %p102 = por %p100, %p101
    %p103 = scmp.ne.s32.totalorder %s91, %s92
    %p104 = scmp.eq.s32.totalorder %s35, 1
    %p105 = por %p103, %p104
    %p107 = scmp.ne.s32.totalorder %s92, %s106
    %p108 = scmp.eq.s32.totalorder %s35, 0
    %p109 = por %p107, %p108
    %s111 = sadd.s32 %s110, 1
    %p114 = scmp.eq.s32.totalorder %s29, 1
    %p115 = scmp.ne.s32.totalorder %s110, %s112
    %p116 = scmp.eq.s32.totalorder %s29, 0
    %p117 = por %p115, %p116
    %p118 = scmp.ne.s32.totalorder %s110, %s112
    %p119 = scmp.eq.s32.totalorder %s34, 1
    %p120 = por %p118, %p119
    %p121 = scmp.ne.s32.totalorder %s112, %s113
    %p122 = scmp.eq.s32.totalorder %s34, 0
    %p123 = por %p121, %p122
    %p124 = scmp.ne.s32.totalorder %s112, %s113
    %p125 = scmp.eq.s32.totalorder %s35, 1
    %p126 = por %p124, %p125
    %p128 = scmp.ne.s32.totalorder %s113, %s127
    %p129 = scmp.eq.s32.totalorder %s35, 0
    %p130 = por %p128, %p129
    %s132 = sadd.s32 %s131, 1
    %p135 = scmp.eq.s32.totalorder %s29, 1
    %p136 = scmp.ne.s32.totalorder %s131, %s133
    %p137 = scmp.eq.s32.totalorder %s29, 0
    %p138 = por %p136, %p137
    %p139 = scmp.ne.s32.totalorder %s131, %s133
    %p140 = scmp.eq.s32.totalorder %s34, 1
    %p141 = por %p139, %p140
    %p142 = scmp.ne.s32.totalorder %s133, %s134
    %p143 = scmp.eq.s32.totalorder %s34, 0
    %p144 = por %p142, %p143
    %p145 = scmp.ne.s32.totalorder %s133, %s134
    %p146 = scmp.eq.s32.totalorder %s35, 1
    %p147 = por %p145, %p146
    %p149 = scmp.ne.s32.totalorder %s134, %s148
    %p150 = scmp.eq.s32.totalorder %s35, 0
    %p151 = por %p149, %p150
    %s153 = sadd.s32 %s152, 1
    %p156 = scmp.eq.s32.totalorder %s29, 1
    %p157 = scmp.ne.s32.totalorder %s152, %s154
    %p158 = scmp.eq.s32.totalorder %s29, 0
    %p159 = por %p157, %p158
    %p160 = scmp.ne.s32.totalorder %s152, %s154
    %p161 = scmp.eq.s32.totalorder %s34, 1
    %p162 = por %p160, %p161
    %p163 = scmp.ne.s32.totalorder %s154, %s155
    %p164 = scmp.eq.s32.totalorder %s34, 0
    %p165 = por %p163, %p164
    %p166 = scmp.ne.s32.totalorder %s154, %s155
    %p167 = scmp.eq.s32.totalorder %s35, 1
    %p168 = por %p166, %p167
    %p170 = scmp.ne.s32.totalorder %s155, %s169
    %p171 = scmp.eq.s32.totalorder %s35, 0
    %p172 = por %p170, %p171
    %s174 = sadd.s32 %s173, 1
    %p177 = scmp.eq.s32.totalorder %s29, 1
    %p178 = scmp.ne.s32.totalorder %s173, %s175
    %p179 = scmp.eq.s32.totalorder %s29, 0
    %p180 = por %p178, %p179
    %p181 = scmp.ne.s32.totalorder %s173, %s175
    %p182 = scmp.eq.s32.totalorder %s34, 1
    %p183 = por %p181, %p182
    %p184 = scmp.ne.s32.totalorder %s175, %s176
    %p185 = scmp.eq.s32.totalorder %s34, 0
    %p186 = por %p184, %p185
    %p187 = scmp.ne.s32.totalorder %s175, %s176
    %p188 = scmp.eq.s32.totalorder %s35, 1
    %p189 = por %p187, %p188
    %p191 = scmp.ne.s32.totalorder %s176, %s190
    %p192 = scmp.eq.s32.totalorder %s35, 0
    %p193 = por %p191, %p192
    %s195 = sadd.s32 %s194, 1
    %p198 = scmp.eq.s32.totalorder %s29, 1
    %p199 = scmp.ne.s32.totalorder %s194, %s196
    %p200 = scmp.eq.s32.totalorder %s29, 0
    %p201 = por %p199, %p200
    %p202 = scmp.ne.s32.totalorder %s194, %s196
    %p203 = scmp.eq.s32.totalorder %s34, 1
    %p204 = por %p202, %p203
    %p205 = scmp.ne.s32.totalorder %s196, %s197
    %p206 = scmp.eq.s32.totalorder %s34, 0
    %p207 = por %p205, %p206
    %p208 = scmp.ne.s32.totalorder %s196, %s197
    %p209 = scmp.eq.s32.totalorder %s35, 1
    %p210 = por %p208, %p209
    %p212 = scmp.ne.s32.totalorder %s197, %s211
    %p213 = scmp.eq.s32.totalorder %s35, 0
    %p214 = por %p212, %p213
    %s216 = sadd.s32 %s215, 1
    %p219 = scmp.eq.s32.totalorder %s29, 1
    %p220 = scmp.ne.s32.totalorder %s215, %s217
    %p221 = scmp.eq.s32.totalorder %s29, 0
    %p222 = por %p220, %p221
    %p223 = scmp.ne.s32.totalorder %s215, %s217
    %p224 = scmp.eq.s32.totalorder %s34, 1
    %p225 = por %p223, %p224
    %p226 = scmp.ne.s32.totalorder %s217, %s218
    %p227 = scmp.eq.s32.totalorder %s34, 0
    %p228 = por %p226, %p227
    %p229 = scmp.ne.s32.totalorder %s217, %s218
    %p230 = scmp.eq.s32.totalorder %s35, 1
    %p231 = por %p229, %p230
    %p233 = scmp.ne.s32.totalorder %s218, %s232
    %p234 = scmp.eq.s32.totalorder %s35, 0
    %p235 = por %p233, %p234
    %s237 = sadd.s32 %s236, 1
    %p240 = scmp.eq.s32.totalorder %s29, 1
    %p241 = scmp.ne.s32.totalorder %s236, %s238
    %p242 = scmp.eq.s32.totalorder %s29, 0
    %p243 = por %p241, %p242
    %p244 = scmp.ne.s32.totalorder %s236, %s238
    %p245 = scmp.eq.s32.totalorder %s34, 1
    %p246 = por %p244, %p245
    %p247 = scmp.ne.s32.totalorder %s238, %s239
    %p248 = scmp.eq.s32.totalorder %s34, 0
    %p249 = por %p247, %p248
    %p250 = scmp.ne.s32.totalorder %s238, %s239
    %p251 = scmp.eq.s32.totalorder %s35, 1
    %p252 = por %p250, %p251
    %p254 = scmp.ne.s32.totalorder %s239, %s253
    %p255 = scmp.eq.s32.totalorder %s35, 0
    %p256 = por %p254, %p255
    %s258 = sadd.s32 %s257, 1
    %p261 = scmp.eq.s32.totalorder %s29, 1
    %p262 = scmp.ne.s32.totalorder %s257, %s259
    %p263 = scmp.eq.s32.totalorder %s29, 0
    %p264 = por %p262, %p263
    %p265 = scmp.ne.s32.totalorder %s257, %s259
    %p266 = scmp.eq.s32.totalorder %s34, 1
    %p267 = por %p265, %p266
    %p268 = scmp.ne.s32.totalorder %s259, %s260
    %p269 = scmp.eq.s32.totalorder %s34, 0
    %p270 = por %p268, %p269
    %p271 = scmp.ne.s32.totalorder %s259, %s260
    %p272 = scmp.eq.s32.totalorder %s35, 1
    %p273 = por %p271, %p272
    %p275 = scmp.ne.s32.totalorder %s260, %s274
    %p276 = scmp.eq.s32.totalorder %s35, 0
    %p277 = por %p275, %p276
    %s279 = sadd.s32 %s278, 1
    %p282 = scmp.eq.s32.totalorder %s29, 1
    %p283 = scmp.ne.s32.totalorder %s278, %s280
    %p284 = scmp.eq.s32.totalorder %s29, 0
    %p285 = por %p283, %p284
    %p286 = scmp.ne.s32.totalorder %s278, %s280
    %p287 = scmp.eq.s32.totalorder %s34, 1
    %p288 = por %p286, %p287
    %p289 = scmp.ne.s32.totalorder %s280, %s281
    %p290 = scmp.eq.s32.totalorder %s34, 0
    %p291 = por %p289, %p290
    %p292 = scmp.ne.s32.totalorder %s280, %s281
    %p293 = scmp.eq.s32.totalorder %s35, 1
    %p294 = por %p292, %p293
    %p296 = scmp.ne.s32.totalorder %s281, %s295
    %p297 = scmp.eq.s32.totalorder %s35, 0
    %p298 = por %p296, %p297
    %s300 = sadd.s32 %s299, 1
    %p303 = scmp.eq.s32.totalorder %s29, 1
    %p304 = scmp.ne.s32.totalorder %s299, %s301
    %p305 = scmp.eq.s32.totalorder %s29, 0
    %p306 = por %p304, %p305
    %p307 = scmp.ne.s32.totalorder %s299, %s301
    %p308 = scmp.eq.s32.totalorder %s34, 1
    %p309 = por %p307, %p308
    %p310 = scmp.ne.s32.totalorder %s301, %s302
    %p311 = scmp.eq.s32.totalorder %s34, 0
    %p312 = por %p310, %p311
    %p313 = scmp.ne.s32.totalorder %s301, %s302
    %p314 = scmp.eq.s32.totalorder %s35, 1
    %p315 = por %p313, %p314
    %p317 = scmp.ne.s32.totalorder %s302, %s316
    %p318 = scmp.eq.s32.totalorder %s35, 0
    %p319 = por %p317, %p318
    %s321 = sadd.s32 %s320, 1
    %p324 = scmp.eq.s32.totalorder %s29, 1
    %p325 = scmp.ne.s32.totalorder %s320, %s322
    %p326 = scmp.eq.s32.totalorder %s29, 0
    %p327 = por %p325, %p326
    %p328 = scmp.ne.s32.totalorder %s320, %s322
    %p329 = scmp.eq.s32.totalorder %s34, 1
    %p330 = por %p328, %p329
    %p331 = scmp.ne.s32.totalorder %s322, %s323
    %p332 = scmp.eq.s32.totalorder %s34, 0
    %p333 = por %p331, %p332
    %p334 = scmp.ne.s32.totalorder %s322, %s323
    %p335 = scmp.eq.s32.totalorder %s35, 1
    %p336 = por %p334, %p335
    %p338 = scmp.ne.s32.totalorder %s323, %s337
    %p339 = scmp.eq.s32.totalorder %s35, 0
    %p340 = por %p338, %p339
    %s342 = sadd.s32 %s341, 1
    %p345 = scmp.eq.s32.totalorder %s29, 1
    %p346 = scmp.ne.s32.totalorder %s341, %s343
    %p347 = scmp.eq.s32.totalorder %s29, 0
    %p348 = por %p346, %p347
    %p349 = scmp.ne.s32.totalorder %s341, %s343
    %p350 = scmp.eq.s32.totalorder %s34, 1
    %p351 = por %p349, %p350
    %p352 = scmp.ne.s32.totalorder %s343, %s344
    %p353 = scmp.eq.s32.totalorder %s34, 0
    %p354 = por %p352, %p353
    %p355 = scmp.ne.s32.totalorder %s343, %s344
    %p356 = scmp.eq.s32.totalorder %s35, 1
    %p357 = por %p355, %p356
    %p359 = scmp.ne.s32.totalorder %s344, %s358
    %p360 = scmp.eq.s32.totalorder %s35, 0
    %p361 = por %p359, %p360
    %s363 = sadd.s32 %s362, 1
    %p366 = scmp.eq.s32.totalorder %s29, 1
    %p367 = scmp.ne.s32.totalorder %s362, %s364
    %p368 = scmp.eq.s32.totalorder %s29, 0
    %p369 = por %p367, %p368
    %p370 = scmp.ne.s32.totalorder %s362, %s364
    %p371 = scmp.eq.s32.totalorder %s34, 1
    %p372 = por %p370, %p371
    %p373 = scmp.ne.s32.totalorder %s364, %s365
    %p374 = scmp.eq.s32.totalorder %s34, 0
    %p375 = por %p373, %p374
    %p376 = scmp.ne.s32.totalorder %s364, %s365
    %p377 = scmp.eq.s32.totalorder %s35, 1
    %p378 = por %p376, %p377
    %p380 = scmp.ne.s32.totalorder %s365, %s379
    %p381 = scmp.eq.s32.totalorder %s35, 0
    %p382 = por %p380, %p381
    %s384 = sadd.s32 %s383, 1
    %p387 = scmp.eq.s32.totalorder %s29, 1
    %p388 = scmp.ne.s32.totalorder %s383, %s385
    %p389 = scmp.eq.s32.totalorder %s29, 0
    %p390 = por %p388, %p389
    %p391 = scmp.ne.s32.totalorder %s383, %s385
    %p392 = scmp.eq.s32.totalorder %s34, 1
    %p393 = por %p391, %p392
    %p394 = scmp.ne.s32.totalorder %s385, %s386
    %p395 = scmp.eq.s32.totalorder %s34, 0
    %p396 = por %p394, %p395
    %p397 = scmp.ne.s32.totalorder %s385, %s386
    %p398 = scmp.eq.s32.totalorder %s35, 1
    %p399 = por %p397, %p398
    %p401 = scmp.ne.s32.totalorder %s386, %s400
    %p402 = scmp.eq.s32.totalorder %s35, 0
    %p403 = por %p401, %p402
    %s405 = sadd.s32 %s404, 1
    %p408 = scmp.eq.s32.totalorder %s29, 1
    %p409 = scmp.ne.s32.totalorder %s404, %s406
    %p410 = scmp.eq.s32.totalorder %s29, 0
    %p411 = por %p409, %p410
    %p412 = scmp.ne.s32.totalorder %s404, %s406
    %p413 = scmp.eq.s32.totalorder %s34, 1
    %p414 = por %p412, %p413
    %p415 = scmp.ne.s32.totalorder %s406, %s407
    %p416 = scmp.eq.s32.totalorder %s34, 0
    %p417 = por %p415, %p416
    %p418 = scmp.ne.s32.totalorder %s406, %s407
    %p419 = scmp.eq.s32.totalorder %s35, 1
    %p420 = por %p418, %p419
    %p422 = scmp.ne.s32.totalorder %s407, %s421
    %p423 = scmp.eq.s32.totalorder %s35, 0
    %p424 = por %p422, %p423
    %s426 = sadd.s32 %s425, 1
    %p429 = scmp.eq.s32.totalorder %s29, 1
    %p430 = scmp.ne.s32.totalorder %s425, %s427
    %p431 = scmp.eq.s32.totalorder %s29, 0
    %p432 = por %p430, %p431
    %p433 = scmp.ne.s32.totalorder %s425, %s427
    %p434 = scmp.eq.s32.totalorder %s34, 1
    %p435 = por %p433, %p434
    %p436 = scmp.ne.s32.totalorder %s427, %s428
    %p437 = scmp.eq.s32.totalorder %s34, 0
    %p438 = por %p436, %p437
    %p439 = scmp.ne.s32.totalorder %s427, %s428
    %p440 = scmp.eq.s32.totalorder %s35, 1
    %p441 = por %p439, %p440
    %p443 = scmp.ne.s32.totalorder %s428, %s442
    %p444 = scmp.eq.s32.totalorder %s35, 0
    %p445 = por %p443, %p444
    %s447 = sadd.s32 %s446, 1
    %p450 = scmp.eq.s32.totalorder %s29, 1
    %p451 = scmp.ne.s32.totalorder %s446, %s448
    %p452 = scmp.eq.s32.totalorder %s29, 0
    %p453 = por %p451, %p452
    %p454 = scmp.ne.s32.totalorder %s446, %s448
    %p455 = scmp.eq.s32.totalorder %s34, 1
    %p456 = por %p454, %p455
    %p457 = scmp.ne.s32.totalorder %s448, %s449
    %p458 = scmp.eq.s32.totalorder %s34, 0
    %p459 = por %p457, %p458
    %p460 = scmp.ne.s32.totalorder %s448, %s449
    %p461 = scmp.eq.s32.totalorder %s35, 1
    %p462 = por %p460, %p461
    %p464 = scmp.ne.s32.totalorder %s449, %s463
    %p465 = scmp.eq.s32.totalorder %s35, 0
    %p466 = por %p464, %p465
    %s468 = sadd.s32 %s467, 1
    %p471 = scmp.eq.s32.totalorder %s29, 1
    %p472 = scmp.ne.s32.totalorder %s467, %s469
    %p473 = scmp.eq.s32.totalorder %s29, 0
    %p474 = por %p472, %p473
    %p475 = scmp.ne.s32.totalorder %s467, %s469
    %p476 = scmp.eq.s32.totalorder %s34, 1
    %p477 = por %p475, %p476
    %p478 = scmp.ne.s32.totalorder %s469, %s470
    %p479 = scmp.eq.s32.totalorder %s34, 0
    %p480 = por %p478, %p479
    %p481 = scmp.ne.s32.totalorder %s469, %s470
    %p482 = scmp.eq.s32.totalorder %s35, 1
    %p483 = por %p481, %p482
    %p485 = scmp.ne.s32.totalorder %s470, %s484
    %p486 = scmp.eq.s32.totalorder %s35, 0
    %p487 = por %p485, %p486
    %s489 = sadd.s32 %s488, 1
    %p492 = scmp.eq.s32.totalorder %s29, 1
    %p493 = scmp.ne.s32.totalorder %s488, %s490
    %p494 = scmp.eq.s32.totalorder %s29, 0
    %p495 = por %p493, %p494
    %p496 = scmp.ne.s32.totalorder %s488, %s490
    %p497 = scmp.eq.s32.totalorder %s34, 1
    %p498 = por %p496, %p497
    %p499 = scmp.ne.s32.totalorder %s490, %s491
    %p500 = scmp.eq.s32.totalorder %s34, 0
    %p501 = por %p499, %p500
    %p502 = scmp.ne.s32.totalorder %s490, %s491
    %p503 = scmp.eq.s32.totalorder %s35, 1
    %p504 = por %p502, %p503
    %p506 = scmp.ne.s32.totalorder %s491, %s505
    %p507 = scmp.eq.s32.totalorder %s35, 0
    %p508 = por %p506, %p507
    %s510 = sadd.s32 %s509, 1
    %p513 = scmp.eq.s32.totalorder %s29, 1
    %p514 = scmp.ne.s32.totalorder %s509, %s511
    %p515 = scmp.eq.s32.totalorder %s29, 0
    %p516 = por %p514, %p515
    %p517 = scmp.ne.s32.totalorder %s509, %s511
    %p518 = scmp.eq.s32.totalorder %s34, 1
    %p519 = por %p517, %p518
    %p520 = scmp.ne.s32.totalorder %s511, %s512
    %p521 = scmp.eq.s32.totalorder %s34, 0
    %p522 = por %p520, %p521
    %p523 = scmp.ne.s32.totalorder %s511, %s512
    %p524 = scmp.eq.s32.totalorder %s35, 1
    %p525 = por %p523, %p524
    %p527 = scmp.ne.s32.totalorder %s512, %s526
    %p528 = scmp.eq.s32.totalorder %s35, 0
    %p529 = por %p527, %p528
    %s530 = ssub.s32 %s29, %s36
    %p531 = scmp.eq.s32.totalorder %s530, 0
    %s533 = sadd.s32 %s532, 1
    %s534 = scalar_select %p531, %s532, %s533
    %p537 = pneg %p531
    %p538 = scmp.eq.s32.totalorder %s29, 1
    %p539 = por %p537, %p538
    %p540 = scmp.ne.s32.totalorder %s532, %s535
    %p541 = scmp.eq.s32.totalorder %s29, 0
    %p542 = por %p540, %p541
    %p543 = scmp.ne.s32.totalorder %s532, %s535
    %p544 = scmp.eq.s32.totalorder %s34, 1
    %p545 = por %p543, %p544
    %p546 = scmp.ne.s32.totalorder %s535, %s536
    %p547 = scmp.eq.s32.totalorder %s34, 0
    %p548 = por %p546, %p547
    %p549 = scmp.ne.s32.totalorder %s535, %s536
    %p550 = scmp.eq.s32.totalorder %s35, 1
    %p551 = por %p549, %p550
    %p553 = scmp.ne.s32.totalorder %s536, %s552
    %p554 = scmp.eq.s32.totalorder %s35, 0
    %p555 = por %p553, %p554
    %p556 = scmp.le.s32.totalorder 1, %s29
    %p557 = scmp.lt.s32.totalorder %s29, 3
    %p558 = pnand %p556, %p557
    %p559 = pneg %p558
    // Predicated region
    $region9: #{_lambda_.1} parent=5 // pred_check
      _
    $region10: #{_lambda_.1} parent=5 // pred_check_branch
      %561 = sbr.rel (%p558) target = $region12
    $region11: #{_lambda_.1} parent=5 // pred_region
      %s562 = ssub.s32 %s29, 1
      // Predicated region
      $region13: #{_lambda_.1} parent=11 // pred_check
        %p563 = pneg %p102
      $region14: #{_lambda_.1} parent=11 // pred_check_branch
        %565 = sbr.rel (%p563) target = $region16
      $region15: #{_lambda_.1} parent=11 // pred_region
        _
      $region16: #{_lambda_.1} parent=11 // pred_fallthru
        _
      // Predicated region
      $region17: #{_lambda_.1} parent=11 // pred_check
        %p566 = pneg %p123
      $region18: #{_lambda_.1} parent=11 // pred_check_branch
        %568 = sbr.rel (%p566) target = $region20
      $region19: #{_lambda_.1} parent=11 // pred_region
        _
      $region20: #{_lambda_.1} parent=11 // pred_fallthru
        _
      // Predicated region
      $region21: #{_lambda_.1} parent=11 // pred_check
        %p569 = pneg %p144
      $region22: #{_lambda_.1} parent=11 // pred_check_branch
        %571 = sbr.rel (%p569) target = $region24
      $region23: #{_lambda_.1} parent=11 // pred_region
        _
      $region24: #{_lambda_.1} parent=11 // pred_fallthru
        _
      // Predicated region
      $region25: #{_lambda_.1} parent=11 // pred_check
        %p572 = pneg %p165
      $region26: #{_lambda_.1} parent=11 // pred_check_branch
        %574 = sbr.rel (%p572) target = $region28
      $region27: #{_lambda_.1} parent=11 // pred_region
        _
      $region28: #{_lambda_.1} parent=11 // pred_fallthru
        _
      // Predicated region
      $region29: #{_lambda_.1} parent=11 // pred_check
        %p575 = pneg %p186
      $region30: #{_lambda_.1} parent=11 // pred_check_branch
        %577 = sbr.rel (%p575) target = $region32
      $region31: #{_lambda_.1} parent=11 // pred_region
        _
      $region32: #{_lambda_.1} parent=11 // pred_fallthru
        _
      // Predicated region
      $region33: #{_lambda_.1} parent=11 // pred_check
        %p578 = pneg %p207
      $region34: #{_lambda_.1} parent=11 // pred_check_branch
        %580 = sbr.rel (%p578) target = $region36
      $region35: #{_lambda_.1} parent=11 // pred_region
        _
      $region36: #{_lambda_.1} parent=11 // pred_fallthru
        _
      // Predicated region
      $region37: #{_lambda_.1} parent=11 // pred_check
        %p581 = pneg %p228
      $region38: #{_lambda_.1} parent=11 // pred_check_branch
        %583 = sbr.rel (%p581) target = $region40
      $region39: #{_lambda_.1} parent=11 // pred_region
        _
      $region40: #{_lambda_.1} parent=11 // pred_fallthru
        _
      // Predicated region
      $region41: #{_lambda_.1} parent=11 // pred_check
        %p584 = pneg %p249
      $region42: #{_lambda_.1} parent=11 // pred_check_branch
        %586 = sbr.rel (%p584) target = $region44
      $region43: #{_lambda_.1} parent=11 // pred_region
        _
      $region44: #{_lambda_.1} parent=11 // pred_fallthru
        _
      // Predicated region
      $region45: #{_lambda_.1} parent=11 // pred_check
        %p587 = pneg %p270
      $region46: #{_lambda_.1} parent=11 // pred_check_branch
        %589 = sbr.rel (%p587) target = $region48
      $region47: #{_lambda_.1} parent=11 // pred_region
        _
      $region48: #{_lambda_.1} parent=11 // pred_fallthru
        _
      // Predicated region
      $region49: #{_lambda_.1} parent=11 // pred_check
        %p590 = pneg %p291
      $region50: #{_lambda_.1} parent=11 // pred_check_branch
        %592 = sbr.rel (%p590) target = $region52
      $region51: #{_lambda_.1} parent=11 // pred_region
        _
      $region52: #{_lambda_.1} parent=11 // pred_fallthru
        _
      // Predicated region
      $region53: #{_lambda_.1} parent=11 // pred_check
        %p593 = pneg %p312
      $region54: #{_lambda_.1} parent=11 // pred_check_branch
        %595 = sbr.rel (%p593) target = $region56
      $region55: #{_lambda_.1} parent=11 // pred_region
        _
      $region56: #{_lambda_.1} parent=11 // pred_fallthru
        _
      // Predicated region
      $region57: #{_lambda_.1} parent=11 // pred_check
        %p596 = pneg %p333
      $region58: #{_lambda_.1} parent=11 // pred_check_branch
        %598 = sbr.rel (%p596) target = $region60
      $region59: #{_lambda_.1} parent=11 // pred_region
        _
      $region60: #{_lambda_.1} parent=11 // pred_fallthru
        _
      // Predicated region
      $region61: #{_lambda_.1} parent=11 // pred_check
        %p599 = pneg %p354
      $region62: #{_lambda_.1} parent=11 // pred_check_branch
        %601 = sbr.rel (%p599) target = $region64
      $region63: #{_lambda_.1} parent=11 // pred_region
        _
      $region64: #{_lambda_.1} parent=11 // pred_fallthru
        _
      // Predicated region
      $region65: #{_lambda_.1} parent=11 // pred_check
        %p602 = pneg %p375
      $region66: #{_lambda_.1} parent=11 // pred_check_branch
        %604 = sbr.rel (%p602) target = $region68
      $region67: #{_lambda_.1} parent=11 // pred_region
        _
      $region68: #{_lambda_.1} parent=11 // pred_fallthru
        _
      // Predicated region
      $region69: #{_lambda_.1} parent=11 // pred_check
        %p605 = pneg %p396
      $region70: #{_lambda_.1} parent=11 // pred_check_branch
        %607 = sbr.rel (%p605) target = $region72
      $region71: #{_lambda_.1} parent=11 // pred_region
        _
      $region72: #{_lambda_.1} parent=11 // pred_fallthru
        _
      // Predicated region
      $region73: #{_lambda_.1} parent=11 // pred_check
        %p608 = pneg %p417
      $region74: #{_lambda_.1} parent=11 // pred_check_branch
        %610 = sbr.rel (%p608) target = $region76
      $region75: #{_lambda_.1} parent=11 // pred_region
        _
      $region76: #{_lambda_.1} parent=11 // pred_fallthru
        _
      // Predicated region
      $region77: #{_lambda_.1} parent=11 // pred_check
        %p611 = pneg %p438
      $region78: #{_lambda_.1} parent=11 // pred_check_branch
        %613 = sbr.rel (%p611) target = $region80
      $region79: #{_lambda_.1} parent=11 // pred_region
        _
      $region80: #{_lambda_.1} parent=11 // pred_fallthru
        _
      // Predicated region
      $region81: #{_lambda_.1} parent=11 // pred_check
        %p614 = pneg %p459
      $region82: #{_lambda_.1} parent=11 // pred_check_branch
        %616 = sbr.rel (%p614) target = $region84
      $region83: #{_lambda_.1} parent=11 // pred_region
        _
      $region84: #{_lambda_.1} parent=11 // pred_fallthru
        _
      // Predicated region
      $region85: #{_lambda_.1} parent=11 // pred_check
        %p617 = pneg %p480
      $region86: #{_lambda_.1} parent=11 // pred_check_branch
        %619 = sbr.rel (%p617) target = $region88
      $region87: #{_lambda_.1} parent=11 // pred_region
        _
      $region88: #{_lambda_.1} parent=11 // pred_fallthru
        _
      // Predicated region
      $region89: #{_lambda_.1} parent=11 // pred_check
        %p620 = pneg %p501
      $region90: #{_lambda_.1} parent=11 // pred_check_branch
        %622 = sbr.rel (%p620) target = $region92
      $region91: #{_lambda_.1} parent=11 // pred_region
        _
      $region92: #{_lambda_.1} parent=11 // pred_fallthru
        _
      // Predicated region
      $region93: #{_lambda_.1} parent=11 // pred_check
        %p623 = pneg %p522
      $region94: #{_lambda_.1} parent=11 // pred_check_branch
        %625 = sbr.rel (%p623) target = $region96
      $region95: #{_lambda_.1} parent=11 // pred_region
        _
      $region96: #{_lambda_.1} parent=11 // pred_fallthru
        _
    $region12: #{_lambda_.1} parent=5 // pred_fallthru
      _
    %p626 = scmp.lt.s32.totalorder %s29, 2
    // Predicated region
    $region97: #{_lambda_.1} parent=5 // pred_check
      %p627 = pneg %p626
    $region98: #{_lambda_.1} parent=5 // pred_check_branch
      %629 = sbr.rel (%p627) target = $region100
    $region99: #{_lambda_.1} parent=5 // pred_region
      // Predicated region
      $region101: #{_lambda_.1} parent=99 // pred_check
        %p630 = pneg %p49
      $region102: #{_lambda_.1} parent=99 // pred_check_branch
        %632 = sbr.rel (%p630) target = $region104
      $region103: #{_lambda_.1} parent=99 // pred_region
        %p633 = scmp.lt.s32.totalorder %s29, 1
        %s634 = scalar_select %p633, %s29, 1
        %s635 = smul.addr %s634, 4
        %s636 = smul.addr %s635, 4
        %s637 = scalar_lea.vmem %s0, %s636
      $region104: #{_lambda_.1} parent=99 // pred_fallthru
        _
      // Predicated region
      $region105: #{_lambda_.1} parent=99 // pred_check
        %p638 = pneg %p75
      $region106: #{_lambda_.1} parent=99 // pred_check_branch
        %640 = sbr.rel (%p638) target = $region108
      $region107: #{_lambda_.1} parent=99 // pred_region
        %p641 = scmp.lt.s32.totalorder %s29, 1
        %s642 = scalar_select %p641, %s29, 1
        %s643 = smul.addr %s642, 6
        %s644 = smul.addr %s643, 4
        %s645 = scalar_lea.vmem %s1, %s644
      $region108: #{_lambda_.1} parent=99 // pred_fallthru
        _
    $region100: #{_lambda_.1} parent=5 // pred_fallthru
      _
    %p646 = scmp.le.s32.totalorder 1, %s29
    %p647 = scmp.lt.s32.totalorder %s29, 3
    %p648 = pnand %p646, %p647
    %p649 = pneg %p648
    // Predicated region
    $region109: #{_lambda_.1} parent=5 // pred_check
      _
    $region110: #{_lambda_.1} parent=5 // pred_check_branch
      %651 = sbr.rel (%p648) target = $region112
    $region111: #{_lambda_.1} parent=5 // pred_region
      %s652 = ssub.s32 %s29, 1
      %p653 = scmp.lt.s32.totalorder %s34, 1
      %s654 = scalar_select %p653, %s34, 1
      %s655 = smul.addr %s654, 4
      %s656 = smul.addr %s655, 4
      %s657 = scalar_lea.vmem %s0, %s656
      %p658 = pneg %p55
      %p659 = pneg %p52
      %p660 = scmp.lt.s32.totalorder %s34, 1
      %s661 = scalar_select %p660, %s34, 1
      %s662 = smul.addr %s661, 6
      %s663 = smul.addr %s662, 4
      %s664 = scalar_lea.vmem %s1, %s663
      %p665 = pneg %p81
      %p666 = pneg %p78
      %p667 = pneg %p102
      %p668 = pneg %p99
      %p669 = pneg %p123
      %p670 = pneg %p120
      %p671 = pneg %p144
      %p672 = pneg %p141
      %p673 = pneg %p165
      %p674 = pneg %p162
      %p675 = pneg %p186
      %p676 = pneg %p183
      %p677 = pneg %p207
      %p678 = pneg %p204
      %p679 = pneg %p228
      %p680 = pneg %p225
      %p681 = pneg %p249
      %p682 = pneg %p246
      %p683 = pneg %p270
      %p684 = pneg %p267
      %p685 = pneg %p291
      %p686 = pneg %p288
      %p687 = pneg %p312
      %p688 = pneg %p309
      %p689 = pneg %p333
      %p690 = pneg %p330
      %p691 = pneg %p354
      %p692 = pneg %p351
      %p693 = pneg %p375
      %p694 = pneg %p372
      %p695 = pneg %p396
      %p696 = pneg %p393
      %p697 = pneg %p417
      %p698 = pneg %p414
      %p699 = pneg %p438
      %p700 = pneg %p435
      %p701 = pneg %p459
      %p702 = pneg %p456
      %p703 = pneg %p480
      %p704 = pneg %p477
      %p705 = pneg %p501
      %p706 = pneg %p498
      %p707 = pneg %p522
      %p708 = pneg %p519
      %p709 = pneg %p548
      %p710 = pneg %p545
      %p711 = scmp.lt.s32.totalorder %s34, 1
      %s712 = scalar_select %p711, %s34, 1
      %s713 = smul.addr %s712, 8
      %s714 = smul.addr %s713, 8
      %s715 = scalar_lea.vmem %s23, %s714
      %p716 = scmp.lt.s32.totalorder %s34, 1
      %s717 = scalar_select %p716, %s34, 1
      %s718 = smul.addr %s717, 4
      %s719 = smul.addr %s718, 4
      %s720 = scalar_lea.vmem %s0, %s719
      %p721 = scmp.lt.s32.totalorder %s34, 1
      %s722 = scalar_select %p721, %s34, 1
      %s723 = smul.addr %s722, 6
      %s724 = smul.addr %s723, 4
      %s725 = scalar_lea.vmem %s1, %s724
      %p726 = scmp.lt.s32.totalorder %s34, 1
      %s727 = scalar_select %p726, %s34, 1
      %s728 = smul.addr %s727, 8
      %s729 = smul.addr %s728, 8
      %s730 = scalar_lea.vmem %s23, %s729
      %v732 = vld [vmem:[%s720] sm:$0xf]
      %v733 = vld [vmem:[%s720 + $0x4] sm:$0xf]
      %v734 = vld [vmem:[%s720 + $0x8] sm:$0xf]
      %v735 = vld [vmem:[%s720 + $0xc] sm:$0xf]
      %v736 = vld [vmem:[%s725] sm:$0xf]
      %v737 = vld [vmem:[%s725 + $0x4] sm:$0xf]
      %v738 = vld [vmem:[%s725 + $0x8] sm:$0xf]
      %v739 = vld [vmem:[%s725 + $0xc] sm:$0xf]
      %v740 = vld [vmem:[%s725 + $0x10] sm:$0xf]
      %v741 = vld [vmem:[%s725 + $0x14] sm:$0xf]
      %v742 = vld [vmem:[%s21] sm:$0x1]
      %v743 = vld [vmem:[%s22] sm:$0x1]
      %v744 = vld [vmem:[%s2] sm:$0xf]
      %v745 = vld [vmem:[%s2 + $0x4] sm:$0xf]
      %v746 = vld [vmem:[%s2 + $0x8] sm:$0xf]
      %v747 = vld [vmem:[%s2 + $0xc] sm:$0xf]
      %v752 = vunpack.c.l.b16 %v744
      %v753 = vunpack.c.l.b16 %v745
      %v754 = vunpack.c.l.b16 %v746
      %v755 = vunpack.c.l.b16 %v747
      %v756 = vpack.c.b16 %v753, %v752
      %v757 = vpack.c.b16 %v755, %v754
      %v762 = vunpack.c.l.b16 %v732
      %v763 = vunpack.c.l.b16 %v733
      %v764 = vunpack.c.l.b16 %v734
      %v765 = vunpack.c.l.b16 %v735
      %v766 = vpack.c.b16 %v763, %v762
      %v767 = vpack.c.b16 %v765, %v764
      %vm770 = vcmask 261120
      %v772 = vsel %vm770, %v756, 0
      %v775 = vsel %vm770, %v757, 0
      %777 = vmatprep.subr.bf16.mxu0 0
      %778 = vmatpush1.bf16.msra.mxu0 %v766
      %779 = vmatprep.subr.bf16.mxu0 0
      %780 = vmatpush1.bf16.msra.mxu0 %v767
      %781 = vmatprep.subr.bf16.mxu0 0
      %782 = vmatpush1.bf16.msra.mxu0 0
      %783 = vmatprep.subr.bf16.mxu0 0
      %784 = vmatpush1.bf16.msra.mxu0 0
      %785 = vmatprep.subr.bf16.mxu0 0
      %786 = vmatpush1.bf16.msra.mxu0 0
      %787 = vmatprep.subr.bf16.mxu0 0
      %788 = vmatpush1.bf16.msra.mxu0 0
      %789 = vmatprep.subr.bf16.mxu0 0
      %790 = vmatpush1.bf16.msra.mxu0 0
      %791 = vmatprep.subr.bf16.mxu0 0
      %792 = vmatpush1.bf16.msra.mxu0 0
      %793 = vmatprep.subr.bf16.mxu0 0
      %794 = vmatpush1.bf16.msra.mxu0 0
      %795 = vmatprep.subr.bf16.mxu0 0
      %796 = vmatpush1.bf16.msra.mxu0 0
      %797 = vmatprep.subr.bf16.mxu0 0
      %798 = vmatpush1.bf16.msra.mxu0 0
      %799 = vmatprep.subr.bf16.mxu0 0
      %800 = vmatpush1.bf16.msra.mxu0 0
      %801 = vmatprep.subr.bf16.mxu0 0
      %802 = vmatpush1.bf16.msra.mxu0 0
      %803 = vmatprep.subr.bf16.mxu0 0
      %804 = vmatpush1.bf16.msra.mxu0 0
      %805 = vmatprep.subr.bf16.mxu0 0
      %806 = vmatpush1.bf16.msra.mxu0 0
      %807 = vmatprep.subr.bf16.mxu0 0
      %808 = vmatpush1.bf16.msra.mxu0 0
      %809 = vmatprep.mubr.bf16.mxu0 0
      %810 = vmatmul.mubr.bf16.gmra.mrb[0].mxu0 %v772
      %v811 = vpop.f32.mrb[0].mxu0
      %v812 = vadd.f32 0.0, %v811
      %v813 = vpop.f32.mrb[0].mxu0
      %v814 = vpop.f32.mrb[0].mxu0
      %v815 = vadd.f32 0.0, %v814
      %v816 = vpop.f32.mrb[0].mxu0
      %817 = vmatprep.mubr.bf16.mxu0 0
      %818 = vmatmul.mubr.bf16.gmra.mrb[0].mxu0 %v775
      %v819 = vpop.f32.mrb[0].mxu0
      %v820 = vadd.f32 0.0, %v819
      %v821 = vpop.f32.mrb[0].mxu0
      %v822 = vpop.f32.mrb[0].mxu0
      %v823 = vadd.f32 0.0, %v822
      %v824 = vpop.f32.mrb[0].mxu0
      %825 = vdwg.mxu0
      %v826 = vpack.c.bf16 %v815, %v812
      %v827 = vpack.c.bf16 %v823, %v820
      %v828 = vld [vmem:[%s20] sm:$0xf]
      %v829 = vld [vmem:[%s20 + $0x4] sm:$0xf]
      %v830 = vld [vmem:[%s20 + $0x8] sm:$0xf]
      %v831 = vld [vmem:[%s20 + $0xc] sm:$0xf]
      %v832 = vld [vmem:[%s20 + $0x10] sm:$0xf]
      %v833 = vld [vmem:[%s20 + $0x14] sm:$0xf]
      %v834 = vld [vmem:[%s20 + $0x18] sm:$0xf]
      %v835 = vld [vmem:[%s20 + $0x1c] sm:$0xf]
      %v836 = vld [vmem:[%s20 + $0x20] sm:$0xf]
      %v837 = vld [vmem:[%s20 + $0x24] sm:$0xf]
      %v838 = vld [vmem:[%s20 + $0x28] sm:$0xf]
      %v839 = vld [vmem:[%s20 + $0x2c] sm:$0xf]
      %v840 = vld [vmem:[%s20 + $0x30] sm:$0xf]
      %v841 = vld [vmem:[%s20 + $0x34] sm:$0xf]
      %v842 = vld [vmem:[%s20 + $0x38] sm:$0xf]
      %v843 = vld [vmem:[%s20 + $0x3c] sm:$0xf]
      %s844 = scalar_lea.vmem %s2, 16
      %v845 = vld [vmem:[%s844] sm:$0xf]
      %v846 = vld [vmem:[%s844 + $0x4] sm:$0xf]
      %v847 = vld [vmem:[%s844 + $0x8] sm:$0xf]
      %v848 = vld [vmem:[%s844 + $0xc] sm:$0xf]
      %v853 = vunpack.c.l.b16 %v845
      %v854 = vunpack.c.l.b16 %v846
      %v855 = vunpack.c.l.b16 %v847
      %v856 = vunpack.c.l.b16 %v848
      %v857 = vpack.c.b16 %v854, %v853
      %v858 = vpack.c.b16 %v856, %v855
      %v860 = vsel %vm770, %v857, 0
      %v863 = vsel %vm770, %v858, 0
      %865 = vmatprep.subr.bf16.mxu0 0
      %866 = vmatpush1.bf16.msra.mxu0 %v766
      %867 = vmatprep.subr.bf16.mxu0 0
      %868 = vmatpush1.bf16.msra.mxu0 %v767
      %869 = vmatprep.subr.bf16.mxu0 0
      %870 = vmatpush1.bf16.msra.mxu0 0
      %871 = vmatprep.subr.bf16.mxu0 0
      %872 = vmatpush1.bf16.msra.mxu0 0
      %873 = vmatprep.subr.bf16.mxu0 0
      %874 = vmatpush1.bf16.msra.mxu0 0
      %875 = vmatprep.subr.bf16.mxu0 0
      %876 = vmatpush1.bf16.msra.mxu0 0
      %877 = vmatprep.subr.bf16.mxu0 0
      %878 = vmatpush1.bf16.msra.mxu0 0
      %879 = vmatprep.subr.bf16.mxu0 0
      %880 = vmatpush1.bf16.msra.mxu0 0
      %881 = vmatprep.subr.bf16.mxu0 0
      %882 = vmatpush1.bf16.msra.mxu0 0
      %883 = vmatprep.subr.bf16.mxu0 0
      %884 = vmatpush1.bf16.msra.mxu0 0
      %885 = vmatprep.subr.bf16.mxu0 0
      %886 = vmatpush1.bf16.msra.mxu0 0
      %887 = vmatprep.subr.bf16.mxu0 0
      %888 = vmatpush1.bf16.msra.mxu0 0
      %889 = vmatprep.subr.bf16.mxu0 0
      %890 = vmatpush1.bf16.msra.mxu0 0
      %891 = vmatprep.subr.bf16.mxu0 0
      %892 = vmatpush1.bf16.msra.mxu0 0
      %893 = vmatprep.subr.bf16.mxu0 0
      %894 = vmatpush1.bf16.msra.mxu0 0
      %895 = vmatprep.subr.bf16.mxu0 0
      %896 = vmatpush1.bf16.msra.mxu0 0
      %897 = vmatprep.mubr.bf16.mxu0 0
      %898 = vmatmul.mubr.bf16.gmra.mrb[0].mxu0 %v860
      %v899 = vpop.f32.mrb[0].mxu0
      %v900 = vadd.f32 0.0, %v899
      %v901 = vpop.f32.mrb[0].mxu0
      %v902 = vpop.f32.mrb[0].mxu0
      %v903 = vadd.f32 0.0, %v902
      %v904 = vpop.f32.mrb[0].mxu0
      %905 = vmatprep.mubr.bf16.mxu0 0
      %906 = vmatmul.mubr.bf16.gmra.mrb[0].mxu0 %v863
      %v907 = vpop.f32.mrb[0].mxu0
      %v908 = vadd.f32 0.0, %v907
      %v909 = vpop.f32.mrb[0].mxu0
      %v910 = vpop.f32.mrb[0].mxu0
      %v911 = vadd.f32 0.0, %v910
      %v912 = vpop.f32.mrb[0].mxu0
      %913 = vdwg.mxu0
      %v930 = vunpack.c.l.b16 %v828
      %v931 = vunpack.c.l.b16 %v829
      %v932 = vunpack.c.l.b16 %v830
      %v933 = vunpack.c.l.b16 %v831
      %v934 = vunpack.c.l.b16 %v832
      %v935 = vunpack.c.l.b16 %v833
      %v936 = vunpack.c.l.b16 %v834
      %v937 = vunpack.c.l.b16 %v835
      %v938 = vunpack.c.l.b16 %v836
      %v939 = vunpack.c.l.b16 %v837
      %v940 = vunpack.c.l.b16 %v838
      %v941 = vunpack.c.l.b16 %v839
      %v942 = vunpack.c.l.b16 %v840
      %v943 = vunpack.c.l.b16 %v841
      %v944 = vunpack.c.l.b16 %v842
      %v945 = vunpack.c.l.b16 %v843
      %v946 = vpack.c.b16 %v931, %v930
      %v947 = vpack.c.b16 %v933, %v932
      %v948 = vpack.c.b16 %v935, %v934
      %v949 = vpack.c.b16 %v937, %v936
      %v950 = vpack.c.b16 %v939, %v938
      %v951 = vpack.c.b16 %v941, %v940
      %v952 = vpack.c.b16 %v943, %v942
      %v953 = vpack.c.b16 %v945, %v944
      %962 = vmatprep.subr.bf16.mxu0 0
      %963 = vmatpush1.bf16.msra.mxu0 %v946
      %964 = vmatprep.subr.bf16.mxu0 0
      %965 = vmatpush1.bf16.msra.mxu0 %v947
      %966 = vmatprep.subr.bf16.mxu0 0
      %967 = vmatpush1.bf16.msra.mxu0 %v948
      %968 = vmatprep.subr.bf16.mxu0 0
      %969 = vmatpush1.bf16.msra.mxu0 %v949
      %970 = vmatprep.subr.bf16.mxu0 0
      %971 = vmatpush1.bf16.msra.mxu0 %v950
      %972 = vmatprep.subr.bf16.mxu0 0
      %973 = vmatpush1.bf16.msra.mxu0 %v951
      %974 = vmatprep.subr.bf16.mxu0 0
      %975 = vmatpush1.bf16.msra.mxu0 %v952
      %976 = vmatprep.subr.bf16.mxu0 0
      %977 = vmatpush1.bf16.msra.mxu0 %v953
      %978 = vmatprep.subr.bf16.mxu0 0
      %979 = vmatpush1.bf16.msra.mxu0 0
      %980 = vmatprep.subr.bf16.mxu0 0
      %981 = vmatpush1.bf16.msra.mxu0 0
      %982 = vmatprep.subr.bf16.mxu0 0
      %983 = vmatpush1.bf16.msra.mxu0 0
      %984 = vmatprep.subr.bf16.mxu0 0
      %985 = vmatpush1.bf16.msra.mxu0 0
      %986 = vmatprep.subr.bf16.mxu0 0
      %987 = vmatpush1.bf16.msra.mxu0 0
      %988 = vmatprep.subr.bf16.mxu0 0
      %989 = vmatpush1.bf16.msra.mxu0 0
      %990 = vmatprep.subr.bf16.mxu0 0
      %991 = vmatpush1.bf16.msra.mxu0 0
      %992 = vmatprep.subr.bf16.mxu0 0
      %993 = vmatpush1.bf16.msra.mxu0 0
      %994 = vmatprep.mubr.bf16.mxu0 0
      %995 = vmatmul.mubr.bf16.gmra.mrb[0].mxu0 %v826
      %v996 = vpop.f32.mrb[0].mxu0
      %v997 = vadd.f32 %v900, %v996
      %v998 = vpop.f32.mrb[0].mxu0
      %v999 = vpop.f32.mrb[0].mxu0
      %v1000 = vadd.f32 %v903, %v999
      %v1001 = vpop.f32.mrb[0].mxu0
      %1002 = vmatprep.mubr.bf16.mxu0 0
      %1003 = vmatmul.mubr.bf16.gmra.mrb[0].mxu0 %v827
      %v1004 = vpop.f32.mrb[0].mxu0
      %v1005 = vadd.f32 %v908, %v1004
      %v1006 = vpop.f32.mrb[0].mxu0
      %v1007 = vpop.f32.mrb[0].mxu0
      %v1008 = vadd.f32 %v911, %v1007
      %v1009 = vpop.f32.mrb[0].mxu0
      %1010 = vdwg.mxu0
      %s1011 = scalar_lea.vmem %s2, 32
      %v1012 = vld [vmem:[%s1011] sm:$0xf]
      %v1013 = vld [vmem:[%s1011 + $0x4] sm:$0xf]
      %v1014 = vld [vmem:[%s1011 + $0x8] sm:$0xf]
      %v1015 = vld [vmem:[%s1011 + $0xc] sm:$0xf]
      %v1020 = vunpack.c.l.b16 %v1012
      %v1021 = vunpack.c.l.b16 %v1013
      %v1022 = vunpack.c.l.b16 %v1014
      %v1023 = vunpack.c.l.b16 %v1015
      %v1024 = vpack.c.b16 %v1021, %v1020
      %v1025 = vpack.c.b16 %v1023, %v1022
      %v1027 = vsel %vm770, %v1024, 0
      %v1030 = vsel %vm770, %v1025, 0
      %1032 = vmatprep.subr.bf16.mxu0 0
      %1033 = vmatpush1.bf16.msra.mxu0 %v766
      %1034 = vmatprep.subr.bf16.mxu0 0
      %1035 = vmatpush1.bf16.msra.mxu0 %v767
      %1036 = vmatprep.subr.bf16.mxu0 0
      %1037 = vmatpush1.bf16.msra.mxu0 0
      %1038 = vmatprep.subr.bf16.mxu0 0
      %1039 = vmatpush1.bf16.msra.mxu0 0
      %1040 = vmatprep.subr.bf16.mxu0 0
      %1041 = vmatpush1.bf16.msra.mxu0 0
      %1042 = vmatprep.subr.bf16.mxu0 0
      %1043 = vmatpush1.bf16.msra.mxu0 0
      %1044 = vmatprep.subr.bf16.mxu0 0
      %1045 = vmatpush1.bf16.msra.mxu0 0
      %1046 = vmatprep.subr.bf16.mxu0 0
      %1047 = vmatpush1.bf16.msra.mxu0 0
      %1048 = vmatprep.subr.bf16.mxu0 0
      %1049 = vmatpush1.bf16.msra.mxu0 0
      %1050 = vmatprep.subr.bf16.mxu0 0
      %1051 = vmatpush1.bf16.msra.mxu0 0
      %1052 = vmatprep.subr.bf16.mxu0 0
      %1053 = vmatpush1.bf16.msra.mxu0 0
      %1054 = vmatprep.subr.bf16.mxu0 0
      %1055 = vmatpush1.bf16.msra.mxu0 0
      %1056 = vmatprep.subr.bf16.mxu0 0
      %1057 = vmatpush1.bf16.msra.mxu0 0
      %1058 = vmatprep.subr.bf16.mxu0 0
      %1059 = vmatpush1.bf16.msra.mxu0 0
      %1060 = vmatprep.subr.bf16.mxu0 0
      %1061 = vmatpush1.bf16.msra.mxu0 0
      %1062 = vmatprep.subr.bf16.mxu0 0
      %1063 = vmatpush1.bf16.msra.mxu0 0
      %1064 = vmatprep.mubr.bf16.mxu0 0
      %1065 = vmatmul.mubr.bf16.gmra.mrb[0].mxu0 %v1027
      %v1066 = vpop.f32.mrb[0].mxu0
      %v1067 = vadd.f32 0.0, %v1066
      %v1068 = vpop.f32.mrb[0].mxu0
      %v1069 = vpop.f32.mrb[0].mxu0
      %v1070 = vadd.f32 0.0, %v1069
      %v1071 = vpop.f32.mrb[0].mxu0
      %1072 = vmatprep.mubr.bf16.mxu0 0
      %1073 = vmatmul.mubr.bf16.gmra.mrb[0].mxu0 %v1030
      %v1074 = vpop.f32.mrb[0].mxu0
      %v1075 = vadd.f32 0.0, %v1074
      %v1076 = vpop.f32.mrb[0].mxu0
      %v1077 = vpop.f32.mrb[0].mxu0
      %v1078 = vadd.f32 0.0, %v1077
      %v1079 = vpop.f32.mrb[0].mxu0
      %1080 = vdwg.mxu0
      %v1081 = vpack.c.bf16 %v1070, %v1067
      %v1082 = vpack.c.bf16 %v1078, %v1075
      %s1083 = scalar_lea.vmem %s20, 64
      %v1084 = vld [vmem:[%s1083] sm:$0xf]
      %v1085 = vld [vmem:[%s1083 + $0x4] sm:$0xf]
      %v1086 = vld [vmem:[%s1083 + $0x8] sm:$0xf]
      %v1087 = vld [vmem:[%s1083 + $0xc] sm:$0xf]
      %v1088 = vld [vmem:[%s1083 + $0x10] sm:$0xf]
      %v1089 = vld [vmem:[%s1083 + $0x14] sm:$0xf]
      %v1090 = vld [vmem:[%s1083 + $0x18] sm:$0xf]
      %v1091 = vld [vmem:[%s1083 + $0x1c] sm:$0xf]
      %v1092 = vld [vmem:[%s1083 + $0x20] sm:$0xf]
      %v1093 = vld [vmem:[%s1083 + $0x24] sm:$0xf]
      %v1094 = vld [vmem:[%s1083 + $0x28] sm:$0xf]
      %v1095 = vld [vmem:[%s1083 + $0x2c] sm:$0xf]
      %v1096 = vld [vmem:[%s1083 + $0x30] sm:$0xf]
      %v1097 = vld [vmem:[%s1083 + $0x34] sm:$0xf]
      %v1098 = vld [vmem:[%s1083 + $0x38] sm:$0xf]
      %v1099 = vld [vmem:[%s1083 + $0x3c] sm:$0xf]
      %v1116 = vunpack.c.l.b16 %v1084
      %v1117 = vunpack.c.l.b16 %v1085
      %v1118 = vunpack.c.l.b16 %v1086
      %v1119 = vunpack.c.l.b16 %v1087
      %v1120 = vunpack.c.l.b16 %v1088
      %v1121 = vunpack.c.l.b16 %v1089
      %v1122 = vunpack.c.l.b16 %v1090
      %v1123 = vunpack.c.l.b16 %v1091
      %v1124 = vunpack.c.l.b16 %v1092
      %v1125 = vunpack.c.l.b16 %v1093
      %v1126 = vunpack.c.l.b16 %v1094
      %v1127 = vunpack.c.l.b16 %v1095
      %v1128 = vunpack.c.l.b16 %v1096
      %v1129 = vunpack.c.l.b16 %v1097
      %v1130 = vunpack.c.l.b16 %v1098
      %v1131 = vunpack.c.l.b16 %v1099
      %v1132 = vpack.c.b16 %v1117, %v1116
      %v1133 = vpack.c.b16 %v1119, %v1118
      %v1134 = vpack.c.b16 %v1121, %v1120
      %v1135 = vpack.c.b16 %v1123, %v1122
      %v1136 = vpack.c.b16 %v1125, %v1124
      %v1137 = vpack.c.b16 %v1127, %v1126
      %v1138 = vpack.c.b16 %v1129, %v1128
      %v1139 = vpack.c.b16 %v1131, %v1130
      %1148 = vmatprep.subr.bf16.mxu0 0
      %1149 = vmatpush1.bf16.msra.mxu0 %v1132
      %1150 = vmatprep.subr.bf16.mxu0 0
      %1151 = vmatpush1.bf16.msra.mxu0 %v1133
      %1152 = vmatprep.subr.bf16.mxu0 0
      %1153 = vmatpush1.bf16.msra.mxu0 %v1134
      %1154 = vmatprep.subr.bf16.mxu0 0
      %1155 = vmatpush1.bf16.msra.mxu0 %v1135
      %1156 = vmatprep.subr.bf16.mxu0 0
      %1157 = vmatpush1.bf16.msra.mxu0 %v1136
      %1158 = vmatprep.subr.bf16.mxu0 0
      %1159 = vmatpush1.bf16.msra.mxu0 %v1137
      %1160 = vmatprep.subr.bf16.mxu0 0
      %1161 = vmatpush1.bf16.msra.mxu0 %v1138
      %1162 = vmatprep.subr.bf16.mxu0 0
      %1163 = vmatpush1.bf16.msra.mxu0 %v1139
      %1164 = vmatprep.subr.bf16.mxu0 0
      %1165 = vmatpush1.bf16.msra.mxu0 0
      %1166 = vmatprep.subr.bf16.mxu0 0
      %1167 = vmatpush1.bf16.msra.mxu0 0
      %1168 = vmatprep.subr.bf16.mxu0 0
      %1169 = vmatpush1.bf16.msra.mxu0 0
      %1170 = vmatprep.subr.bf16.mxu0 0
      %1171 = vmatpush1.bf16.msra.mxu0 0
      %1172 = vmatprep.subr.bf16.mxu0 0
      %1173 = vmatpush1.bf16.msra.mxu0 0
      %1174 = vmatprep.subr.bf16.mxu0 0
      %1175 = vmatpush1.bf16.msra.mxu0 0
      %1176 = vmatprep.subr.bf16.mxu0 0
      %1177 = vmatpush1.bf16.msra.mxu0 0
      %1178 = vmatprep.subr.bf16.mxu0 0
      %1179 = vmatpush1.bf16.msra.mxu0 0
      %1180 = vmatprep.mubr.bf16.mxu0 0
      %1181 = vmatmul.mubr.bf16.gmra.mrb[0].mxu0 %v1081
      %v1182 = vpop.f32.mrb[0].mxu0
      %v1183 = vadd.f32 0.0, %v1182
      %v1184 = vpop.f32.mrb[0].mxu0
      %v1185 = vpop.f32.mrb[0].mxu0
      %v1186 = vadd.f32 0.0, %v1185
      %v1187 = vpop.f32.mrb[0].mxu0
      %1188 = vmatprep.mubr.bf16.mxu0 0
      %1189 = vmatmul.mubr.bf16.gmra.mrb[0].mxu0 %v1082
      %v1190 = vpop.f32.mrb[0].mxu0
      %v1191 = vadd.f32 0.0, %v1190
      %v1192 = vpop.f32.mrb[0].mxu0
      %v1193 = vpop.f32.mrb[0].mxu0
      %v1194 = vadd.f32 0.0, %v1193
      %v1195 = vpop.f32.mrb[0].mxu0
      %1196 = vdwg.mxu0
      %v1197 = vadd.f32 %v997, %v1183
      %v1198 = vadd.f32 %v1000, %v1186
      %v1199 = vadd.f32 %v1005, %v1191
      %v1200 = vadd.f32 %v1008, %v1194
      %v1201 = vld [vmem:[%s3] sm:$0xff]
      %v1202 = vld [vmem:[%s3 + $0x8] sm:$0xff]
      %v1203 = vld [vmem:[%s3 + $0x10] sm:$0xff]
      %v1204 = vld [vmem:[%s3 + $0x18] sm:$0xff]
      %1206 = vset.pattern.permute.xlu0 0
      %1207 = vperm.xlu0 %1206, %v1201
      %v1208 = vpop.permute.xlu0 %1207
      %1211 = vset.pattern.permute.xlu0 0
      %1212 = vperm.xlu0 %1211, %v1202
      %v1213 = vpop.permute.xlu0 %1212
      %1216 = vset.pattern.permute.xlu0 0
      %1217 = vperm.xlu0 %1216, %v1203
      %v1218 = vpop.permute.xlu0 %1217
      %1221 = vset.pattern.permute.xlu0 0
      %1222 = vperm.xlu0 %1221, %v1204
      %v1223 = vpop.permute.xlu0 %1222
      %v1225 = vadd.f32 %v1197, %v1208
      %v1226 = vadd.f32 %v1198, %v1213
      %v1227 = vadd.f32 %v1199, %v1218
      %v1228 = vadd.f32 %v1200, %v1223
      %v1230 = vlaneseq
      %v1231 = vshrl.u32 %v1230, 7
      %v1232 = vsub.s32 0, %v1231
      %v1233 = vrot.slane %v742, %v1232
      %v1235 = vmul.f32 %v1225, %v1233
      %v1236 = vmul.f32 %v1226, %v1233
      %v1237 = vmul.f32 %v1227, %v1233
      %v1238 = vmul.f32 %v1228, %v1233
      %vm1239 = vcmp.ge.f32.partialorder %v1235, 0.0
      %vm1240 = vcmp.ge.f32.partialorder %v1236, 0.0
      %vm1241 = vcmp.ge.f32.partialorder %v1237, 0.0
      %vm1242 = vcmp.ge.f32.partialorder %v1238, 0.0
      %v1243 = vmul.f32 %v1235, 0.01
      %v1244 = vmul.f32 %v1236, 0.01
      %v1245 = vmul.f32 %v1237, 0.01
      %v1246 = vmul.f32 %v1238, 0.01
      %v1247 = vsel %vm1239, %v1235, %v1243
      %v1248 = vsel %vm1240, %v1236, %v1244
      %v1249 = vsel %vm1241, %v1237, %v1245
      %v1250 = vsel %vm1242, %v1238, %v1246
      %v1251 = vpack.c.bf16 %v1248, %v1247
      %v1252 = vpack.c.bf16 %v1250, %v1249
      %v1253 = vld [vmem:[%s4] sm:$0xf]
      %v1254 = vld [vmem:[%s4 + $0x4] sm:$0xf]
      %v1255 = vld [vmem:[%s4 + $0x8] sm:$0xf]
      %v1256 = vld [vmem:[%s4 + $0xc] sm:$0xf]
      %v1257 = vld [vmem:[%s4 + $0x10] sm:$0xf]
      %v1258 = vld [vmem:[%s4 + $0x14] sm:$0xf]
      %v1259 = vld [vmem:[%s4 + $0x18] sm:$0xf]
      %v1260 = vld [vmem:[%s4 + $0x1c] sm:$0xf]
      %v1261 = vld [vmem:[%s4 + $0x20] sm:$0xf]
      %v1262 = vld [vmem:[%s4 + $0x24] sm:$0xf]
      %v1263 = vld [vmem:[%s4 + $0x28] sm:$0xf]
      %v1264 = vld [vmem:[%s4 + $0x2c] sm:$0xf]
      %v1265 = vld [vmem:[%s4 + $0x30] sm:$0xf]
      %v1266 = vld [vmem:[%s4 + $0x34] sm:$0xf]
      %v1267 = vld [vmem:[%s4 + $0x38] sm:$0xf]
      %v1268 = vld [vmem:[%s4 + $0x3c] sm:$0xf]
      %v1285 = vunpack.c.l.b16 %v1253
      %v1286 = vunpack.c.l.b16 %v1254
      %v1287 = vunpack.c.l.b16 %v1255
      %v1288 = vunpack.c.l.b16 %v1256
      %v1289 = vunpack.c.l.b16 %v1257
      %v1290 = vunpack.c.l.b16 %v1258
      %v1291 = vunpack.c.l.b16 %v1259
      %v1292 = vunpack.c.l.b16 %v1260
      %v1293 = vunpack.c.l.b16 %v1261
      %v1294 = vunpack.c.l.b16 %v1262
      %v1295 = vunpack.c.l.b16 %v1263
      %v1296 = vunpack.c.l.b16 %v1264
      %v1297 = vunpack.c.l.b16 %v1265
      %v1298 = vunpack.c.l.b16 %v1266
      %v1299 = vunpack.c.l.b16 %v1267
      %v1300 = vunpack.c.l.b16 %v1268
      %v1301 = vpack.c.b16 %v1286, %v1285
      %v1302 = vpack.c.b16 %v1288, %v1287
      %v1303 = vpack.c.b16 %v1290, %v1289
      %v1304 = vpack.c.b16 %v1292, %v1291
      %v1305 = vpack.c.b16 %v1294, %v1293
      %v1306 = vpack.c.b16 %v1296, %v1295
      %v1307 = vpack.c.b16 %v1298, %v1297
      %v1308 = vpack.c.b16 %v1300, %v1299
      %v1310 = vsel %vm770, %v1301, 0
      %v1313 = vsel %vm770, %v1302, 0
      %v1316 = vsel %vm770, %v1303, 0
      %v1319 = vsel %vm770, %v1304, 0
      %v1322 = vsel %vm770, %v1305, 0
      %v1325 = vsel %vm770, %v1306, 0
      %v1328 = vsel %vm770, %v1307, 0
      %v1331 = vsel %vm770, %v1308, 0
      %1333 = vmatprep.subr.bf16.mxu0 0
      %1334 = vmatpush1.bf16.msra.mxu0 %v1251
      %1335 = vmatprep.subr.bf16.mxu0 0
      %1336 = vmatpush1.bf16.msra.mxu0 %v1252
      %1337 = vmatprep.subr.bf16.mxu0 0
      %1338 = vmatpush1.bf16.msra.mxu0 0
      %1339 = vmatprep.subr.bf16.mxu0 0
      %1340 = vmatpush1.bf16.msra.mxu0 0
      %1341 = vmatprep.subr.bf16.mxu0 0
      %1342 = vmatpush1.bf16.msra.mxu0 0
      %1343 = vmatprep.subr.bf16.mxu0 0
      %1344 = vmatpush1.bf16.msra.mxu0 0
      %1345 = vmatprep.subr.bf16.mxu0 0
      %1346 = vmatpush1.bf16.msra.mxu0 0
      %1347 = vmatprep.subr.bf16.mxu0 0
      %1348 = vmatpush1.bf16.msra.mxu0 0
      %1349 = vmatprep.subr.bf16.mxu0 0
      %1350 = vmatpush1.bf16.msra.mxu0 0
      %1351 = vmatprep.subr.bf16.mxu0 0
      %1352 = vmatpush1.bf16.msra.mxu0 0
      %1353 = vmatprep.subr.bf16.mxu0 0
      %1354 = vmatpush1.bf16.msra.mxu0 0
      %1355 = vmatprep.subr.bf16.mxu0 0
      %1356 = vmatpush1.bf16.msra.mxu0 0
      %1357 = vmatprep.subr.bf16.mxu0 0
      %1358 = vmatpush1.bf16.msra.mxu0 0
      %1359 = vmatprep.subr.bf16.mxu0 0
      %1360 = vmatpush1.bf16.msra.mxu0 0
      %1361 = vmatprep.subr.bf16.mxu0 0
      %1362 = vmatpush1.bf16.msra.mxu0 0
      %1363 = vmatprep.subr.bf16.mxu0 0
      %1364 = vmatpush1.bf16.msra.mxu0 0
      %1365 = vmatprep.mubr.bf16.mxu0 0
      %1366 = vmatmul.mubr.bf16.gmra.mrb[0].mxu0 %v1310
      %v1367 = vpop.f32.mrb[0].mxu0
      %v1368 = vadd.f32 0.0, %v1367
      %v1369 = vpop.f32.mrb[0].mxu0
      %v1370 = vpop.f32.mrb[0].mxu0
      %v1371 = vadd.f32 0.0, %v1370
      %v1372 = vpop.f32.mrb[0].mxu0
      %1373 = vmatprep.mubr.bf16.mxu0 0
      %1374 = vmatmul.mubr.bf16.gmra.mrb[0].mxu0 %v1313
      %v1375 = vpop.f32.mrb[0].mxu0
      %v1376 = vadd.f32 0.0, %v1375
      %v1377 = vpop.f32.mrb[0].mxu0
      %v1378 = vpop.f32.mrb[0].mxu0
      %v1379 = vadd.f32 0.0, %v1378
      %v1380 = vpop.f32.mrb[0].mxu0
      %1381 = vmatprep.mubr.bf16.mxu0 0
      %1382 = vmatmul.mubr.bf16.gmra.mrb[0].mxu0 %v1316
      %v1383 = vpop.f32.mrb[0].mxu0
      %v1384 = vadd.f32 0.0, %v1383
      %v1385 = vpop.f32.mrb[0].mxu0
      %v1386 = vpop.f32.mrb[0].mxu0
      %v1387 = vadd.f32 0.0, %v1386
      %v1388 = vpop.f32.mrb[0].mxu0
      %1389 = vmatprep.mubr.bf16.mxu0 0
      %1390 = vmatmul.mubr.bf16.gmra.mrb[0].mxu0 %v1319
      %v1391 = vpop.f32.mrb[0].mxu0
      %v1392 = vadd.f32 0.0, %v1391
      %v1393 = vpop.f32.mrb[0].mxu0
      %v1394 = vpop.f32.mrb[0].mxu0
      %v1395 = vadd.f32 0.0, %v1394
      %v1396 = vpop.f32.mrb[0].mxu0
      %1397 = vmatprep.mubr.bf16.mxu0 0
      %1398 = vmatmul.mubr.bf16.gmra.mrb[0].mxu0 %v1322
      %v1399 = vpop.f32.mrb[0].mxu0
      %v1400 = vadd.f32 0.0, %v1399
      %v1401 = vpop.f32.mrb[0].mxu0
      %v1402 = vpop.f32.mrb[0].mxu0
      %v1403 = vadd.f32 0.0, %v1402
      %v1404 = vpop.f32.mrb[0].mxu0
      %1405 = vmatprep.mubr.bf16.mxu0 0
      %1406 = vmatmul.mubr.bf16.gmra.mrb[0].mxu0 %v1325
      %v1407 = vpop.f32.mrb[0].mxu0
      %v1408 = vadd.f32 0.0, %v1407
      %v1409 = vpop.f32.mrb[0].mxu0
      %v1410 = vpop.f32.mrb[0].mxu0
      %v1411 = vadd.f32 0.0, %v1410
      %v1412 = vpop.f32.mrb[0].mxu0
      %1413 = vmatprep.mubr.bf16.mxu0 0
      %1414 = vmatmul.mubr.bf16.gmra.mrb[0].mxu0 %v1328
      %v1415 = vpop.f32.mrb[0].mxu0
      %v1416 = vadd.f32 0.0, %v1415
      %v1417 = vpop.f32.mrb[0].mxu0
      %v1418 = vpop.f32.mrb[0].mxu0
      %v1419 = vadd.f32 0.0, %v1418
      %v1420 = vpop.f32.mrb[0].mxu0
      %1421 = vmatprep.mubr.bf16.mxu0 0
      %1422 = vmatmul.mubr.bf16.gmra.mrb[0].mxu0 %v1331
      %v1423 = vpop.f32.mrb[0].mxu0
      %v1424 = vadd.f32 0.0, %v1423
      %v1425 = vpop.f32.mrb[0].mxu0
      %v1426 = vpop.f32.mrb[0].mxu0
      %v1427 = vadd.f32 0.0, %v1426
      %v1428 = vpop.f32.mrb[0].mxu0
      %1429 = vdwg.mxu0
      %v1430 = vpack.c.bf16 %v1371, %v1368
      %v1431 = vpack.c.bf16 %v1379, %v1376
      %v1432 = vpack.c.bf16 %v1387, %v1384
      %v1433 = vpack.c.bf16 %v1395, %v1392
      %v1434 = vpack.c.bf16 %v1403, %v1400
      %v1435 = vpack.c.bf16 %v1411, %v1408
      %v1436 = vpack.c.bf16 %v1419, %v1416
      %v1437 = vpack.c.bf16 %v1427, %v1424
      %s1438 = scalar_lea.vmem %s4, 64
      %v1439 = vld [vmem:[%s1438] sm:$0xf]
      %v1440 = vld [vmem:[%s1438 + $0x4] sm:$0xf]
      %v1441 = vld [vmem:[%s1438 + $0x8] sm:$0xf]
      %v1442 = vld [vmem:[%s1438 + $0xc] sm:$0xf]
      %v1443 = vld [vmem:[%s1438 + $0x10] sm:$0xf]
      %v1444 = vld [vmem:[%s1438 + $0x14] sm:$0xf]
      %v1445 = vld [vmem:[%s1438 + $0x18] sm:$0xf]
      %v1446 = vld [vmem:[%s1438 + $0x1c] sm:$0xf]
      %v1447 = vld [vmem:[%s1438 + $0x20] sm:$0xf]
      %v1448 = vld [vmem:[%s1438 + $0x24] sm:$0xf]
      %v1449 = vld [vmem:[%s1438 + $0x28] sm:$0xf]
      %v1450 = vld [vmem:[%s1438 + $0x2c] sm:$0xf]
      %v1451 = vld [vmem:[%s1438 + $0x30] sm:$0xf]
      %v1452 = vld [vmem:[%s1438 + $0x34] sm:$0xf]
      %v1453 = vld [vmem:[%s1438 + $0x38] sm:$0xf]
      %v1454 = vld [vmem:[%s1438 + $0x3c] sm:$0xf]
      %v1471 = vunpack.c.l.b16 %v1439
      %v1472 = vunpack.c.l.b16 %v1440
      %v1473 = vunpack.c.l.b16 %v1441
      %v1474 = vunpack.c.l.b16 %v1442
      %v1475 = vunpack.c.l.b16 %v1443
      %v1476 = vunpack.c.l.b16 %v1444
      %v1477 = vunpack.c.l.b16 %v1445
      %v1478 = vunpack.c.l.b16 %v1446
      %v1479 = vunpack.c.l.b16 %v1447
      %v1480 = vunpack.c.l.b16 %v1448
      %v1481 = vunpack.c.l.b16 %v1449
      %v1482 = vunpack.c.l.b16 %v1450
      %v1483 = vunpack.c.l.b16 %v1451
      %v1484 = vunpack.c.l.b16 %v1452
      %v1485 = vunpack.c.l.b16 %v1453
      %v1486 = vunpack.c.l.b16 %v1454
      %v1487 = vpack.c.b16 %v1472, %v1471
      %v1488 = vpack.c.b16 %v1474, %v1473
      %v1489 = vpack.c.b16 %v1476, %v1475
      %v1490 = vpack.c.b16 %v1478, %v1477
      %v1491 = vpack.c.b16 %v1480, %v1479
      %v1492 = vpack.c.b16 %v1482, %v1481
      %v1493 = vpack.c.b16 %v1484, %v1483
      %v1494 = vpack.c.b16 %v1486, %v1485
      %v1496 = vsel %vm770, %v1487, 0
      %v1499 = vsel %vm770, %v1488, 0
      %v1502 = vsel %vm770, %v1489, 0
      %v1505 = vsel %vm770, %v1490, 0
      %v1508 = vsel %vm770, %v1491, 0
      %v1511 = vsel %vm770, %v1492, 0
      %v1514 = vsel %vm770, %v1493, 0
      %v1517 = vsel %vm770, %v1494, 0
      %1519 = vmatprep.subr.bf16.mxu0 0
      %1520 = vmatpush1.bf16.msra.mxu0 %v1251
      %1521 = vmatprep.subr.bf16.mxu0 0
      %1522 = vmatpush1.bf16.msra.mxu0 %v1252
      %1523 = vmatprep.subr.bf16.mxu0 0
      %1524 = vmatpush1.bf16.msra.mxu0 0
      %1525 = vmatprep.subr.bf16.mxu0 0
      %1526 = vmatpush1.bf16.msra.mxu0 0
      %1527 = vmatprep.subr.bf16.mxu0 0
      %1528 = vmatpush1.bf16.msra.mxu0 0
      %1529 = vmatprep.subr.bf16.mxu0 0
      %1530 = vmatpush1.bf16.msra.mxu0 0
      %1531 = vmatprep.subr.bf16.mxu0 0
      %1532 = vmatpush1.bf16.msra.mxu0 0
      %1533 = vmatprep.subr.bf16.mxu0 0
      %1534 = vmatpush1.bf16.msra.mxu0 0
      %1535 = vmatprep.subr.bf16.mxu0 0
      %1536 = vmatpush1.bf16.msra.mxu0 0
      %1537 = vmatprep.subr.bf16.mxu0 0
      %1538 = vmatpush1.bf16.msra.mxu0 0
      %1539 = vmatprep.subr.bf16.mxu0 0
      %1540 = vmatpush1.bf16.msra.mxu0 0
      %1541 = vmatprep.subr.bf16.mxu0 0
      %1542 = vmatpush1.bf16.msra.mxu0 0
      %1543 = vmatprep.subr.bf16.mxu0 0
      %1544 = vmatpush1.bf16.msra.mxu0 0
      %1545 = vmatprep.subr.bf16.mxu0 0
      %1546 = vmatpush1.bf16.msra.mxu0 0
      %1547 = vmatprep.subr.bf16.mxu0 0
      %1548 = vmatpush1.bf16.msra.mxu0 0
      %1549 = vmatprep.subr.bf16.mxu0 0
      %1550 = vmatpush1.bf16.msra.mxu0 0
      %1551 = vmatprep.mubr.bf16.mxu0 0
      %1552 = vmatmul.mubr.bf16.gmra.mrb[0].mxu0 %v1496
      %v1553 = vpop.f32.mrb[0].mxu0
      %v1554 = vadd.f32 0.0, %v1553
      %v1555 = vpop.f32.mrb[0].mxu0
      %v1556 = vpop.f32.mrb[0].mxu0
      %v1557 = vadd.f32 0.0, %v1556
      %v1558 = vpop.f32.mrb[0].mxu0
      %1559 = vmatprep.mubr.bf16.mxu0 0
      %1560 = vmatmul.mubr.bf16.gmra.mrb[0].mxu0 %v1499
      %v1561 = vpop.f32.mrb[0].mxu0
      %v1562 = vadd.f32 0.0, %v1561
      %v1563 = vpop.f32.mrb[0].mxu0
      %v1564 = vpop.f32.mrb[0].mxu0
      %v1565 = vadd.f32 0.0, %v1564
      %v1566 = vpop.f32.mrb[0].mxu0
      %1567 = vmatprep.mubr.bf16.mxu0 0
      %1568 = vmatmul.mubr.bf16.gmra.mrb[0].mxu0 %v1502
      %v1569 = vpop.f32.mrb[0].mxu0
      %v1570 = vadd.f32 0.0, %v1569
      %v1571 = vpop.f32.mrb[0].mxu0
      %v1572 = vpop.f32.mrb[0].mxu0
      %v1573 = vadd.f32 0.0, %v1572
      %v1574 = vpop.f32.mrb[0].mxu0
      %1575 = vmatprep.mubr.bf16.mxu0 0
      %1576 = vmatmul.mubr.bf16.gmra.mrb[0].mxu0 %v1505
      %v1577 = vpop.f32.mrb[0].mxu0
      %v1578 = vadd.f32 0.0, %v1577
      %v1579 = vpop.f32.mrb[0].mxu0
      %v1580 = vpop.f32.mrb[0].mxu0
      %v1581 = vadd.f32 0.0, %v1580
      %v1582 = vpop.f32.mrb[0].mxu0
      %1583 = vmatprep.mubr.bf16.mxu0 0
      %1584 = vmatmul.mubr.bf16.gmra.mrb[0].mxu0 %v1508
      %v1585 = vpop.f32.mrb[0].mxu0
      %v1586 = vadd.f32 0.0, %v1585
      %v1587 = vpop.f32.mrb[0].mxu0
      %v1588 = vpop.f32.mrb[0].mxu0
      %v1589 = vadd.f32 0.0, %v1588
      %v1590 = vpop.f32.mrb[0].mxu0
      %1591 = vmatprep.mubr.bf16.mxu0 0
      %1592 = vmatmul.mubr.bf16.gmra.mrb[0].mxu0 %v1511
      %v1593 = vpop.f32.mrb[0].mxu0
      %v1594 = vadd.f32 0.0, %v1593
      %v1595 = vpop.f32.mrb[0].mxu0
      %v1596 = vpop.f32.mrb[0].mxu0
      %v1597 = vadd.f32 0.0, %v1596
      %v1598 = vpop.f32.mrb[0].mxu0
      %1599 = vmatprep.mubr.bf16.mxu0 0
      %1600 = vmatmul.mubr.bf16.gmra.mrb[0].mxu0 %v1514
      %v1601 = vpop.f32.mrb[0].mxu0
      %v1602 = vadd.f32 0.0, %v1601
      %v1603 = vpop.f32.mrb[0].mxu0
      %v1604 = vpop.f32.mrb[0].mxu0
      %v1605 = vadd.f32 0.0, %v1604
      %v1606 = vpop.f32.mrb[0].mxu0
      %1607 = vmatprep.mubr.bf16.mxu0 0
      %1608 = vmatmul.mubr.bf16.gmra.mrb[0].mxu0 %v1517
      %v1609 = vpop.f32.mrb[0].mxu0
      %v1610 = vadd.f32 0.0, %v1609
      %v1611 = vpop.f32.mrb[0].mxu0
      %v1612 = vpop.f32.mrb[0].mxu0
      %v1613 = vadd.f32 0.0, %v1612
      %v1614 = vpop.f32.mrb[0].mxu0
      %1615 = vdwg.mxu0
      %1616 = vmatprep.subr.bf16.mxu0 0
      %1617 = vmatpush1.bf16.msra.mxu0 %v946
      %1618 = vmatprep.subr.bf16.mxu0 0
      %1619 = vmatpush1.bf16.msra.mxu0 %v947
      %1620 = vmatprep.subr.bf16.mxu0 0
      %1621 = vmatpush1.bf16.msra.mxu0 %v948
      %1622 = vmatprep.subr.bf16.mxu0 0
      %1623 = vmatpush1.bf16.msra.mxu0 %v949
      %1624 = vmatprep.subr.bf16.mxu0 0
      %1625 = vmatpush1.bf16.msra.mxu0 %v950
      %1626 = vmatprep.subr.bf16.mxu0 0
      %1627 = vmatpush1.bf16.msra.mxu0 %v951
      %1628 = vmatprep.subr.bf16.mxu0 0
      %1629 = vmatpush1.bf16.msra.mxu0 %v952
      %1630 = vmatprep.subr.bf16.mxu0 0
      %1631 = vmatpush1.bf16.msra.mxu0 %v953
      %1632 = vmatprep.subr.bf16.mxu0 0
      %1633 = vmatpush1.bf16.msra.mxu0 0
      %1634 = vmatprep.subr.bf16.mxu0 0
      %1635 = vmatpush1.bf16.msra.mxu0 0
      %1636 = vmatprep.subr.bf16.mxu0 0
      %1637 = vmatpush1.bf16.msra.mxu0 0
      %1638 = vmatprep.subr.bf16.mxu0 0
      %1639 = vmatpush1.bf16.msra.mxu0 0
      %1640 = vmatprep.subr.bf16.mxu0 0
      %1641 = vmatpush1.bf16.msra.mxu0 0
      %1642 = vmatprep.subr.bf16.mxu0 0
      %1643 = vmatpush1.bf16.msra.mxu0 0
      %1644 = vmatprep.subr.bf16.mxu0 0
      %1645 = vmatpush1.bf16.msra.mxu0 0
      %1646 = vmatprep.subr.bf16.mxu0 0
      %1647 = vmatpush1.bf16.msra.mxu0 0
      %1648 = vmatprep.mubr.bf16.mxu0 0
      %1649 = vmatmul.mubr.bf16.gmra.mrb[0].mxu0 %v1430
      %v1650 = vpop.f32.mrb[0].mxu0
      %v1651 = vadd.f32 %v1554, %v1650
      %v1652 = vpop.f32.mrb[0].mxu0
      %v1653 = vpop.f32.mrb[0].mxu0
      %v1654 = vadd.f32 %v1557, %v1653
      %v1655 = vpop.f32.mrb[0].mxu0
      %1656 = vmatprep.mubr.bf16.mxu0 0
      %1657 = vmatmul.mubr.bf16.gmra.mrb[0].mxu0 %v1431
      %v1658 = vpop.f32.mrb[0].mxu0
      %v1659 = vadd.f32 %v1562, %v1658
      %v1660 = vpop.f32.mrb[0].mxu0
      %v1661 = vpop.f32.mrb[0].mxu0
      %v1662 = vadd.f32 %v1565, %v1661
      %v1663 = vpop.f32.mrb[0].mxu0
      %1664 = vmatprep.mubr.bf16.mxu0 0
      %1665 = vmatmul.mubr.bf16.gmra.mrb[0].mxu0 %v1432
      %v1666 = vpop.f32.mrb[0].mxu0
      %v1667 = vadd.f32 %v1570, %v1666
      %v1668 = vpop.f32.mrb[0].mxu0
      %v1669 = vpop.f32.mrb[0].mxu0
      %v1670 = vadd.f32 %v1573, %v1669
      %v1671 = vpop.f32.mrb[0].mxu0
      %1672 = vmatprep.mubr.bf16.mxu0 0
      %1673 = vmatmul.mubr.bf16.gmra.mrb[0].mxu0 %v1433
      %v1674 = vpop.f32.mrb[0].mxu0
      %v1675 = vadd.f32 %v1578, %v1674
      %v1676 = vpop.f32.mrb[0].mxu0
      %v1677 = vpop.f32.mrb[0].mxu0
      %v1678 = vadd.f32 %v1581, %v1677
      %v1679 = vpop.f32.mrb[0].mxu0
      %1680 = vmatprep.mubr.bf16.mxu0 0
      %1681 = vmatmul.mubr.bf16.gmra.mrb[0].mxu0 %v1434
      %v1682 = vpop.f32.mrb[0].mxu0
      %v1683 = vadd.f32 %v1586, %v1682
      %v1684 = vpop.f32.mrb[0].mxu0
      %v1685 = vpop.f32.mrb[0].mxu0
      %v1686 = vadd.f32 %v1589, %v1685
      %v1687 = vpop.f32.mrb[0].mxu0
      %1688 = vmatprep.mubr.bf16.mxu0 0
      %1689 = vmatmul.mubr.bf16.gmra.mrb[0].mxu0 %v1435
      %v1690 = vpop.f32.mrb[0].mxu0
      %v1691 = vadd.f32 %v1594, %v1690
      %v1692 = vpop.f32.mrb[0].mxu0
      %v1693 = vpop.f32.mrb[0].mxu0
      %v1694 = vadd.f32 %v1597, %v1693
      %v1695 = vpop.f32.mrb[0].mxu0
      %1696 = vmatprep.mubr.bf16.mxu0 0
      %1697 = vmatmul.mubr.bf16.gmra.mrb[0].mxu0 %v1436
      %v1698 = vpop.f32.mrb[0].mxu0
      %v1699 = vadd.f32 %v1602, %v1698
      %v1700 = vpop.f32.mrb[0].mxu0
      %v1701 = vpop.f32.mrb[0].mxu0
      %v1702 = vadd.f32 %v1605, %v1701
      %v1703 = vpop.f32.mrb[0].mxu0
      %1704 = vmatprep.mubr.bf16.mxu0 0
      %1705 = vmatmul.mubr.bf16.gmra.mrb[0].mxu0 %v1437
      %v1706 = vpop.f32.mrb[0].mxu0
      %v1707 = vadd.f32 %v1610, %v1706
      %v1708 = vpop.f32.mrb[0].mxu0
      %v1709 = vpop.f32.mrb[0].mxu0
      %v1710 = vadd.f32 %v1613, %v1709
      %v1711 = vpop.f32.mrb[0].mxu0
      %1712 = vdwg.mxu0
      %s1713 = scalar_lea.vmem %s4, 128
      %v1714 = vld [vmem:[%s1713] sm:$0xf]
      %v1715 = vld [vmem:[%s1713 + $0x4] sm:$0xf]
      %v1716 = vld [vmem:[%s1713 + $0x8] sm:$0xf]
      %v1717 = vld [vmem:[%s1713 + $0xc] sm:$0xf]
      %v1718 = vld [vmem:[%s1713 + $0x10] sm:$0xf]
      %v1719 = vld [vmem:[%s1713 + $0x14] sm:$0xf]
      %v1720 = vld [vmem:[%s1713 + $0x18] sm:$0xf]
      %v1721 = vld [vmem:[%s1713 + $0x1c] sm:$0xf]
      %v1722 = vld [vmem:[%s1713 + $0x20] sm:$0xf]
      %v1723 = vld [vmem:[%s1713 + $0x24] sm:$0xf]
      %v1724 = vld [vmem:[%s1713 + $0x28] sm:$0xf]
      %v1725 = vld [vmem:[%s1713 + $0x2c] sm:$0xf]
      %v1726 = vld [vmem:[%s1713 + $0x30] sm:$0xf]
      %v1727 = vld [vmem:[%s1713 + $0x34] sm:$0xf]
      %v1728 = vld [vmem:[%s1713 + $0x38] sm:$0xf]
      %v1729 = vld [vmem:[%s1713 + $0x3c] sm:$0xf]
      %v1746 = vunpack.c.l.b16 %v1714
      %v1747 = vunpack.c.l.b16 %v1715
      %v1748 = vunpack.c.l.b16 %v1716
      %v1749 = vunpack.c.l.b16 %v1717
      %v1750 = vunpack.c.l.b16 %v1718
      %v1751 = vunpack.c.l.b16 %v1719
      %v1752 = vunpack.c.l.b16 %v1720
      %v1753 = vunpack.c.l.b16 %v1721
      %v1754 = vunpack.c.l.b16 %v1722
      %v1755 = vunpack.c.l.b16 %v1723
      %v1756 = vunpack.c.l.b16 %v1724
      %v1757 = vunpack.c.l.b16 %v1725
      %v1758 = vunpack.c.l.b16 %v1726
      %v1759 = vunpack.c.l.b16 %v1727
      %v1760 = vunpack.c.l.b16 %v1728
      %v1761 = vunpack.c.l.b16 %v1729
      %v1762 = vpack.c.b16 %v1747, %v1746
      %v1763 = vpack.c.b16 %v1749, %v1748
      %v1764 = vpack.c.b16 %v1751, %v1750
      %v1765 = vpack.c.b16 %v1753, %v1752
      %v1766 = vpack.c.b16 %v1755, %v1754
      %v1767 = vpack.c.b16 %v1757, %v1756
      %v1768 = vpack.c.b16 %v1759, %v1758
      %v1769 = vpack.c.b16 %v1761, %v1760
      %v1771 = vsel %vm770, %v1762, 0
      %v1774 = vsel %vm770, %v1763, 0
      %v1777 = vsel %vm770, %v1764, 0
      %v1780 = vsel %vm770, %v1765, 0
      %v1783 = vsel %vm770, %v1766, 0
      %v1786 = vsel %vm770, %v1767, 0
      %v1789 = vsel %vm770, %v1768, 0
      %v1792 = vsel %vm770, %v1769, 0
      %1794 = vmatprep.subr.bf16.mxu0 0
      %1795 = vmatpush1.bf16.msra.mxu0 %v1251
      %1796 = vmatprep.subr.bf16.mxu0 0
      %1797 = vmatpush1.bf16.msra.mxu0 %v1252
      %1798 = vmatprep.subr.bf16.mxu0 0
      %1799 = vmatpush1.bf16.msra.mxu0 0
      %1800 = vmatprep.subr.bf16.mxu0 0
      %1801 = vmatpush1.bf16.msra.mxu0 0
      %1802 = vmatprep.subr.bf16.mxu0 0
      %1803 = vmatpush1.bf16.msra.mxu0 0
      %1804 = vmatprep.subr.bf16.mxu0 0
      %1805 = vmatpush1.bf16.msra.mxu0 0
      %1806 = vmatprep.subr.bf16.mxu0 0
      %1807 = vmatpush1.bf16.msra.mxu0 0
      %1808 = vmatprep.subr.bf16.mxu0 0
      %1809 = vmatpush1.bf16.msra.mxu0 0
      %1810 = vmatprep.subr.bf16.mxu0 0
      %1811 = vmatpush1.bf16.msra.mxu0 0
      %1812 = vmatprep.subr.bf16.mxu0 0
      %1813 = vmatpush1.bf16.msra.mxu0 0
      %1814 = vmatprep.subr.bf16.mxu0 0
      %1815 = vmatpush1.bf16.msra.mxu0 0
      %1816 = vmatprep.subr.bf16.mxu0 0
      %1817 = vmatpush1.bf16.msra.mxu0 0
      %1818 = vmatprep.subr.bf16.mxu0 0
      %1819 = vmatpush1.bf16.msra.mxu0 0
      %1820 = vmatprep.subr.bf16.mxu0 0
      %1821 = vmatpush1.bf16.msra.mxu0 0
      %1822 = vmatprep.subr.bf16.mxu0 0
      %1823 = vmatpush1.bf16.msra.mxu0 0
      %1824 = vmatprep.subr.bf16.mxu0 0
      %1825 = vmatpush1.bf16.msra.mxu0 0
      %1826 = vmatprep.mubr.bf16.mxu0 0
      %1827 = vmatmul.mubr.bf16.gmra.mrb[0].mxu0 %v1771
      %v1828 = vpop.f32.mrb[0].mxu0
      %v1829 = vadd.f32 0.0, %v1828
      %v1830 = vpop.f32.mrb[0].mxu0
      %v1831 = vpop.f32.mrb[0].mxu0
      %v1832 = vadd.f32 0.0, %v1831
      %v1833 = vpop.f32.mrb[0].mxu0
      %1834 = vmatprep.mubr.bf16.mxu0 0
      %1835 = vmatmul.mubr.bf16.gmra.mrb[0].mxu0 %v1774
      %v1836 = vpop.f32.mrb[0].mxu0
      %v1837 = vadd.f32 0.0, %v1836
      %v1838 = vpop.f32.mrb[0].mxu0
      %v1839 = vpop.f32.mrb[0].mxu0
      %v1840 = vadd.f32 0.0, %v1839
      %v1841 = vpop.f32.mrb[0].mxu0
      %1842 = vmatprep.mubr.bf16.mxu0 0
      %1843 = vmatmul.mubr.bf16.gmra.mrb[0].mxu0 %v1777
      %v1844 = vpop.f32.mrb[0].mxu0
      %v1845 = vadd.f32 0.0, %v1844
      %v1846 = vpop.f32.mrb[0].mxu0
      %v1847 = vpop.f32.mrb[0].mxu0
      %v1848 = vadd.f32 0.0, %v1847
      %v1849 = vpop.f32.mrb[0].mxu0
      %1850 = vmatprep.mubr.bf16.mxu0 0
      %1851 = vmatmul.mubr.bf16.gmra.mrb[0].mxu0 %v1780
      %v1852 = vpop.f32.mrb[0].mxu0
      %v1853 = vadd.f32 0.0, %v1852
      %v1854 = vpop.f32.mrb[0].mxu0
      %v1855 = vpop.f32.mrb[0].mxu0
      %v1856 = vadd.f32 0.0, %v1855
      %v1857 = vpop.f32.mrb[0].mxu0
      %1858 = vmatprep.mubr.bf16.mxu0 0
      %1859 = vmatmul.mubr.bf16.gmra.mrb[0].mxu0 %v1783
      %v1860 = vpop.f32.mrb[0].mxu0
      %v1861 = vadd.f32 0.0, %v1860
      %v1862 = vpop.f32.mrb[0].mxu0
      %v1863 = vpop.f32.mrb[0].mxu0
      %v1864 = vadd.f32 0.0, %v1863
      %v1865 = vpop.f32.mrb[0].mxu0
      %1866 = vmatprep.mubr.bf16.mxu0 0
      %1867 = vmatmul.mubr.bf16.gmra.mrb[0].mxu0 %v1786
      %v1868 = vpop.f32.mrb[0].mxu0
      %v1869 = vadd.f32 0.0, %v1868
      %v1870 = vpop.f32.mrb[0].mxu0
      %v1871 = vpop.f32.mrb[0].mxu0
      %v1872 = vadd.f32 0.0, %v1871
      %v1873 = vpop.f32.mrb[0].mxu0
      %1874 = vmatprep.mubr.bf16.mxu0 0
      %1875 = vmatmul.mubr.bf16.gmra.mrb[0].mxu0 %v1789
      %v1876 = vpop.f32.mrb[0].mxu0
      %v1877 = vadd.f32 0.0, %v1876
      %v1878 = vpop.f32.mrb[0].mxu0
      %v1879 = vpop.f32.mrb[0].mxu0
      %v1880 = vadd.f32 0.0, %v1879
      %v1881 = vpop.f32.mrb[0].mxu0
      %1882 = vmatprep.mubr.bf16.mxu0 0
      %1883 = vmatmul.mubr.bf16.gmra.mrb[0].mxu0 %v1792
      %v1884 = vpop.f32.mrb[0].mxu0
      %v1885 = vadd.f32 0.0, %v1884
      %v1886 = vpop.f32.mrb[0].mxu0
      %v1887 = vpop.f32.mrb[0].mxu0
      %v1888 = vadd.f32 0.0, %v1887
      %v1889 = vpop.f32.mrb[0].mxu0
      %1890 = vdwg.mxu0
      %v1891 = vpack.c.bf16 %v1832, %v1829
      %v1892 = vpack.c.bf16 %v1840, %v1837
      %v1893 = vpack.c.bf16 %v1848, %v1845
      %v1894 = vpack.c.bf16 %v1856, %v1853
      %v1895 = vpack.c.bf16 %v1864, %v1861
      %v1896 = vpack.c.bf16 %v1872, %v1869
      %v1897 = vpack.c.bf16 %v1880, %v1877
      %v1898 = vpack.c.bf16 %v1888, %v1885
      %1899 = vmatprep.subr.bf16.mxu0 0
      %1900 = vmatpush1.bf16.msra.mxu0 %v1132
      %1901 = vmatprep.subr.bf16.mxu0 0
      %1902 = vmatpush1.bf16.msra.mxu0 %v1133
      %1903 = vmatprep.subr.bf16.mxu0 0
      %1904 = vmatpush1.bf16.msra.mxu0 %v1134
      %1905 = vmatprep.subr.bf16.mxu0 0
      %1906 = vmatpush1.bf16.msra.mxu0 %v1135
      %1907 = vmatprep.subr.bf16.mxu0 0
      %1908 = vmatpush1.bf16.msra.mxu0 %v1136
      %1909 = vmatprep.subr.bf16.mxu0 0
      %1910 = vmatpush1.bf16.msra.mxu0 %v1137
      %1911 = vmatprep.subr.bf16.mxu0 0
      %1912 = vmatpush1.bf16.msra.mxu0 %v1138
      %1913 = vmatprep.subr.bf16.mxu0 0
      %1914 = vmatpush1.bf16.msra.mxu0 %v1139
      %1915 = vmatprep.subr.bf16.mxu0 0
      %1916 = vmatpush1.bf16.msra.mxu0 0
      %1917 = vmatprep.subr.bf16.mxu0 0
      %1918 = vmatpush1.bf16.msra.mxu0 0
      %1919 = vmatprep.subr.bf16.mxu0 0
      %1920 = vmatpush1.bf16.msra.mxu0 0
      %1921 = vmatprep.subr.bf16.mxu0 0
      %1922 = vmatpush1.bf16.msra.mxu0 0
      %1923 = vmatprep.subr.bf16.mxu0 0
      %1924 = vmatpush1.bf16.msra.mxu0 0
      %1925 = vmatprep.subr.bf16.mxu0 0
      %1926 = vmatpush1.bf16.msra.mxu0 0
      %1927 = vmatprep.subr.bf16.mxu0 0
      %1928 = vmatpush1.bf16.msra.mxu0 0
      %1929 = vmatprep.subr.bf16.mxu0 0
      %1930 = vmatpush1.bf16.msra.mxu0 0
      %1931 = vmatprep.mubr.bf16.mxu0 0
      %1932 = vmatmul.mubr.bf16.gmra.mrb[0].mxu0 %v1891
      %v1933 = vpop.f32.mrb[0].mxu0
      %v1934 = vadd.f32 0.0, %v1933
      %v1935 = vpop.f32.mrb[0].mxu0
      %v1936 = vpop.f32.mrb[0].mxu0
      %v1937 = vadd.f32 0.0, %v1936
      %v1938 = vpop.f32.mrb[0].mxu0
      %1939 = vmatprep.mubr.bf16.mxu0 0
      %1940 = vmatmul.mubr.bf16.gmra.mrb[0].mxu0 %v1892
      %v1941 = vpop.f32.mrb[0].mxu0
      %v1942 = vadd.f32 0.0, %v1941
      %v1943 = vpop.f32.mrb[0].mxu0
      %v1944 = vpop.f32.mrb[0].mxu0
      %v1945 = vadd.f32 0.0, %v1944
      %v1946 = vpop.f32.mrb[0].mxu0
      %1947 = vmatprep.mubr.bf16.mxu0 0
      %1948 = vmatmul.mubr.bf16.gmra.mrb[0].mxu0 %v1893
      %v1949 = vpop.f32.mrb[0].mxu0
      %v1950 = vadd.f32 0.0, %v1949
      %v1951 = vpop.f32.mrb[0].mxu0
      %v1952 = vpop.f32.mrb[0].mxu0
      %v1953 = vadd.f32 0.0, %v1952
      %v1954 = vpop.f32.mrb[0].mxu0
      %1955 = vmatprep.mubr.bf16.mxu0 0
      %1956 = vmatmul.mubr.bf16.gmra.mrb[0].mxu0 %v1894
      %v1957 = vpop.f32.mrb[0].mxu0
      %v1958 = vadd.f32 0.0, %v1957
      %v1959 = vpop.f32.mrb[0].mxu0
      %v1960 = vpop.f32.mrb[0].mxu0
      %v1961 = vadd.f32 0.0, %v1960
      %v1962 = vpop.f32.mrb[0].mxu0
      %1963 = vmatprep.mubr.bf16.mxu0 0
      %1964 = vmatmul.mubr.bf16.gmra.mrb[0].mxu0 %v1895
      %v1965 = vpop.f32.mrb[0].mxu0
      %v1966 = vadd.f32 0.0, %v1965
      %v1967 = vpop.f32.mrb[0].mxu0
      %v1968 = vpop.f32.mrb[0].mxu0
      %v1969 = vadd.f32 0.0, %v1968
      %v1970 = vpop.f32.mrb[0].mxu0
      %1971 = vmatprep.mubr.bf16.mxu0 0
      %1972 = vmatmul.mubr.bf16.gmra.mrb[0].mxu0 %v1896
      %v1973 = vpop.f32.mrb[0].mxu0
      %v1974 = vadd.f32 0.0, %v1973
      %v1975 = vpop.f32.mrb[0].mxu0
      %v1976 = vpop.f32.mrb[0].mxu0
      %v1977 = vadd.f32 0.0, %v1976
      %v1978 = vpop.f32.mrb[0].mxu0
      %1979 = vmatprep.mubr.bf16.mxu0 0
      %1980 = vmatmul.mubr.bf16.gmra.mrb[0].mxu0 %v1897
      %v1981 = vpop.f32.mrb[0].mxu0
      %v1982 = vadd.f32 0.0, %v1981
      %v1983 = vpop.f32.mrb[0].mxu0
      %v1984 = vpop.f32.mrb[0].mxu0
      %v1985 = vadd.f32 0.0, %v1984
      %v1986 = vpop.f32.mrb[0].mxu0
      %1987 = vmatprep.mubr.bf16.mxu0 0
      %1988 = vmatmul.mubr.bf16.gmra.mrb[0].mxu0 %v1898
      %v1989 = vpop.f32.mrb[0].mxu0
      %v1990 = vadd.f32 0.0, %v1989
      %v1991 = vpop.f32.mrb[0].mxu0
      %v1992 = vpop.f32.mrb[0].mxu0
      %v1993 = vadd.f32 0.0, %v1992
      %v1994 = vpop.f32.mrb[0].mxu0
      %1995 = vdwg.mxu0
      %v1996 = vadd.f32 %v1651, %v1934
      %v1997 = vadd.f32 %v1654, %v1937
      %v1998 = vadd.f32 %v1659, %v1942
      %v1999 = vadd.f32 %v1662, %v1945
      %v2000 = vadd.f32 %v1667, %v1950
      %v2001 = vadd.f32 %v1670, %v1953
      %v2002 = vadd.f32 %v1675, %v1958
      %v2003 = vadd.f32 %v1678, %v1961
      %v2004 = vadd.f32 %v1683, %v1966
      %v2005 = vadd.f32 %v1686, %v1969
      %v2006 = vadd.f32 %v1691, %v1974
      %v2007 = vadd.f32 %v1694, %v1977
      %v2008 = vadd.f32 %v1699, %v1982
      %v2009 = vadd.f32 %v1702, %v1985
      %v2010 = vadd.f32 %v1707, %v1990
      %v2011 = vadd.f32 %v1710, %v1993
      %v2012 = vld [vmem:[%s5] sm:$0xff]
      %v2013 = vld [vmem:[%s5 + $0x8] sm:$0xff]
      %v2014 = vld [vmem:[%s5 + $0x10] sm:$0xff]
      %v2015 = vld [vmem:[%s5 + $0x18] sm:$0xff]
      %v2016 = vld [vmem:[%s5 + $0x20] sm:$0xff]
      %v2017 = vld [vmem:[%s5 + $0x28] sm:$0xff]
      %v2018 = vld [vmem:[%s5 + $0x30] sm:$0xff]
      %v2019 = vld [vmem:[%s5 + $0x38] sm:$0xff]
      %v2020 = vld [vmem:[%s5 + $0x40] sm:$0xff]
      %v2021 = vld [vmem:[%s5 + $0x48] sm:$0xff]
      %v2022 = vld [vmem:[%s5 + $0x50] sm:$0xff]
      %v2023 = vld [vmem:[%s5 + $0x58] sm:$0xff]
      %v2024 = vld [vmem:[%s5 + $0x60] sm:$0xff]
      %v2025 = vld [vmem:[%s5 + $0x68] sm:$0xff]
      %v2026 = vld [vmem:[%s5 + $0x70] sm:$0xff]
      %v2027 = vld [vmem:[%s5 + $0x78] sm:$0xff]
      %2029 = vset.pattern.permute.xlu0 0
      %2030 = vperm.xlu0 %2029, %v2012
      %v2031 = vpop.permute.xlu0 %2030
      %2034 = vset.pattern.permute.xlu0 0
      %2035 = vperm.xlu0 %2034, %v2013
      %v2036 = vpop.permute.xlu0 %2035
      %2039 = vset.pattern.permute.xlu0 0
      %2040 = vperm.xlu0 %2039, %v2014
      %v2041 = vpop.permute.xlu0 %2040
      %2044 = vset.pattern.permute.xlu0 0
      %2045 = vperm.xlu0 %2044, %v2015
      %v2046 = vpop.permute.xlu0 %2045
      %2049 = vset.pattern.permute.xlu0 0
      %2050 = vperm.xlu0 %2049, %v2016
      %v2051 = vpop.permute.xlu0 %2050
      %2054 = vset.pattern.permute.xlu0 0
      %2055 = vperm.xlu0 %2054, %v2017
      %v2056 = vpop.permute.xlu0 %2055
      %2059 = vset.pattern.permute.xlu0 0
      %2060 = vperm.xlu0 %2059, %v2018
      %v2061 = vpop.permute.xlu0 %2060
      %2064 = vset.pattern.permute.xlu0 0
      %2065 = vperm.xlu0 %2064, %v2019
      %v2066 = vpop.permute.xlu0 %2065
      %2069 = vset.pattern.permute.xlu0 0
      %2070 = vperm.xlu0 %2069, %v2020
      %v2071 = vpop.permute.xlu0 %2070
      %2074 = vset.pattern.permute.xlu0 0
      %2075 = vperm.xlu0 %2074, %v2021
      %v2076 = vpop.permute.xlu0 %2075
      %2079 = vset.pattern.permute.xlu0 0
      %2080 = vperm.xlu0 %2079, %v2022
      %v2081 = vpop.permute.xlu0 %2080
      %2084 = vset.pattern.permute.xlu0 0
      %2085 = vperm.xlu0 %2084, %v2023
      %v2086 = vpop.permute.xlu0 %2085
      %2089 = vset.pattern.permute.xlu0 0
      %2090 = vperm.xlu0 %2089, %v2024
      %v2091 = vpop.permute.xlu0 %2090
      %2094 = vset.pattern.permute.xlu0 0
      %2095 = vperm.xlu0 %2094, %v2025
      %v2096 = vpop.permute.xlu0 %2095
      %2099 = vset.pattern.permute.xlu0 0
      %2100 = vperm.xlu0 %2099, %v2026
      %v2101 = vpop.permute.xlu0 %2100
      %2104 = vset.pattern.permute.xlu0 0
      %2105 = vperm.xlu0 %2104, %v2027
      %v2106 = vpop.permute.xlu0 %2105
      %v2108 = vadd.f32 %v1996, %v2031
      %v2109 = vadd.f32 %v1997, %v2036
      %v2110 = vadd.f32 %v1998, %v2041
      %v2111 = vadd.f32 %v1999, %v2046
      %v2112 = vadd.f32 %v2000, %v2051
      %v2113 = vadd.f32 %v2001, %v2056
      %v2114 = vadd.f32 %v2002, %v2061
      %v2115 = vadd.f32 %v2003, %v2066
      %v2116 = vadd.f32 %v2004, %v2071
      %v2117 = vadd.f32 %v2005, %v2076
      %v2118 = vadd.f32 %v2006, %v2081
      %v2119 = vadd.f32 %v2007, %v2086
      %v2120 = vadd.f32 %v2008, %v2091
      %v2121 = vadd.f32 %v2009, %v2096
      %v2122 = vadd.f32 %v2010, %v2101
      %v2123 = vadd.f32 %v2011, %v2106
      %v2124 = vmul.f32 %v2108, %v1233
      %v2125 = vmul.f32 %v2109, %v1233
      %v2126 = vmul.f32 %v2110, %v1233
      %v2127 = vmul.f32 %v2111, %v1233
      %v2128 = vmul.f32 %v2112, %v1233
      %v2129 = vmul.f32 %v2113, %v1233
      %v2130 = vmul.f32 %v2114, %v1233
      %v2131 = vmul.f32 %v2115, %v1233
      %v2132 = vmul.f32 %v2116, %v1233
      %v2133 = vmul.f32 %v2117, %v1233
      %v2134 = vmul.f32 %v2118, %v1233
      %v2135 = vmul.f32 %v2119, %v1233
      %v2136 = vmul.f32 %v2120, %v1233
      %v2137 = vmul.f32 %v2121, %v1233
      %v2138 = vmul.f32 %v2122, %v1233
      %v2139 = vmul.f32 %v2123, %v1233
      %v2140 = vpack.c.bf16 %v2125, %v2124
      %v2141 = vpack.c.bf16 %v2127, %v2126
      %v2142 = vpack.c.bf16 %v2129, %v2128
      %v2143 = vpack.c.bf16 %v2131, %v2130
      %v2144 = vpack.c.bf16 %v2133, %v2132
      %v2145 = vpack.c.bf16 %v2135, %v2134
      %v2146 = vpack.c.bf16 %v2137, %v2136
      %v2147 = vpack.c.bf16 %v2139, %v2138
      %v2148 = vld [vmem:[%s6] sm:$0xf]
      %v2149 = vld [vmem:[%s6 + $0x4] sm:$0xf]
      %v2150 = vld [vmem:[%s6 + $0x8] sm:$0xf]
      %v2151 = vld [vmem:[%s6 + $0xc] sm:$0xf]
      %v2152 = vld [vmem:[%s6 + $0x10] sm:$0xf]
      %v2153 = vld [vmem:[%s6 + $0x14] sm:$0xf]
      %v2154 = vld [vmem:[%s6 + $0x18] sm:$0xf]
      %v2155 = vld [vmem:[%s6 + $0x1c] sm:$0xf]
      %v2164 = vunpack.c.l.b16 %v2148
      %v2165 = vunpack.c.l.b16 %v2149
      %v2166 = vunpack.c.l.b16 %v2150
      %v2167 = vunpack.c.l.b16 %v2151
      %v2168 = vunpack.c.l.b16 %v2152
      %v2169 = vunpack.c.l.b16 %v2153
      %v2170 = vunpack.c.l.b16 %v2154
      %v2171 = vunpack.c.l.b16 %v2155
      %v2172 = vpack.c.b16 %v2165, %v2164
      %v2173 = vpack.c.b16 %v2167, %v2166
      %v2174 = vpack.c.b16 %v2169, %v2168
      %v2175 = vpack.c.b16 %v2171, %v2170
      %2180 = vmatprep.subr.bf16.mxu0 0
      %2181 = vmatpush1.bf16.msra.mxu0 %v2140
      %2182 = vmatprep.subr.bf16.mxu0 0
      %2183 = vmatpush1.bf16.msra.mxu0 %v2141
      %2184 = vmatprep.subr.bf16.mxu0 0
      %2185 = vmatpush1.bf16.msra.mxu0 %v2142
      %2186 = vmatprep.subr.bf16.mxu0 0
      %2187 = vmatpush1.bf16.msra.mxu0 %v2143
      %2188 = vmatprep.subr.bf16.mxu0 0
      %2189 = vmatpush1.bf16.msra.mxu0 %v2144
      %2190 = vmatprep.subr.bf16.mxu0 0
      %2191 = vmatpush1.bf16.msra.mxu0 %v2145
      %2192 = vmatprep.subr.bf16.mxu0 0
      %2193 = vmatpush1.bf16.msra.mxu0 %v2146
      %2194 = vmatprep.subr.bf16.mxu0 0
      %2195 = vmatpush1.bf16.msra.mxu0 %v2147
      %2196 = vmatprep.subr.bf16.mxu0 0
      %2197 = vmatpush1.bf16.msra.mxu0 0
      %2198 = vmatprep.subr.bf16.mxu0 0
      %2199 = vmatpush1.bf16.msra.mxu0 0
      %2200 = vmatprep.subr.bf16.mxu0 0
      %2201 = vmatpush1.bf16.msra.mxu0 0
      %2202 = vmatprep.subr.bf16.mxu0 0
      %2203 = vmatpush1.bf16.msra.mxu0 0
      %2204 = vmatprep.subr.bf16.mxu0 0
      %2205 = vmatpush1.bf16.msra.mxu0 0
      %2206 = vmatprep.subr.bf16.mxu0 0
      %2207 = vmatpush1.bf16.msra.mxu0 0
      %2208 = vmatprep.subr.bf16.mxu0 0
      %2209 = vmatpush1.bf16.msra.mxu0 0
      %2210 = vmatprep.subr.bf16.mxu0 0
      %2211 = vmatpush1.bf16.msra.mxu0 0
      %2212 = vmatprep.mubr.bf16.mxu0 0
      %2213 = vmatmul.mubr.bf16.gmra.mrb[0].mxu0 %v2172
      %v2214 = vpop.f32.mrb[0].mxu0
      %v2215 = vadd.f32 0.0, %v2214
      %v2216 = vpop.f32.mrb[0].mxu0
      %v2217 = vpop.f32.mrb[0].mxu0
      %v2218 = vadd.f32 0.0, %v2217
      %v2219 = vpop.f32.mrb[0].mxu0
      %2220 = vmatprep.mubr.bf16.mxu0 0
      %2221 = vmatmul.mubr.bf16.gmra.mrb[0].mxu0 %v2173
      %v2222 = vpop.f32.mrb[0].mxu0
      %v2223 = vadd.f32 0.0, %v2222
      %v2224 = vpop.f32.mrb[0].mxu0
      %v2225 = vpop.f32.mrb[0].mxu0
      %v2226 = vadd.f32 0.0, %v2225
      %v2227 = vpop.f32.mrb[0].mxu0
      %2228 = vmatprep.mubr.bf16.mxu0 0
      %2229 = vmatmul.mubr.bf16.gmra.mrb[0].mxu0 %v2174
      %v2230 = vpop.f32.mrb[0].mxu0
      %v2231 = vadd.f32 0.0, %v2230
      %v2232 = vpop.f32.mrb[0].mxu0
      %v2233 = vpop.f32.mrb[0].mxu0
      %v2234 = vadd.f32 0.0, %v2233
      %v2235 = vpop.f32.mrb[0].mxu0
      %2236 = vmatprep.mubr.bf16.mxu0 0
      %2237 = vmatmul.mubr.bf16.gmra.mrb[0].mxu0 %v2175
      %v2238 = vpop.f32.mrb[0].mxu0
      %v2239 = vadd.f32 0.0, %v2238
      %v2240 = vpop.f32.mrb[0].mxu0
      %v2241 = vpop.f32.mrb[0].mxu0
      %v2242 = vadd.f32 0.0, %v2241
      %v2243 = vpop.f32.mrb[0].mxu0
      %2244 = vdwg.mxu0
      %v2245 = vpack.c.bf16 %v2218, %v2215
      %v2246 = vpack.c.bf16 %v2226, %v2223
      %v2247 = vpack.c.bf16 %v2234, %v2231
      %v2248 = vpack.c.bf16 %v2242, %v2239
      %v2249 = vld [vmem:[%s7] sm:$0xf]
      %v2250 = vld [vmem:[%s7 + $0x4] sm:$0xf]
      %v2251 = vld [vmem:[%s7 + $0x8] sm:$0xf]
      %v2252 = vld [vmem:[%s7 + $0xc] sm:$0xf]
      %v2253 = vld [vmem:[%s7 + $0x10] sm:$0xf]
      %v2254 = vld [vmem:[%s7 + $0x14] sm:$0xf]
      %v2255 = vld [vmem:[%s7 + $0x18] sm:$0xf]
      %v2256 = vld [vmem:[%s7 + $0x1c] sm:$0xf]
      %v2257 = vld [vmem:[%s7 + $0x20] sm:$0xf]
      %v2258 = vld [vmem:[%s7 + $0x24] sm:$0xf]
      %v2259 = vld [vmem:[%s7 + $0x28] sm:$0xf]
      %v2260 = vld [vmem:[%s7 + $0x2c] sm:$0xf]
      %v2261 = vld [vmem:[%s7 + $0x30] sm:$0xf]
      %v2262 = vld [vmem:[%s7 + $0x34] sm:$0xf]
      %v2263 = vld [vmem:[%s7 + $0x38] sm:$0xf]
      %v2264 = vld [vmem:[%s7 + $0x3c] sm:$0xf]
      %s2265 = scalar_lea.vmem %s6, 32
      %v2266 = vld [vmem:[%s2265] sm:$0xf]
      %v2267 = vld [vmem:[%s2265 + $0x4] sm:$0xf]
      %v2268 = vld [vmem:[%s2265 + $0x8] sm:$0xf]
      %v2269 = vld [vmem:[%s2265 + $0xc] sm:$0xf]
      %v2270 = vld [vmem:[%s2265 + $0x10] sm:$0xf]
      %v2271 = vld [vmem:[%s2265 + $0x14] sm:$0xf]
      %v2272 = vld [vmem:[%s2265 + $0x18] sm:$0xf]
      %v2273 = vld [vmem:[%s2265 + $0x1c] sm:$0xf]
      %v2282 = vunpack.c.l.b16 %v2266
      %v2283 = vunpack.c.l.b16 %v2267
      %v2284 = vunpack.c.l.b16 %v2268
      %v2285 = vunpack.c.l.b16 %v2269
      %v2286 = vunpack.c.l.b16 %v2270
      %v2287 = vunpack.c.l.b16 %v2271
      %v2288 = vunpack.c.l.b16 %v2272
      %v2289 = vunpack.c.l.b16 %v2273
      %v2290 = vpack.c.b16 %v2283, %v2282
      %v2291 = vpack.c.b16 %v2285, %v2284
      %v2292 = vpack.c.b16 %v2287, %v2286
      %v2293 = vpack.c.b16 %v2289, %v2288
      %2298 = vmatprep.subr.bf16.mxu0 0
      %2299 = vmatpush1.bf16.msra.mxu0 %v2140
      %2300 = vmatprep.subr.bf16.mxu0 0
      %2301 = vmatpush1.bf16.msra.mxu0 %v2141
      %2302 = vmatprep.subr.bf16.mxu0 0
      %2303 = vmatpush1.bf16.msra.mxu0 %v2142
      %2304 = vmatprep.subr.bf16.mxu0 0
      %2305 = vmatpush1.bf16.msra.mxu0 %v2143
      %2306 = vmatprep.subr.bf16.mxu0 0
      %2307 = vmatpush1.bf16.msra.mxu0 %v2144
      %2308 = vmatprep.subr.bf16.mxu0 0
      %2309 = vmatpush1.bf16.msra.mxu0 %v2145
      %2310 = vmatprep.subr.bf16.mxu0 0
      %2311 = vmatpush1.bf16.msra.mxu0 %v2146
      %2312 = vmatprep.subr.bf16.mxu0 0
      %2313 = vmatpush1.bf16.msra.mxu0 %v2147
      %2314 = vmatprep.subr.bf16.mxu0 0
      %2315 = vmatpush1.bf16.msra.mxu0 0
      %2316 = vmatprep.subr.bf16.mxu0 0
      %2317 = vmatpush1.bf16.msra.mxu0 0
      %2318 = vmatprep.subr.bf16.mxu0 0
      %2319 = vmatpush1.bf16.msra.mxu0 0
      %2320 = vmatprep.subr.bf16.mxu0 0
      %2321 = vmatpush1.bf16.msra.mxu0 0
      %2322 = vmatprep.subr.bf16.mxu0 0
      %2323 = vmatpush1.bf16.msra.mxu0 0
      %2324 = vmatprep.subr.bf16.mxu0 0
      %2325 = vmatpush1.bf16.msra.mxu0 0
      %2326 = vmatprep.subr.bf16.mxu0 0
      %2327 = vmatpush1.bf16.msra.mxu0 0
      %2328 = vmatprep.subr.bf16.mxu0 0
      %2329 = vmatpush1.bf16.msra.mxu0 0
      %2330 = vmatprep.mubr.bf16.mxu0 0
      %2331 = vmatmul.mubr.bf16.gmra.mrb[0].mxu0 %v2290
      %v2332 = vpop.f32.mrb[0].mxu0
      %v2333 = vadd.f32 0.0, %v2332
      %v2334 = vpop.f32.mrb[0].mxu0
      %v2335 = vpop.f32.mrb[0].mxu0
      %v2336 = vadd.f32 0.0, %v2335
      %v2337 = vpop.f32.mrb[0].mxu0
      %2338 = vmatprep.mubr.bf16.mxu0 0
      %2339 = vmatmul.mubr.bf16.gmra.mrb[0].mxu0 %v2291
      %v2340 = vpop.f32.mrb[0].mxu0
      %v2341 = vadd.f32 0.0, %v2340
      %v2342 = vpop.f32.mrb[0].mxu0
      %v2343 = vpop.f32.mrb[0].mxu0
      %v2344 = vadd.f32 0.0, %v2343
      %v2345 = vpop.f32.mrb[0].mxu0
      %2346 = vmatprep.mubr.bf16.mxu0 0
      %2347 = vmatmul.mubr.bf16.gmra.mrb[0].mxu0 %v2292
      %v2348 = vpop.f32.mrb[0].mxu0
      %v2349 = vadd.f32 0.0, %v2348
      %v2350 = vpop.f32.mrb[0].mxu0
      %v2351 = vpop.f32.mrb[0].mxu0
      %v2352 = vadd.f32 0.0, %v2351
      %v2353 = vpop.f32.mrb[0].mxu0
      %2354 = vmatprep.mubr.bf16.mxu0 0
      %2355 = vmatmul.mubr.bf16.gmra.mrb[0].mxu0 %v2293
      %v2356 = vpop.f32.mrb[0].mxu0
      %v2357 = vadd.f32 0.0, %v2356
      %v2358 = vpop.f32.mrb[0].mxu0
      %v2359 = vpop.f32.mrb[0].mxu0
      %v2360 = vadd.f32 0.0, %v2359
      %v2361 = vpop.f32.mrb[0].mxu0
      %2362 = vdwg.mxu0
      %v2363 = vpack.c.bf16 %v2336, %v2333
      %v2364 = vpack.c.bf16 %v2344, %v2341
      %v2365 = vpack.c.bf16 %v2352, %v2349
      %v2366 = vpack.c.bf16 %v2360, %v2357
      %s2367 = scalar_lea.vmem %s7, 64
      %v2368 = vld [vmem:[%s2367] sm:$0xf]
      %v2369 = vld [vmem:[%s2367 + $0x4] sm:$0xf]
      %v2370 = vld [vmem:[%s2367 + $0x8] sm:$0xf]
      %v2371 = vld [vmem:[%s2367 + $0xc] sm:$0xf]
      %v2372 = vld [vmem:[%s2367 + $0x10] sm:$0xf]
      %v2373 = vld [vmem:[%s2367 + $0x14] sm:$0xf]
      %v2374 = vld [vmem:[%s2367 + $0x18] sm:$0xf]
      %v2375 = vld [vmem:[%s2367 + $0x1c] sm:$0xf]
      %v2376 = vld [vmem:[%s2367 + $0x20] sm:$0xf]
      %v2377 = vld [vmem:[%s2367 + $0x24] sm:$0xf]
      %v2378 = vld [vmem:[%s2367 + $0x28] sm:$0xf]
      %v2379 = vld [vmem:[%s2367 + $0x2c] sm:$0xf]
      %v2380 = vld [vmem:[%s2367 + $0x30] sm:$0xf]
      %v2381 = vld [vmem:[%s2367 + $0x34] sm:$0xf]
      %v2382 = vld [vmem:[%s2367 + $0x38] sm:$0xf]
      %v2383 = vld [vmem:[%s2367 + $0x3c] sm:$0xf]
      %v2400 = vunpack.c.l.b16 %v2368
      %v2401 = vunpack.c.l.b16 %v2369
      %v2402 = vunpack.c.l.b16 %v2370
      %v2403 = vunpack.c.l.b16 %v2371
      %v2404 = vunpack.c.l.b16 %v2372
      %v2405 = vunpack.c.l.b16 %v2373
      %v2406 = vunpack.c.l.b16 %v2374
      %v2407 = vunpack.c.l.b16 %v2375
      %v2408 = vunpack.c.l.b16 %v2376
      %v2409 = vunpack.c.l.b16 %v2377
      %v2410 = vunpack.c.l.b16 %v2378
      %v2411 = vunpack.c.l.b16 %v2379
      %v2412 = vunpack.c.l.b16 %v2380
      %v2413 = vunpack.c.l.b16 %v2381
      %v2414 = vunpack.c.l.b16 %v2382
      %v2415 = vunpack.c.l.b16 %v2383
      %v2416 = vpack.c.b16 %v2401, %v2400
      %v2417 = vpack.c.b16 %v2403, %v2402
      %v2418 = vpack.c.b16 %v2405, %v2404
      %v2419 = vpack.c.b16 %v2407, %v2406
      %v2420 = vpack.c.b16 %v2409, %v2408
      %v2421 = vpack.c.b16 %v2411, %v2410
      %v2422 = vpack.c.b16 %v2413, %v2412
      %v2423 = vpack.c.b16 %v2415, %v2414
      %2432 = vmatprep.subr.bf16.mxu0 0
      %2433 = vmatpush1.bf16.msra.mxu0 %v2416
      %2434 = vmatprep.subr.bf16.mxu0 0
      %2435 = vmatpush1.bf16.msra.mxu0 %v2417
      %2436 = vmatprep.subr.bf16.mxu0 0
      %2437 = vmatpush1.bf16.msra.mxu0 %v2418
      %2438 = vmatprep.subr.bf16.mxu0 0
      %2439 = vmatpush1.bf16.msra.mxu0 %v2419
      %2440 = vmatprep.subr.bf16.mxu0 0
      %2441 = vmatpush1.bf16.msra.mxu0 %v2420
      %2442 = vmatprep.subr.bf16.mxu0 0
      %2443 = vmatpush1.bf16.msra.mxu0 %v2421
      %2444 = vmatprep.subr.bf16.mxu0 0
      %2445 = vmatpush1.bf16.msra.mxu0 %v2422
      %2446 = vmatprep.subr.bf16.mxu0 0
      %2447 = vmatpush1.bf16.msra.mxu0 %v2423
      %2448 = vmatprep.subr.bf16.mxu0 0
      %2449 = vmatpush1.bf16.msra.mxu0 0
      %2450 = vmatprep.subr.bf16.mxu0 0
      %2451 = vmatpush1.bf16.msra.mxu0 0
      %2452 = vmatprep.subr.bf16.mxu0 0
      %2453 = vmatpush1.bf16.msra.mxu0 0
      %2454 = vmatprep.subr.bf16.mxu0 0
      %2455 = vmatpush1.bf16.msra.mxu0 0
      %2456 = vmatprep.subr.bf16.mxu0 0
      %2457 = vmatpush1.bf16.msra.mxu0 0
      %2458 = vmatprep.subr.bf16.mxu0 0
      %2459 = vmatpush1.bf16.msra.mxu0 0
      %2460 = vmatprep.subr.bf16.mxu0 0
      %2461 = vmatpush1.bf16.msra.mxu0 0
      %2462 = vmatprep.subr.bf16.mxu0 0
      %2463 = vmatpush1.bf16.msra.mxu0 0
      %2464 = vmatprep.mubr.bf16.mxu0 0
      %2465 = vmatmul.mubr.bf16.gmra.mrb[0].mxu0 %v2363
      %v2466 = vpop.f32.mrb[0].mxu0
      %v2467 = vadd.f32 0.0, %v2466
      %v2468 = vpop.f32.mrb[0].mxu0
      %v2469 = vpop.f32.mrb[0].mxu0
      %v2470 = vadd.f32 0.0, %v2469
      %v2471 = vpop.f32.mrb[0].mxu0
      %2472 = vmatprep.mubr.bf16.mxu0 0
      %2473 = vmatmul.mubr.bf16.gmra.mrb[0].mxu0 %v2364
      %v2474 = vpop.f32.mrb[0].mxu0
      %v2475 = vadd.f32 0.0, %v2474
      %v2476 = vpop.f32.mrb[0].mxu0
      %v2477 = vpop.f32.mrb[0].mxu0
      %v2478 = vadd.f32 0.0, %v2477
      %v2479 = vpop.f32.mrb[0].mxu0
      %2480 = vmatprep.mubr.bf16.mxu0 0
      %2481 = vmatmul.mubr.bf16.gmra.mrb[0].mxu0 %v2365
      %v2482 = vpop.f32.mrb[0].mxu0
      %v2483 = vadd.f32 0.0, %v2482
      %v2484 = vpop.f32.mrb[0].mxu0
      %v2485 = vpop.f32.mrb[0].mxu0
      %v2486 = vadd.f32 0.0, %v2485
      %v2487 = vpop.f32.mrb[0].mxu0
      %2488 = vmatprep.mubr.bf16.mxu0 0
      %2489 = vmatmul.mubr.bf16.gmra.mrb[0].mxu0 %v2366
      %v2490 = vpop.f32.mrb[0].mxu0
      %v2491 = vadd.f32 0.0, %v2490
      %v2492 = vpop.f32.mrb[0].mxu0
      %v2493 = vpop.f32.mrb[0].mxu0
      %v2494 = vadd.f32 0.0, %v2493
      %v2495 = vpop.f32.mrb[0].mxu0
      %2496 = vdwg.mxu0
      %v2513 = vunpack.c.l.b16 %v2249
      %v2514 = vunpack.c.l.b16 %v2250
      %v2515 = vunpack.c.l.b16 %v2251
      %v2516 = vunpack.c.l.b16 %v2252
      %v2517 = vunpack.c.l.b16 %v2253
      %v2518 = vunpack.c.l.b16 %v2254
      %v2519 = vunpack.c.l.b16 %v2255
      %v2520 = vunpack.c.l.b16 %v2256
      %v2521 = vunpack.c.l.b16 %v2257
      %v2522 = vunpack.c.l.b16 %v2258
      %v2523 = vunpack.c.l.b16 %v2259
      %v2524 = vunpack.c.l.b16 %v2260
      %v2525 = vunpack.c.l.b16 %v2261
      %v2526 = vunpack.c.l.b16 %v2262
      %v2527 = vunpack.c.l.b16 %v2263
      %v2528 = vunpack.c.l.b16 %v2264
      %v2529 = vpack.c.b16 %v2514, %v2513
      %v2530 = vpack.c.b16 %v2516, %v2515
      %v2531 = vpack.c.b16 %v2518, %v2517
      %v2532 = vpack.c.b16 %v2520, %v2519
      %v2533 = vpack.c.b16 %v2522, %v2521
      %v2534 = vpack.c.b16 %v2524, %v2523
      %v2535 = vpack.c.b16 %v2526, %v2525
      %v2536 = vpack.c.b16 %v2528, %v2527
      %2545 = vmatprep.subr.bf16.mxu0 0
      %2546 = vmatpush1.bf16.msra.mxu0 %v2529
      %2547 = vmatprep.subr.bf16.mxu0 0
      %2548 = vmatpush1.bf16.msra.mxu0 %v2530
      %2549 = vmatprep.subr.bf16.mxu0 0
      %2550 = vmatpush1.bf16.msra.mxu0 %v2531
      %2551 = vmatprep.subr.bf16.mxu0 0
      %2552 = vmatpush1.bf16.msra.mxu0 %v2532
      %2553 = vmatprep.subr.bf16.mxu0 0
      %2554 = vmatpush1.bf16.msra.mxu0 %v2533
      %2555 = vmatprep.subr.bf16.mxu0 0
      %2556 = vmatpush1.bf16.msra.mxu0 %v2534
      %2557 = vmatprep.subr.bf16.mxu0 0
      %2558 = vmatpush1.bf16.msra.mxu0 %v2535
      %2559 = vmatprep.subr.bf16.mxu0 0
      %2560 = vmatpush1.bf16.msra.mxu0 %v2536
      %2561 = vmatprep.subr.bf16.mxu0 0
      %2562 = vmatpush1.bf16.msra.mxu0 0
      %2563 = vmatprep.subr.bf16.mxu0 0
      %2564 = vmatpush1.bf16.msra.mxu0 0
      %2565 = vmatprep.subr.bf16.mxu0 0
      %2566 = vmatpush1.bf16.msra.mxu0 0
      %2567 = vmatprep.subr.bf16.mxu0 0
      %2568 = vmatpush1.bf16.msra.mxu0 0
      %2569 = vmatprep.subr.bf16.mxu0 0
      %2570 = vmatpush1.bf16.msra.mxu0 0
      %2571 = vmatprep.subr.bf16.mxu0 0
      %2572 = vmatpush1.bf16.msra.mxu0 0
      %2573 = vmatprep.subr.bf16.mxu0 0
      %2574 = vmatpush1.bf16.msra.mxu0 0
      %2575 = vmatprep.subr.bf16.mxu0 0
      %2576 = vmatpush1.bf16.msra.mxu0 0
      %2577 = vmatprep.mubr.bf16.mxu0 0
      %2578 = vmatmul.mubr.bf16.gmra.mrb[0].mxu0 %v2245
      %v2579 = vpop.f32.mrb[0].mxu0
      %v2580 = vadd.f32 %v2467, %v2579
      %v2581 = vpop.f32.mrb[0].mxu0
      %v2582 = vpop.f32.mrb[0].mxu0
      %v2583 = vadd.f32 %v2470, %v2582
      %v2584 = vpop.f32.mrb[0].mxu0
      %2585 = vmatprep.mubr.bf16.mxu0 0
      %2586 = vmatmul.mubr.bf16.gmra.mrb[0].mxu0 %v2246
      %v2587 = vpop.f32.mrb[0].mxu0
      %v2588 = vadd.f32 %v2475, %v2587
      %v2589 = vpop.f32.mrb[0].mxu0
      %v2590 = vpop.f32.mrb[0].mxu0
      %v2591 = vadd.f32 %v2478, %v2590
      %v2592 = vpop.f32.mrb[0].mxu0
      %2593 = vmatprep.mubr.bf16.mxu0 0
      %2594 = vmatmul.mubr.bf16.gmra.mrb[0].mxu0 %v2247
      %v2595 = vpop.f32.mrb[0].mxu0
      %v2596 = vadd.f32 %v2483, %v2595
      %v2597 = vpop.f32.mrb[0].mxu0
      %v2598 = vpop.f32.mrb[0].mxu0
      %v2599 = vadd.f32 %v2486, %v2598
      %v2600 = vpop.f32.mrb[0].mxu0
      %2601 = vmatprep.mubr.bf16.mxu0 0
      %2602 = vmatmul.mubr.bf16.gmra.mrb[0].mxu0 %v2248
      %v2603 = vpop.f32.mrb[0].mxu0
      %v2604 = vadd.f32 %v2491, %v2603
      %v2605 = vpop.f32.mrb[0].mxu0
      %v2606 = vpop.f32.mrb[0].mxu0
      %v2607 = vadd.f32 %v2494, %v2606
      %v2608 = vpop.f32.mrb[0].mxu0
      %2609 = vdwg.mxu0
      %v2610 = vpack.c.bf16 %v2583, %v2580
      %v2611 = vpack.c.bf16 %v2591, %v2588
      %v2612 = vpack.c.bf16 %v2599, %v2596
      %v2613 = vpack.c.bf16 %v2607, %v2604
      %v2614 = vld [vmem:[%s8] sm:$0xf]
      %v2615 = vld [vmem:[%s8 + $0x4] sm:$0xf]
      %v2616 = vld [vmem:[%s8 + $0x8] sm:$0xf]
      %v2617 = vld [vmem:[%s8 + $0xc] sm:$0xf]
      %v2618 = vld [vmem:[%s8 + $0x10] sm:$0xf]
      %v2619 = vld [vmem:[%s8 + $0x14] sm:$0xf]
      %v2620 = vld [vmem:[%s8 + $0x18] sm:$0xf]
      %v2621 = vld [vmem:[%s8 + $0x1c] sm:$0xf]
      %v2630 = vunpack.c.l.b16 %v2614
      %v2631 = vunpack.c.l.b16 %v2615
      %v2632 = vunpack.c.l.b16 %v2616
      %v2633 = vunpack.c.l.b16 %v2617
      %v2634 = vunpack.c.l.b16 %v2618
      %v2635 = vunpack.c.l.b16 %v2619
      %v2636 = vunpack.c.l.b16 %v2620
      %v2637 = vunpack.c.l.b16 %v2621
      %v2638 = vpack.c.b16 %v2631, %v2630
      %v2639 = vpack.c.b16 %v2633, %v2632
      %v2640 = vpack.c.b16 %v2635, %v2634
      %v2641 = vpack.c.b16 %v2637, %v2636
      %vm2642 = vcmask 523264
      %v2644 = vsel %vm2642, %v2638, 0
      %v2647 = vsel %vm2642, %v2639, 0
      %v2650 = vsel %vm2642, %v2640, 0
      %v2653 = vsel %vm2642, %v2641, 0
      %2655 = vmatprep.subr.bf16.mxu0 0
      %2656 = vmatpush1.bf16.msra.mxu0 %v2610
      %2657 = vmatprep.subr.bf16.mxu0 0
      %2658 = vmatpush1.bf16.msra.mxu0 %v2611
      %2659 = vmatprep.subr.bf16.mxu0 0
      %2660 = vmatpush1.bf16.msra.mxu0 %v2612
      %2661 = vmatprep.subr.bf16.mxu0 0
      %2662 = vmatpush1.bf16.msra.mxu0 %v2613
      %2663 = vmatprep.subr.bf16.mxu0 0
      %2664 = vmatpush1.bf16.msra.mxu0 0
      %2665 = vmatprep.subr.bf16.mxu0 0
      %2666 = vmatpush1.bf16.msra.mxu0 0
      %2667 = vmatprep.subr.bf16.mxu0 0
      %2668 = vmatpush1.bf16.msra.mxu0 0
      %2669 = vmatprep.subr.bf16.mxu0 0
      %2670 = vmatpush1.bf16.msra.mxu0 0
      %2671 = vmatprep.subr.bf16.mxu0 0
      %2672 = vmatpush1.bf16.msra.mxu0 0
      %2673 = vmatprep.subr.bf16.mxu0 0
      %2674 = vmatpush1.bf16.msra.mxu0 0
      %2675 = vmatprep.subr.bf16.mxu0 0
      %2676 = vmatpush1.bf16.msra.mxu0 0
      %2677 = vmatprep.subr.bf16.mxu0 0
      %2678 = vmatpush1.bf16.msra.mxu0 0
      %2679 = vmatprep.subr.bf16.mxu0 0
      %2680 = vmatpush1.bf16.msra.mxu0 0
      %2681 = vmatprep.subr.bf16.mxu0 0
      %2682 = vmatpush1.bf16.msra.mxu0 0
      %2683 = vmatprep.subr.bf16.mxu0 0
      %2684 = vmatpush1.bf16.msra.mxu0 0
      %2685 = vmatprep.subr.bf16.mxu0 0
      %2686 = vmatpush1.bf16.msra.mxu0 0
      %2687 = vmatprep.mubr.bf16.mxu0 0
      %2688 = vmatmul.mubr.bf16.gmra.mrb[0].mxu0 %v2644
      %v2689 = vpop.f32.mrb[0].mxu0
      %v2690 = vadd.f32 0.0, %v2689
      %v2691 = vpop.f32.mrb[0].mxu0
      %v2692 = vpop.f32.mrb[0].mxu0
      %v2693 = vadd.f32 0.0, %v2692
      %v2694 = vpop.f32.mrb[0].mxu0
      %2695 = vmatprep.mubr.bf16.mxu0 0
      %2696 = vmatmul.mubr.bf16.gmra.mrb[0].mxu0 %v2647
      %v2697 = vpop.f32.mrb[0].mxu0
      %v2698 = vadd.f32 0.0, %v2697
      %v2699 = vpop.f32.mrb[0].mxu0
      %v2700 = vpop.f32.mrb[0].mxu0
      %v2701 = vadd.f32 0.0, %v2700
      %v2702 = vpop.f32.mrb[0].mxu0
      %2703 = vmatprep.mubr.bf16.mxu0 0
      %2704 = vmatmul.mubr.bf16.gmra.mrb[0].mxu0 %v2650
      %v2705 = vpop.f32.mrb[0].mxu0
      %v2706 = vadd.f32 0.0, %v2705
      %v2707 = vpop.f32.mrb[0].mxu0
      %v2708 = vpop.f32.mrb[0].mxu0
      %v2709 = vadd.f32 0.0, %v2708
      %v2710 = vpop.f32.mrb[0].mxu0
      %2711 = vmatprep.mubr.bf16.mxu0 0
      %2712 = vmatmul.mubr.bf16.gmra.mrb[0].mxu0 %v2653
      %v2713 = vpop.f32.mrb[0].mxu0
      %v2714 = vadd.f32 0.0, %v2713
      %v2715 = vpop.f32.mrb[0].mxu0
      %v2716 = vpop.f32.mrb[0].mxu0
      %v2717 = vadd.f32 0.0, %v2716
      %v2718 = vpop.f32.mrb[0].mxu0
      %2719 = vdwg.mxu0
      %v2720 = vpack.c.bf16 %v2693, %v2690
      %v2721 = vpack.c.bf16 %v2701, %v2698
      %v2722 = vpack.c.bf16 %v2709, %v2706
      %v2723 = vpack.c.bf16 %v2717, %v2714
      %s2724 = scalar_lea.vmem %s8, 32
      %v2725 = vld [vmem:[%s2724] sm:$0xf]
      %v2726 = vld [vmem:[%s2724 + $0x4] sm:$0xf]
      %v2727 = vld [vmem:[%s2724 + $0x8] sm:$0xf]
      %v2728 = vld [vmem:[%s2724 + $0xc] sm:$0xf]
      %v2729 = vld [vmem:[%s2724 + $0x10] sm:$0xf]
      %v2730 = vld [vmem:[%s2724 + $0x14] sm:$0xf]
      %v2731 = vld [vmem:[%s2724 + $0x18] sm:$0xf]
      %v2732 = vld [vmem:[%s2724 + $0x1c] sm:$0xf]
      %v2741 = vunpack.c.l.b16 %v2725
      %v2742 = vunpack.c.l.b16 %v2726
      %v2743 = vunpack.c.l.b16 %v2727
      %v2744 = vunpack.c.l.b16 %v2728
      %v2745 = vunpack.c.l.b16 %v2729
      %v2746 = vunpack.c.l.b16 %v2730
      %v2747 = vunpack.c.l.b16 %v2731
      %v2748 = vunpack.c.l.b16 %v2732
      %v2749 = vpack.c.b16 %v2742, %v2741
      %v2750 = vpack.c.b16 %v2744, %v2743
      %v2751 = vpack.c.b16 %v2746, %v2745
      %v2752 = vpack.c.b16 %v2748, %v2747
      %v2754 = vsel %vm2642, %v2749, 0
      %v2757 = vsel %vm2642, %v2750, 0
      %v2760 = vsel %vm2642, %v2751, 0
      %v2763 = vsel %vm2642, %v2752, 0
      %2765 = vmatprep.subr.bf16.mxu0 0
      %2766 = vmatpush1.bf16.msra.mxu0 %v2610
      %2767 = vmatprep.subr.bf16.mxu0 0
      %2768 = vmatpush1.bf16.msra.mxu0 %v2611
      %2769 = vmatprep.subr.bf16.mxu0 0
      %2770 = vmatpush1.bf16.msra.mxu0 %v2612
      %2771 = vmatprep.subr.bf16.mxu0 0
      %2772 = vmatpush1.bf16.msra.mxu0 %v2613
      %2773 = vmatprep.subr.bf16.mxu0 0
      %2774 = vmatpush1.bf16.msra.mxu0 0
      %2775 = vmatprep.subr.bf16.mxu0 0
      %2776 = vmatpush1.bf16.msra.mxu0 0
      %2777 = vmatprep.subr.bf16.mxu0 0
      %2778 = vmatpush1.bf16.msra.mxu0 0
      %2779 = vmatprep.subr.bf16.mxu0 0
      %2780 = vmatpush1.bf16.msra.mxu0 0
      %2781 = vmatprep.subr.bf16.mxu0 0
      %2782 = vmatpush1.bf16.msra.mxu0 0
      %2783 = vmatprep.subr.bf16.mxu0 0
      %2784 = vmatpush1.bf16.msra.mxu0 0
      %2785 = vmatprep.subr.bf16.mxu0 0
      %2786 = vmatpush1.bf16.msra.mxu0 0
      %2787 = vmatprep.subr.bf16.mxu0 0
      %2788 = vmatpush1.bf16.msra.mxu0 0
      %2789 = vmatprep.subr.bf16.mxu0 0
      %2790 = vmatpush1.bf16.msra.mxu0 0
      %2791 = vmatprep.subr.bf16.mxu0 0
      %2792 = vmatpush1.bf16.msra.mxu0 0
      %2793 = vmatprep.subr.bf16.mxu0 0
      %2794 = vmatpush1.bf16.msra.mxu0 0
      %2795 = vmatprep.subr.bf16.mxu0 0
      %2796 = vmatpush1.bf16.msra.mxu0 0
      %2797 = vmatprep.mubr.bf16.mxu0 0
      %2798 = vmatmul.mubr.bf16.gmra.mrb[0].mxu0 %v2754
      %v2799 = vpop.f32.mrb[0].mxu0
      %v2800 = vadd.f32 0.0, %v2799
      %v2801 = vpop.f32.mrb[0].mxu0
      %v2802 = vpop.f32.mrb[0].mxu0
      %v2803 = vadd.f32 0.0, %v2802
      %v2804 = vpop.f32.mrb[0].mxu0
      %2805 = vmatprep.mubr.bf16.mxu0 0
      %2806 = vmatmul.mubr.bf16.gmra.mrb[0].mxu0 %v2757
      %v2807 = vpop.f32.mrb[0].mxu0
      %v2808 = vadd.f32 0.0, %v2807
      %v2809 = vpop.f32.mrb[0].mxu0
      %v2810 = vpop.f32.mrb[0].mxu0
      %v2811 = vadd.f32 0.0, %v2810
      %v2812 = vpop.f32.mrb[0].mxu0
      %2813 = vmatprep.mubr.bf16.mxu0 0
      %2814 = vmatmul.mubr.bf16.gmra.mrb[0].mxu0 %v2760
      %v2815 = vpop.f32.mrb[0].mxu0
      %v2816 = vadd.f32 0.0, %v2815
      %v2817 = vpop.f32.mrb[0].mxu0
      %v2818 = vpop.f32.mrb[0].mxu0
      %v2819 = vadd.f32 0.0, %v2818
      %v2820 = vpop.f32.mrb[0].mxu0
      %2821 = vmatprep.mubr.bf16.mxu0 0
      %2822 = vmatmul.mubr.bf16.gmra.mrb[0].mxu0 %v2763
      %v2823 = vpop.f32.mrb[0].mxu0
      %v2824 = vadd.f32 0.0, %v2823
      %v2825 = vpop.f32.mrb[0].mxu0
      %v2826 = vpop.f32.mrb[0].mxu0
      %v2827 = vadd.f32 0.0, %v2826
      %v2828 = vpop.f32.mrb[0].mxu0
      %2829 = vdwg.mxu0
      %2830 = vmatprep.subr.bf16.mxu0 0
      %2831 = vmatpush1.bf16.msra.mxu0 %v946
      %2832 = vmatprep.subr.bf16.mxu0 0
      %2833 = vmatpush1.bf16.msra.mxu0 %v947
      %2834 = vmatprep.subr.bf16.mxu0 0
      %2835 = vmatpush1.bf16.msra.mxu0 %v948
      %2836 = vmatprep.subr.bf16.mxu0 0
      %2837 = vmatpush1.bf16.msra.mxu0 %v949
      %2838 = vmatprep.subr.bf16.mxu0 0
      %2839 = vmatpush1.bf16.msra.mxu0 %v950
      %2840 = vmatprep.subr.bf16.mxu0 0
      %2841 = vmatpush1.bf16.msra.mxu0 %v951
      %2842 = vmatprep.subr.bf16.mxu0 0
      %2843 = vmatpush1.bf16.msra.mxu0 %v952
      %2844 = vmatprep.subr.bf16.mxu0 0
      %2845 = vmatpush1.bf16.msra.mxu0 %v953
      %2846 = vmatprep.subr.bf16.mxu0 0
      %2847 = vmatpush1.bf16.msra.mxu0 0
      %2848 = vmatprep.subr.bf16.mxu0 0
      %2849 = vmatpush1.bf16.msra.mxu0 0
      %2850 = vmatprep.subr.bf16.mxu0 0
      %2851 = vmatpush1.bf16.msra.mxu0 0
      %2852 = vmatprep.subr.bf16.mxu0 0
      %2853 = vmatpush1.bf16.msra.mxu0 0
      %2854 = vmatprep.subr.bf16.mxu0 0
      %2855 = vmatpush1.bf16.msra.mxu0 0
      %2856 = vmatprep.subr.bf16.mxu0 0
      %2857 = vmatpush1.bf16.msra.mxu0 0
      %2858 = vmatprep.subr.bf16.mxu0 0
      %2859 = vmatpush1.bf16.msra.mxu0 0
      %2860 = vmatprep.subr.bf16.mxu0 0
      %2861 = vmatpush1.bf16.msra.mxu0 0
      %2862 = vmatprep.mubr.bf16.mxu0 0
      %2863 = vmatmul.mubr.bf16.gmra.mrb[0].mxu0 %v2720
      %v2864 = vpop.f32.mrb[0].mxu0
      %v2865 = vadd.f32 %v2800, %v2864
      %v2866 = vpop.f32.mrb[0].mxu0
      %v2867 = vpop.f32.mrb[0].mxu0
      %v2868 = vadd.f32 %v2803, %v2867
      %v2869 = vpop.f32.mrb[0].mxu0
      %2870 = vmatprep.mubr.bf16.mxu0 0
      %2871 = vmatmul.mubr.bf16.gmra.mrb[0].mxu0 %v2721
      %v2872 = vpop.f32.mrb[0].mxu0
      %v2873 = vadd.f32 %v2808, %v2872
      %v2874 = vpop.f32.mrb[0].mxu0
      %v2875 = vpop.f32.mrb[0].mxu0
      %v2876 = vadd.f32 %v2811, %v2875
      %v2877 = vpop.f32.mrb[0].mxu0
      %2878 = vmatprep.mubr.bf16.mxu0 0
      %2879 = vmatmul.mubr.bf16.gmra.mrb[0].mxu0 %v2722
      %v2880 = vpop.f32.mrb[0].mxu0
      %v2881 = vadd.f32 %v2816, %v2880
      %v2882 = vpop.f32.mrb[0].mxu0
      %v2883 = vpop.f32.mrb[0].mxu0
      %v2884 = vadd.f32 %v2819, %v2883
      %v2885 = vpop.f32.mrb[0].mxu0
      %2886 = vmatprep.mubr.bf16.mxu0 0
      %2887 = vmatmul.mubr.bf16.gmra.mrb[0].mxu0 %v2723
      %v2888 = vpop.f32.mrb[0].mxu0
      %v2889 = vadd.f32 %v2824, %v2888
      %v2890 = vpop.f32.mrb[0].mxu0
      %v2891 = vpop.f32.mrb[0].mxu0
      %v2892 = vadd.f32 %v2827, %v2891
      %v2893 = vpop.f32.mrb[0].mxu0
      %2894 = vdwg.mxu0
      %s2895 = scalar_lea.vmem %s8, 64
      %v2896 = vld [vmem:[%s2895] sm:$0xf]
      %v2897 = vld [vmem:[%s2895 + $0x4] sm:$0xf]
      %v2898 = vld [vmem:[%s2895 + $0x8] sm:$0xf]
      %v2899 = vld [vmem:[%s2895 + $0xc] sm:$0xf]
      %v2900 = vld [vmem:[%s2895 + $0x10] sm:$0xf]
      %v2901 = vld [vmem:[%s2895 + $0x14] sm:$0xf]
      %v2902 = vld [vmem:[%s2895 + $0x18] sm:$0xf]
      %v2903 = vld [vmem:[%s2895 + $0x1c] sm:$0xf]
      %v2912 = vunpack.c.l.b16 %v2896
      %v2913 = vunpack.c.l.b16 %v2897
      %v2914 = vunpack.c.l.b16 %v2898
      %v2915 = vunpack.c.l.b16 %v2899
      %v2916 = vunpack.c.l.b16 %v2900
      %v2917 = vunpack.c.l.b16 %v2901
      %v2918 = vunpack.c.l.b16 %v2902
      %v2919 = vunpack.c.l.b16 %v2903
      %v2920 = vpack.c.b16 %v2913, %v2912
      %v2921 = vpack.c.b16 %v2915, %v2914
      %v2922 = vpack.c.b16 %v2917, %v2916
      %v2923 = vpack.c.b16 %v2919, %v2918
      %v2925 = vsel %vm2642, %v2920, 0
      %v2928 = vsel %vm2642, %v2921, 0
      %v2931 = vsel %vm2642, %v2922, 0
      %v2934 = vsel %vm2642, %v2923, 0
      %2936 = vmatprep.subr.bf16.mxu0 0
      %2937 = vmatpush1.bf16.msra.mxu0 %v2610
      %2938 = vmatprep.subr.bf16.mxu0 0
      %2939 = vmatpush1.bf16.msra.mxu0 %v2611
      %2940 = vmatprep.subr.bf16.mxu0 0
      %2941 = vmatpush1.bf16.msra.mxu0 %v2612
      %2942 = vmatprep.subr.bf16.mxu0 0
      %2943 = vmatpush1.bf16.msra.mxu0 %v2613
      %2944 = vmatprep.subr.bf16.mxu0 0
      %2945 = vmatpush1.bf16.msra.mxu0 0
      %2946 = vmatprep.subr.bf16.mxu0 0
      %2947 = vmatpush1.bf16.msra.mxu0 0
      %2948 = vmatprep.subr.bf16.mxu0 0
      %2949 = vmatpush1.bf16.msra.mxu0 0
      %2950 = vmatprep.subr.bf16.mxu0 0
      %2951 = vmatpush1.bf16.msra.mxu0 0
      %2952 = vmatprep.subr.bf16.mxu0 0
      %2953 = vmatpush1.bf16.msra.mxu0 0
      %2954 = vmatprep.subr.bf16.mxu0 0
      %2955 = vmatpush1.bf16.msra.mxu0 0
      %2956 = vmatprep.subr.bf16.mxu0 0
      %2957 = vmatpush1.bf16.msra.mxu0 0
      %2958 = vmatprep.subr.bf16.mxu0 0
      %2959 = vmatpush1.bf16.msra.mxu0 0
      %2960 = vmatprep.subr.bf16.mxu0 0
      %2961 = vmatpush1.bf16.msra.mxu0 0
      %2962 = vmatprep.subr.bf16.mxu0 0
      %2963 = vmatpush1.bf16.msra.mxu0 0
      %2964 = vmatprep.subr.bf16.mxu0 0
      %2965 = vmatpush1.bf16.msra.mxu0 0
      %2966 = vmatprep.subr.bf16.mxu0 0
      %2967 = vmatpush1.bf16.msra.mxu0 0
      %2968 = vmatprep.mubr.bf16.mxu0 0
      %2969 = vmatmul.mubr.bf16.gmra.mrb[0].mxu0 %v2925
      %v2970 = vpop.f32.mrb[0].mxu0
      %v2971 = vadd.f32 0.0, %v2970
      %v2972 = vpop.f32.mrb[0].mxu0
      %v2973 = vpop.f32.mrb[0].mxu0
      %v2974 = vadd.f32 0.0, %v2973
      %v2975 = vpop.f32.mrb[0].mxu0
      %2976 = vmatprep.mubr.bf16.mxu0 0
      %2977 = vmatmul.mubr.bf16.gmra.mrb[0].mxu0 %v2928
      %v2978 = vpop.f32.mrb[0].mxu0
      %v2979 = vadd.f32 0.0, %v2978
      %v2980 = vpop.f32.mrb[0].mxu0
      %v2981 = vpop.f32.mrb[0].mxu0
      %v2982 = vadd.f32 0.0, %v2981
      %v2983 = vpop.f32.mrb[0].mxu0
      %2984 = vmatprep.mubr.bf16.mxu0 0
      %2985 = vmatmul.mubr.bf16.gmra.mrb[0].mxu0 %v2931
      %v2986 = vpop.f32.mrb[0].mxu0
      %v2987 = vadd.f32 0.0, %v2986
      %v2988 = vpop.f32.mrb[0].mxu0
      %v2989 = vpop.f32.mrb[0].mxu0
      %v2990 = vadd.f32 0.0, %v2989
      %v2991 = vpop.f32.mrb[0].mxu0
      %2992 = vmatprep.mubr.bf16.mxu0 0
      %2993 = vmatmul.mubr.bf16.gmra.mrb[0].mxu0 %v2934
      %v2994 = vpop.f32.mrb[0].mxu0
      %v2995 = vadd.f32 0.0, %v2994
      %v2996 = vpop.f32.mrb[0].mxu0
      %v2997 = vpop.f32.mrb[0].mxu0
      %v2998 = vadd.f32 0.0, %v2997
      %v2999 = vpop.f32.mrb[0].mxu0
      %3000 = vdwg.mxu0
      %v3001 = vpack.c.bf16 %v2974, %v2971
      %v3002 = vpack.c.bf16 %v2982, %v2979
      %v3003 = vpack.c.bf16 %v2990, %v2987
      %v3004 = vpack.c.bf16 %v2998, %v2995
      %3005 = vmatprep.subr.bf16.mxu0 0
      %3006 = vmatpush1.bf16.msra.mxu0 %v1132
      %3007 = vmatprep.subr.bf16.mxu0 0
      %3008 = vmatpush1.bf16.msra.mxu0 %v1133
      %3009 = vmatprep.subr.bf16.mxu0 0
      %3010 = vmatpush1.bf16.msra.mxu0 %v1134
      %3011 = vmatprep.subr.bf16.mxu0 0
      %3012 = vmatpush1.bf16.msra.mxu0 %v1135
      %3013 = vmatprep.subr.bf16.mxu0 0
      %3014 = vmatpush1.bf16.msra.mxu0 %v1136
      %3015 = vmatprep.subr.bf16.mxu0 0
      %3016 = vmatpush1.bf16.msra.mxu0 %v1137
      %3017 = vmatprep.subr.bf16.mxu0 0
      %3018 = vmatpush1.bf16.msra.mxu0 %v1138
      %3019 = vmatprep.subr.bf16.mxu0 0
      %3020 = vmatpush1.bf16.msra.mxu0 %v1139
      %3021 = vmatprep.subr.bf16.mxu0 0
      %3022 = vmatpush1.bf16.msra.mxu0 0
      %3023 = vmatprep.subr.bf16.mxu0 0
      %3024 = vmatpush1.bf16.msra.mxu0 0
      %3025 = vmatprep.subr.bf16.mxu0 0
      %3026 = vmatpush1.bf16.msra.mxu0 0
      %3027 = vmatprep.subr.bf16.mxu0 0
      %3028 = vmatpush1.bf16.msra.mxu0 0
      %3029 = vmatprep.subr.bf16.mxu0 0
      %3030 = vmatpush1.bf16.msra.mxu0 0
      %3031 = vmatprep.subr.bf16.mxu0 0
      %3032 = vmatpush1.bf16.msra.mxu0 0
      %3033 = vmatprep.subr.bf16.mxu0 0
      %3034 = vmatpush1.bf16.msra.mxu0 0
      %3035 = vmatprep.subr.bf16.mxu0 0
      %3036 = vmatpush1.bf16.msra.mxu0 0
      %3037 = vmatprep.mubr.bf16.mxu0 0
      %3038 = vmatmul.mubr.bf16.gmra.mrb[0].mxu0 %v3001
      %v3039 = vpop.f32.mrb[0].mxu0
      %v3040 = vadd.f32 0.0, %v3039
      %v3041 = vpop.f32.mrb[0].mxu0
      %v3042 = vpop.f32.mrb[0].mxu0
      %v3043 = vadd.f32 0.0, %v3042
      %v3044 = vpop.f32.mrb[0].mxu0
      %3045 = vmatprep.mubr.bf16.mxu0 0
      %3046 = vmatmul.mubr.bf16.gmra.mrb[0].mxu0 %v3002
      %v3047 = vpop.f32.mrb[0].mxu0
      %v3048 = vadd.f32 0.0, %v3047
      %v3049 = vpop.f32.mrb[0].mxu0
      %v3050 = vpop.f32.mrb[0].mxu0
      %v3051 = vadd.f32 0.0, %v3050
      %v3052 = vpop.f32.mrb[0].mxu0
      %3053 = vmatprep.mubr.bf16.mxu0 0
      %3054 = vmatmul.mubr.bf16.gmra.mrb[0].mxu0 %v3003
      %v3055 = vpop.f32.mrb[0].mxu0
      %v3056 = vadd.f32 0.0, %v3055
      %v3057 = vpop.f32.mrb[0].mxu0
      %v3058 = vpop.f32.mrb[0].mxu0
      %v3059 = vadd.f32 0.0, %v3058
      %v3060 = vpop.f32.mrb[0].mxu0
      %3061 = vmatprep.mubr.bf16.mxu0 0
      %3062 = vmatmul.mubr.bf16.gmra.mrb[0].mxu0 %v3004
      %v3063 = vpop.f32.mrb[0].mxu0
      %v3064 = vadd.f32 0.0, %v3063
      %v3065 = vpop.f32.mrb[0].mxu0
      %v3066 = vpop.f32.mrb[0].mxu0
      %v3067 = vadd.f32 0.0, %v3066
      %v3068 = vpop.f32.mrb[0].mxu0
      %3069 = vdwg.mxu0
      %v3070 = vadd.f32 %v2865, %v3040
      %v3071 = vadd.f32 %v2868, %v3043
      %v3072 = vadd.f32 %v2873, %v3048
      %v3073 = vadd.f32 %v2876, %v3051
      %v3074 = vadd.f32 %v2881, %v3056
      %v3075 = vadd.f32 %v2884, %v3059
      %v3076 = vadd.f32 %v2889, %v3064
      %v3077 = vadd.f32 %v2892, %v3067
      %v3078 = vld [vmem:[%s9] sm:$0xff]
      %v3079 = vld [vmem:[%s9 + $0x8] sm:$0xff]
      %v3080 = vld [vmem:[%s9 + $0x10] sm:$0xff]
      %v3081 = vld [vmem:[%s9 + $0x18] sm:$0xff]
      %v3082 = vld [vmem:[%s9 + $0x20] sm:$0xff]
      %v3083 = vld [vmem:[%s9 + $0x28] sm:$0xff]
      %v3084 = vld [vmem:[%s9 + $0x30] sm:$0xff]
      %v3085 = vld [vmem:[%s9 + $0x38] sm:$0xff]
      %3087 = vset.pattern.permute.xlu0 0
      %3088 = vperm.xlu0 %3087, %v3078
      %v3089 = vpop.permute.xlu0 %3088
      %3092 = vset.pattern.permute.xlu0 0
      %3093 = vperm.xlu0 %3092, %v3079
      %v3094 = vpop.permute.xlu0 %3093
      %3097 = vset.pattern.permute.xlu0 0
      %3098 = vperm.xlu0 %3097, %v3080
      %v3099 = vpop.permute.xlu0 %3098
      %3102 = vset.pattern.permute.xlu0 0
      %3103 = vperm.xlu0 %3102, %v3081
      %v3104 = vpop.permute.xlu0 %3103
      %3107 = vset.pattern.permute.xlu0 0
      %3108 = vperm.xlu0 %3107, %v3082
      %v3109 = vpop.permute.xlu0 %3108
      %3112 = vset.pattern.permute.xlu0 0
      %3113 = vperm.xlu0 %3112, %v3083
      %v3114 = vpop.permute.xlu0 %3113
      %3117 = vset.pattern.permute.xlu0 0
      %3118 = vperm.xlu0 %3117, %v3084
      %v3119 = vpop.permute.xlu0 %3118
      %3122 = vset.pattern.permute.xlu0 0
      %3123 = vperm.xlu0 %3122, %v3085
      %v3124 = vpop.permute.xlu0 %3123
      %v3126 = vadd.f32 %v3070, %v3089
      %v3127 = vadd.f32 %v3071, %v3094
      %v3128 = vadd.f32 %v3072, %v3099
      %v3129 = vadd.f32 %v3073, %v3104
      %v3130 = vadd.f32 %v3074, %v3109
      %v3131 = vadd.f32 %v3075, %v3114
      %v3132 = vadd.f32 %v3076, %v3119
      %v3133 = vadd.f32 %v3077, %v3124
      %v3135 = vlaneseq
      %v3136 = vshrl.u32 %v3135, 7
      %v3137 = vsub.s32 0, %v3136
      %v3138 = vrot.slane %v743, %v3137
      %v3140 = vmul.f32 %v3126, %v3138
      %v3141 = vmul.f32 %v3127, %v3138
      %v3142 = vmul.f32 %v3128, %v3138
      %v3143 = vmul.f32 %v3129, %v3138
      %v3144 = vmul.f32 %v3130, %v3138
      %v3145 = vmul.f32 %v3131, %v3138
      %v3146 = vmul.f32 %v3132, %v3138
      %v3147 = vmul.f32 %v3133, %v3138
      %v3148 = vld [vmem:[%s10] sm:$0xf]
      %v3149 = vld [vmem:[%s10 + $0x4] sm:$0xf]
      %v3150 = vld [vmem:[%s10 + $0x8] sm:$0xf]
      %v3151 = vld [vmem:[%s10 + $0xc] sm:$0xf]
      %v3152 = vld [vmem:[%s10 + $0x10] sm:$0xf]
      %v3153 = vld [vmem:[%s10 + $0x14] sm:$0xf]
      %v3154 = vld [vmem:[%s10 + $0x18] sm:$0xf]
      %v3155 = vld [vmem:[%s10 + $0x1c] sm:$0xf]
      %v3156 = vld [vmem:[%s11] sm:$0xff]
      %v3157 = vld [vmem:[%s11 + $0x8] sm:$0xff]
      %v3158 = vld [vmem:[%s11 + $0x10] sm:$0xff]
      %v3159 = vld [vmem:[%s11 + $0x18] sm:$0xff]
      %v3160 = vld [vmem:[%s11 + $0x20] sm:$0xff]
      %v3161 = vld [vmem:[%s11 + $0x28] sm:$0xff]
      %v3162 = vld [vmem:[%s11 + $0x30] sm:$0xff]
      %v3163 = vld [vmem:[%s11 + $0x38] sm:$0xff]
      %3165 = vset.pattern.permute.xlu0 0
      %3166 = vperm.xlu0 %3165, %v3156
      %v3167 = vpop.permute.xlu0 %3166
      %3170 = vset.pattern.permute.xlu0 0
      %3171 = vperm.xlu0 %3170, %v3157
      %v3172 = vpop.permute.xlu0 %3171
      %3175 = vset.pattern.permute.xlu0 0
      %3176 = vperm.xlu0 %3175, %v3158
      %v3177 = vpop.permute.xlu0 %3176
      %3180 = vset.pattern.permute.xlu0 0
      %3181 = vperm.xlu0 %3180, %v3159
      %v3182 = vpop.permute.xlu0 %3181
      %3185 = vset.pattern.permute.xlu0 0
      %3186 = vperm.xlu0 %3185, %v3160
      %v3187 = vpop.permute.xlu0 %3186
      %3190 = vset.pattern.permute.xlu0 0
      %3191 = vperm.xlu0 %3190, %v3161
      %v3192 = vpop.permute.xlu0 %3191
      %3195 = vset.pattern.permute.xlu0 0
      %3196 = vperm.xlu0 %3195, %v3162
      %v3197 = vpop.permute.xlu0 %3196
      %3200 = vset.pattern.permute.xlu0 0
      %3201 = vperm.xlu0 %3200, %v3163
      %v3202 = vpop.permute.xlu0 %3201
      %v3212 = vunpack.c.l.b16 %v3148
      %v3213 = vunpack.c.l.b16 %v3149
      %v3214 = vunpack.c.l.b16 %v3150
      %v3215 = vunpack.c.l.b16 %v3151
      %v3216 = vunpack.c.l.b16 %v3152
      %v3217 = vunpack.c.l.b16 %v3153
      %v3218 = vunpack.c.l.b16 %v3154
      %v3219 = vunpack.c.l.b16 %v3155
      %v3220 = vpack.c.b16 %v3213, %v3212
      %v3221 = vpack.c.b16 %v3215, %v3214
      %v3222 = vpack.c.b16 %v3217, %v3216
      %v3223 = vpack.c.b16 %v3219, %v3218
      %v3230 = vunpack.c.l.b16 %v736
      %v3231 = vunpack.c.l.b16 %v737
      %v3232 = vunpack.c.l.b16 %v738
      %v3233 = vunpack.c.l.b16 %v739
      %v3234 = vunpack.c.l.b16 %v740
      %v3235 = vunpack.c.l.b16 %v741
      %v3236 = vpack.c.b16 %v3231, %v3230
      %v3237 = vpack.c.b16 %v3233, %v3232
      %v3238 = vpack.c.b16 %v3235, %v3234
      %vm3242 = vcmask 392192
      %v3244 = vsel %vm3242, %v3220, 0
      %v3247 = vsel %vm3242, %v3221, 0
      %v3250 = vsel %vm3242, %v3222, 0
      %v3253 = vsel %vm3242, %v3223, 0
      %3255 = vmatprep.subr.bf16.mxu0 0
      %3256 = vmatpush1.bf16.msra.mxu0 %v3236
      %3257 = vmatprep.subr.bf16.mxu0 0
      %3258 = vmatpush1.bf16.msra.mxu0 %v3237
      %3259 = vmatprep.subr.bf16.mxu0 0
      %3260 = vmatpush1.bf16.msra.mxu0 %v3238
      %3261 = vmatprep.subr.bf16.mxu0 0
      %3262 = vmatpush1.bf16.msra.mxu0 0
      %3263 = vmatprep.subr.bf16.mxu0 0
      %3264 = vmatpush1.bf16.msra.mxu0 0
      %3265 = vmatprep.subr.bf16.mxu0 0
      %3266 = vmatpush1.bf16.msra.mxu0 0
      %3267 = vmatprep.subr.bf16.mxu0 0
      %3268 = vmatpush1.bf16.msra.mxu0 0
      %3269 = vmatprep.subr.bf16.mxu0 0
      %3270 = vmatpush1.bf16.msra.mxu0 0
      %3271 = vmatprep.subr.bf16.mxu0 0
      %3272 = vmatpush1.bf16.msra.mxu0 0
      %3273 = vmatprep.subr.bf16.mxu0 0
      %3274 = vmatpush1.bf16.msra.mxu0 0
      %3275 = vmatprep.subr.bf16.mxu0 0
      %3276 = vmatpush1.bf16.msra.mxu0 0
      %3277 = vmatprep.subr.bf16.mxu0 0
      %3278 = vmatpush1.bf16.msra.mxu0 0
      %3279 = vmatprep.subr.bf16.mxu0 0
      %3280 = vmatpush1.bf16.msra.mxu0 0
      %3281 = vmatprep.subr.bf16.mxu0 0
      %3282 = vmatpush1.bf16.msra.mxu0 0
      %3283 = vmatprep.subr.bf16.mxu0 0
      %3284 = vmatpush1.bf16.msra.mxu0 0
      %3285 = vmatprep.subr.bf16.mxu0 0
      %3286 = vmatpush1.bf16.msra.mxu0 0
      %3287 = vmatprep.mubr.bf16.mxu0 0
      %3288 = vmatmul.mubr.bf16.gmra.mrb[0].mxu0 %v3244
      %v3289 = vpop.f32.mrb[0].mxu0
      %v3290 = vadd.f32 %v3167, %v3289
      %v3291 = vpop.f32.mrb[0].mxu0
      %v3292 = vpop.f32.mrb[0].mxu0
      %v3293 = vadd.f32 %v3172, %v3292
      %v3294 = vpop.f32.mrb[0].mxu0
      %3295 = vmatprep.mubr.bf16.mxu0 0
      %3296 = vmatmul.mubr.bf16.gmra.mrb[0].mxu0 %v3247
      %v3297 = vpop.f32.mrb[0].mxu0
      %v3298 = vadd.f32 %v3177, %v3297
      %v3299 = vpop.f32.mrb[0].mxu0
      %v3300 = vpop.f32.mrb[0].mxu0
      %v3301 = vadd.f32 %v3182, %v3300
      %v3302 = vpop.f32.mrb[0].mxu0
      %3303 = vmatprep.mubr.bf16.mxu0 0
      %3304 = vmatmul.mubr.bf16.gmra.mrb[0].mxu0 %v3250
      %v3305 = vpop.f32.mrb[0].mxu0
      %v3306 = vadd.f32 %v3187, %v3305
      %v3307 = vpop.f32.mrb[0].mxu0
      %v3308 = vpop.f32.mrb[0].mxu0
      %v3309 = vadd.f32 %v3192, %v3308
      %v3310 = vpop.f32.mrb[0].mxu0
      %3311 = vmatprep.mubr.bf16.mxu0 0
      %3312 = vmatmul.mubr.bf16.gmra.mrb[0].mxu0 %v3253
      %v3313 = vpop.f32.mrb[0].mxu0
      %v3314 = vadd.f32 %v3197, %v3313
      %v3315 = vpop.f32.mrb[0].mxu0
      %v3316 = vpop.f32.mrb[0].mxu0
      %v3317 = vadd.f32 %v3202, %v3316
      %v3318 = vpop.f32.mrb[0].mxu0
      %3319 = vdwg.mxu0
      %v3320 = vmul.f32 %v3290, %v3138
      %v3321 = vmul.f32 %v3293, %v3138
      %v3322 = vmul.f32 %v3298, %v3138
      %v3323 = vmul.f32 %v3301, %v3138
      %v3324 = vmul.f32 %v3306, %v3138
      %v3325 = vmul.f32 %v3309, %v3138
      %v3326 = vmul.f32 %v3314, %v3138
      %v3327 = vmul.f32 %v3317, %v3138
      %v3328 = vadd.f32 %v3140, %v3320
      %v3329 = vadd.f32 %v3141, %v3321
      %v3330 = vadd.f32 %v3142, %v3322
      %v3331 = vadd.f32 %v3143, %v3323
      %v3332 = vadd.f32 %v3144, %v3324
      %v3333 = vadd.f32 %v3145, %v3325
      %v3334 = vadd.f32 %v3146, %v3326
      %v3335 = vadd.f32 %v3147, %v3327
      %v3336 = vpack.c.bf16 %v3329, %v3328
      %v3337 = vpack.c.bf16 %v3331, %v3330
      %v3338 = vpack.c.bf16 %v3333, %v3332
      %v3339 = vpack.c.bf16 %v3335, %v3334
      %v3340 = vld [vmem:[%s12] sm:$0xf]
      %v3341 = vld [vmem:[%s12 + $0x4] sm:$0xf]
      %v3342 = vld [vmem:[%s12 + $0x8] sm:$0xf]
      %v3343 = vld [vmem:[%s12 + $0xc] sm:$0xf]
      %v3344 = vld [vmem:[%s12 + $0x10] sm:$0xf]
      %v3345 = vld [vmem:[%s12 + $0x14] sm:$0xf]
      %v3346 = vld [vmem:[%s12 + $0x18] sm:$0xf]
      %v3347 = vld [vmem:[%s12 + $0x1c] sm:$0xf]
      %v3356 = vunpack.c.l.b16 %v3340
      %v3357 = vunpack.c.l.b16 %v3341
      %v3358 = vunpack.c.l.b16 %v3342
      %v3359 = vunpack.c.l.b16 %v3343
      %v3360 = vunpack.c.l.b16 %v3344
      %v3361 = vunpack.c.l.b16 %v3345
      %v3362 = vunpack.c.l.b16 %v3346
      %v3363 = vunpack.c.l.b16 %v3347
      %v3364 = vpack.c.b16 %v3357, %v3356
      %v3365 = vpack.c.b16 %v3359, %v3358
      %v3366 = vpack.c.b16 %v3361, %v3360
      %v3367 = vpack.c.b16 %v3363, %v3362
      %v3369 = vsel %vm2642, %v3364, 0
      %v3372 = vsel %vm2642, %v3365, 0
      %v3375 = vsel %vm2642, %v3366, 0
      %v3378 = vsel %vm2642, %v3367, 0
      %3380 = vmatprep.subr.bf16.mxu0 0
      %3381 = vmatpush1.bf16.msra.mxu0 %v3336
      %3382 = vmatprep.subr.bf16.mxu0 0
      %3383 = vmatpush1.bf16.msra.mxu0 %v3337
      %3384 = vmatprep.subr.bf16.mxu0 0
      %3385 = vmatpush1.bf16.msra.mxu0 %v3338
      %3386 = vmatprep.subr.bf16.mxu0 0
      %3387 = vmatpush1.bf16.msra.mxu0 %v3339
      %3388 = vmatprep.subr.bf16.mxu0 0
      %3389 = vmatpush1.bf16.msra.mxu0 0
      %3390 = vmatprep.subr.bf16.mxu0 0
      %3391 = vmatpush1.bf16.msra.mxu0 0
      %3392 = vmatprep.subr.bf16.mxu0 0
      %3393 = vmatpush1.bf16.msra.mxu0 0
      %3394 = vmatprep.subr.bf16.mxu0 0
      %3395 = vmatpush1.bf16.msra.mxu0 0
      %3396 = vmatprep.subr.bf16.mxu0 0
      %3397 = vmatpush1.bf16.msra.mxu0 0
      %3398 = vmatprep.subr.bf16.mxu0 0
      %3399 = vmatpush1.bf16.msra.mxu0 0
      %3400 = vmatprep.subr.bf16.mxu0 0
      %3401 = vmatpush1.bf16.msra.mxu0 0
      %3402 = vmatprep.subr.bf16.mxu0 0
      %3403 = vmatpush1.bf16.msra.mxu0 0
      %3404 = vmatprep.subr.bf16.mxu0 0
      %3405 = vmatpush1.bf16.msra.mxu0 0
      %3406 = vmatprep.subr.bf16.mxu0 0
      %3407 = vmatpush1.bf16.msra.mxu0 0
      %3408 = vmatprep.subr.bf16.mxu0 0
      %3409 = vmatpush1.bf16.msra.mxu0 0
      %3410 = vmatprep.subr.bf16.mxu0 0
      %3411 = vmatpush1.bf16.msra.mxu0 0
      %3412 = vmatprep.mubr.bf16.mxu0 0
      %3413 = vmatmul.mubr.bf16.gmra.mrb[0].mxu0 %v3369
      %v3414 = vpop.f32.mrb[0].mxu0
      %v3415 = vadd.f32 0.0, %v3414
      %v3416 = vpop.f32.mrb[0].mxu0
      %v3417 = vpop.f32.mrb[0].mxu0
      %v3418 = vadd.f32 0.0, %v3417
      %v3419 = vpop.f32.mrb[0].mxu0
      %3420 = vmatprep.mubr.bf16.mxu0 0
      %3421 = vmatmul.mubr.bf16.gmra.mrb[0].mxu0 %v3372
      %v3422 = vpop.f32.mrb[0].mxu0
      %v3423 = vadd.f32 0.0, %v3422
      %v3424 = vpop.f32.mrb[0].mxu0
      %v3425 = vpop.f32.mrb[0].mxu0
      %v3426 = vadd.f32 0.0, %v3425
      %v3427 = vpop.f32.mrb[0].mxu0
      %3428 = vmatprep.mubr.bf16.mxu0 0
      %3429 = vmatmul.mubr.bf16.gmra.mrb[0].mxu0 %v3375
      %v3430 = vpop.f32.mrb[0].mxu0
      %v3431 = vadd.f32 0.0, %v3430
      %v3432 = vpop.f32.mrb[0].mxu0
      %v3433 = vpop.f32.mrb[0].mxu0
      %v3434 = vadd.f32 0.0, %v3433
      %v3435 = vpop.f32.mrb[0].mxu0
      %3436 = vmatprep.mubr.bf16.mxu0 0
      %3437 = vmatmul.mubr.bf16.gmra.mrb[0].mxu0 %v3378
      %v3438 = vpop.f32.mrb[0].mxu0
      %v3439 = vadd.f32 0.0, %v3438
      %v3440 = vpop.f32.mrb[0].mxu0
      %v3441 = vpop.f32.mrb[0].mxu0
      %v3442 = vadd.f32 0.0, %v3441
      %v3443 = vpop.f32.mrb[0].mxu0
      %3444 = vdwg.mxu0
      %v3445 = vpack.c.bf16 %v3418, %v3415
      %v3446 = vpack.c.bf16 %v3426, %v3423
      %v3447 = vpack.c.bf16 %v3434, %v3431
      %v3448 = vpack.c.bf16 %v3442, %v3439
      %s3449 = scalar_lea.vmem %s20, 128
      %v3450 = vld [vmem:[%s3449] sm:$0xf]
      %v3451 = vld [vmem:[%s3449 + $0x4] sm:$0xf]
      %v3452 = vld [vmem:[%s3449 + $0x8] sm:$0xf]
      %v3453 = vld [vmem:[%s3449 + $0xc] sm:$0xf]
      %v3454 = vld [vmem:[%s3449 + $0x10] sm:$0xf]
      %v3455 = vld [vmem:[%s3449 + $0x14] sm:$0xf]
      %v3456 = vld [vmem:[%s3449 + $0x18] sm:$0xf]
      %v3457 = vld [vmem:[%s3449 + $0x1c] sm:$0xf]
      %v3458 = vld [vmem:[%s3449 + $0x20] sm:$0xf]
      %v3459 = vld [vmem:[%s3449 + $0x24] sm:$0xf]
      %v3460 = vld [vmem:[%s3449 + $0x28] sm:$0xf]
      %v3461 = vld [vmem:[%s3449 + $0x2c] sm:$0xf]
      %v3462 = vld [vmem:[%s3449 + $0x30] sm:$0xf]
      %v3463 = vld [vmem:[%s3449 + $0x34] sm:$0xf]
      %v3464 = vld [vmem:[%s3449 + $0x38] sm:$0xf]
      %v3465 = vld [vmem:[%s3449 + $0x3c] sm:$0xf]
      %s3466 = scalar_lea.vmem %s12, 32
      %v3467 = vld [vmem:[%s3466] sm:$0xf]
      %v3468 = vld [vmem:[%s3466 + $0x4] sm:$0xf]
      %v3469 = vld [vmem:[%s3466 + $0x8] sm:$0xf]
      %v3470 = vld [vmem:[%s3466 + $0xc] sm:$0xf]
      %v3471 = vld [vmem:[%s3466 + $0x10] sm:$0xf]
      %v3472 = vld [vmem:[%s3466 + $0x14] sm:$0xf]
      %v3473 = vld [vmem:[%s3466 + $0x18] sm:$0xf]
      %v3474 = vld [vmem:[%s3466 + $0x1c] sm:$0xf]
      %v3483 = vunpack.c.l.b16 %v3467
      %v3484 = vunpack.c.l.b16 %v3468
      %v3485 = vunpack.c.l.b16 %v3469
      %v3486 = vunpack.c.l.b16 %v3470
      %v3487 = vunpack.c.l.b16 %v3471
      %v3488 = vunpack.c.l.b16 %v3472
      %v3489 = vunpack.c.l.b16 %v3473
      %v3490 = vunpack.c.l.b16 %v3474
      %v3491 = vpack.c.b16 %v3484, %v3483
      %v3492 = vpack.c.b16 %v3486, %v3485
      %v3493 = vpack.c.b16 %v3488, %v3487
      %v3494 = vpack.c.b16 %v3490, %v3489
      %v3496 = vsel %vm2642, %v3491, 0
      %v3499 = vsel %vm2642, %v3492, 0
      %v3502 = vsel %vm2642, %v3493, 0
      %v3505 = vsel %vm2642, %v3494, 0
      %3507 = vmatprep.subr.bf16.mxu0 0
      %3508 = vmatpush1.bf16.msra.mxu0 %v3336
      %3509 = vmatprep.subr.bf16.mxu0 0
      %3510 = vmatpush1.bf16.msra.mxu0 %v3337
      %3511 = vmatprep.subr.bf16.mxu0 0
      %3512 = vmatpush1.bf16.msra.mxu0 %v3338
      %3513 = vmatprep.subr.bf16.mxu0 0
      %3514 = vmatpush1.bf16.msra.mxu0 %v3339
      %3515 = vmatprep.subr.bf16.mxu0 0
      %3516 = vmatpush1.bf16.msra.mxu0 0
      %3517 = vmatprep.subr.bf16.mxu0 0
      %3518 = vmatpush1.bf16.msra.mxu0 0
      %3519 = vmatprep.subr.bf16.mxu0 0
      %3520 = vmatpush1.bf16.msra.mxu0 0
      %3521 = vmatprep.subr.bf16.mxu0 0
      %3522 = vmatpush1.bf16.msra.mxu0 0
      %3523 = vmatprep.subr.bf16.mxu0 0
      %3524 = vmatpush1.bf16.msra.mxu0 0
      %3525 = vmatprep.subr.bf16.mxu0 0
      %3526 = vmatpush1.bf16.msra.mxu0 0
      %3527 = vmatprep.subr.bf16.mxu0 0
      %3528 = vmatpush1.bf16.msra.mxu0 0
      %3529 = vmatprep.subr.bf16.mxu0 0
      %3530 = vmatpush1.bf16.msra.mxu0 0
      %3531 = vmatprep.subr.bf16.mxu0 0
      %3532 = vmatpush1.bf16.msra.mxu0 0
      %3533 = vmatprep.subr.bf16.mxu0 0
      %3534 = vmatpush1.bf16.msra.mxu0 0
      %3535 = vmatprep.subr.bf16.mxu0 0
      %3536 = vmatpush1.bf16.msra.mxu0 0
      %3537 = vmatprep.subr.bf16.mxu0 0
      %3538 = vmatpush1.bf16.msra.mxu0 0
      %3539 = vmatprep.mubr.bf16.mxu0 0
      %3540 = vmatmul.mubr.bf16.gmra.mrb[0].mxu0 %v3496
      %v3541 = vpop.f32.mrb[0].mxu0
      %v3542 = vadd.f32 0.0, %v3541
      %v3543 = vpop.f32.mrb[0].mxu0
      %v3544 = vpop.f32.mrb[0].mxu0
      %v3545 = vadd.f32 0.0, %v3544
      %v3546 = vpop.f32.mrb[0].mxu0
      %3547 = vmatprep.mubr.bf16.mxu0 0
      %3548 = vmatmul.mubr.bf16.gmra.mrb[0].mxu0 %v3499
      %v3549 = vpop.f32.mrb[0].mxu0
      %v3550 = vadd.f32 0.0, %v3549
      %v3551 = vpop.f32.mrb[0].mxu0
      %v3552 = vpop.f32.mrb[0].mxu0
      %v3553 = vadd.f32 0.0, %v3552
      %v3554 = vpop.f32.mrb[0].mxu0
      %3555 = vmatprep.mubr.bf16.mxu0 0
      %3556 = vmatmul.mubr.bf16.gmra.mrb[0].mxu0 %v3502
      %v3557 = vpop.f32.mrb[0].mxu0
      %v3558 = vadd.f32 0.0, %v3557
      %v3559 = vpop.f32.mrb[0].mxu0
      %v3560 = vpop.f32.mrb[0].mxu0
      %v3561 = vadd.f32 0.0, %v3560
      %v3562 = vpop.f32.mrb[0].mxu0
      %3563 = vmatprep.mubr.bf16.mxu0 0
      %3564 = vmatmul.mubr.bf16.gmra.mrb[0].mxu0 %v3505
      %v3565 = vpop.f32.mrb[0].mxu0
      %v3566 = vadd.f32 0.0, %v3565
      %v3567 = vpop.f32.mrb[0].mxu0
      %v3568 = vpop.f32.mrb[0].mxu0
      %v3569 = vadd.f32 0.0, %v3568
      %v3570 = vpop.f32.mrb[0].mxu0
      %3571 = vdwg.mxu0
      %v3588 = vunpack.c.l.b16 %v3450
      %v3589 = vunpack.c.l.b16 %v3451
      %v3590 = vunpack.c.l.b16 %v3452
      %v3591 = vunpack.c.l.b16 %v3453
      %v3592 = vunpack.c.l.b16 %v3454
      %v3593 = vunpack.c.l.b16 %v3455
      %v3594 = vunpack.c.l.b16 %v3456
      %v3595 = vunpack.c.l.b16 %v3457
      %v3596 = vunpack.c.l.b16 %v3458
      %v3597 = vunpack.c.l.b16 %v3459
      %v3598 = vunpack.c.l.b16 %v3460
      %v3599 = vunpack.c.l.b16 %v3461
      %v3600 = vunpack.c.l.b16 %v3462
      %v3601 = vunpack.c.l.b16 %v3463
      %v3602 = vunpack.c.l.b16 %v3464
      %v3603 = vunpack.c.l.b16 %v3465
      %v3604 = vpack.c.b16 %v3589, %v3588
      %v3605 = vpack.c.b16 %v3591, %v3590
      %v3606 = vpack.c.b16 %v3593, %v3592
      %v3607 = vpack.c.b16 %v3595, %v3594
      %v3608 = vpack.c.b16 %v3597, %v3596
      %v3609 = vpack.c.b16 %v3599, %v3598
      %v3610 = vpack.c.b16 %v3601, %v3600
      %v3611 = vpack.c.b16 %v3603, %v3602
      %3620 = vmatprep.subr.bf16.mxu0 0
      %3621 = vmatpush1.bf16.msra.mxu0 %v3604
      %3622 = vmatprep.subr.bf16.mxu0 0
      %3623 = vmatpush1.bf16.msra.mxu0 %v3605
      %3624 = vmatprep.subr.bf16.mxu0 0
      %3625 = vmatpush1.bf16.msra.mxu0 %v3606
      %3626 = vmatprep.subr.bf16.mxu0 0
      %3627 = vmatpush1.bf16.msra.mxu0 %v3607
      %3628 = vmatprep.subr.bf16.mxu0 0
      %3629 = vmatpush1.bf16.msra.mxu0 %v3608
      %3630 = vmatprep.subr.bf16.mxu0 0
      %3631 = vmatpush1.bf16.msra.mxu0 %v3609
      %3632 = vmatprep.subr.bf16.mxu0 0
      %3633 = vmatpush1.bf16.msra.mxu0 %v3610
      %3634 = vmatprep.subr.bf16.mxu0 0
      %3635 = vmatpush1.bf16.msra.mxu0 %v3611
      %3636 = vmatprep.subr.bf16.mxu0 0
      %3637 = vmatpush1.bf16.msra.mxu0 0
      %3638 = vmatprep.subr.bf16.mxu0 0
      %3639 = vmatpush1.bf16.msra.mxu0 0
      %3640 = vmatprep.subr.bf16.mxu0 0
      %3641 = vmatpush1.bf16.msra.mxu0 0
      %3642 = vmatprep.subr.bf16.mxu0 0
      %3643 = vmatpush1.bf16.msra.mxu0 0
      %3644 = vmatprep.subr.bf16.mxu0 0
      %3645 = vmatpush1.bf16.msra.mxu0 0
      %3646 = vmatprep.subr.bf16.mxu0 0
      %3647 = vmatpush1.bf16.msra.mxu0 0
      %3648 = vmatprep.subr.bf16.mxu0 0
      %3649 = vmatpush1.bf16.msra.mxu0 0
      %3650 = vmatprep.subr.bf16.mxu0 0
      %3651 = vmatpush1.bf16.msra.mxu0 0
      %3652 = vmatprep.mubr.bf16.mxu0 0
      %3653 = vmatmul.mubr.bf16.gmra.mrb[0].mxu0 %v3445
      %v3654 = vpop.f32.mrb[0].mxu0
      %v3655 = vadd.f32 %v3542, %v3654
      %v3656 = vpop.f32.mrb[0].mxu0
      %v3657 = vpop.f32.mrb[0].mxu0
      %v3658 = vadd.f32 %v3545, %v3657
      %v3659 = vpop.f32.mrb[0].mxu0
      %3660 = vmatprep.mubr.bf16.mxu0 0
      %3661 = vmatmul.mubr.bf16.gmra.mrb[0].mxu0 %v3446
      %v3662 = vpop.f32.mrb[0].mxu0
      %v3663 = vadd.f32 %v3550, %v3662
      %v3664 = vpop.f32.mrb[0].mxu0
      %v3665 = vpop.f32.mrb[0].mxu0
      %v3666 = vadd.f32 %v3553, %v3665
      %v3667 = vpop.f32.mrb[0].mxu0
      %3668 = vmatprep.mubr.bf16.mxu0 0
      %3669 = vmatmul.mubr.bf16.gmra.mrb[0].mxu0 %v3447
      %v3670 = vpop.f32.mrb[0].mxu0
      %v3671 = vadd.f32 %v3558, %v3670
      %v3672 = vpop.f32.mrb[0].mxu0
      %v3673 = vpop.f32.mrb[0].mxu0
      %v3674 = vadd.f32 %v3561, %v3673
      %v3675 = vpop.f32.mrb[0].mxu0
      %3676 = vmatprep.mubr.bf16.mxu0 0
      %3677 = vmatmul.mubr.bf16.gmra.mrb[0].mxu0 %v3448
      %v3678 = vpop.f32.mrb[0].mxu0
      %v3679 = vadd.f32 %v3566, %v3678
      %v3680 = vpop.f32.mrb[0].mxu0
      %v3681 = vpop.f32.mrb[0].mxu0
      %v3682 = vadd.f32 %v3569, %v3681
      %v3683 = vpop.f32.mrb[0].mxu0
      %3684 = vdwg.mxu0
      %s3685 = scalar_lea.vmem %s12, 64
      %v3686 = vld [vmem:[%s3685] sm:$0xf]
      %v3687 = vld [vmem:[%s3685 + $0x4] sm:$0xf]
      %v3688 = vld [vmem:[%s3685 + $0x8] sm:$0xf]
      %v3689 = vld [vmem:[%s3685 + $0xc] sm:$0xf]
      %v3690 = vld [vmem:[%s3685 + $0x10] sm:$0xf]
      %v3691 = vld [vmem:[%s3685 + $0x14] sm:$0xf]
      %v3692 = vld [vmem:[%s3685 + $0x18] sm:$0xf]
      %v3693 = vld [vmem:[%s3685 + $0x1c] sm:$0xf]
      %v3702 = vunpack.c.l.b16 %v3686
      %v3703 = vunpack.c.l.b16 %v3687
      %v3704 = vunpack.c.l.b16 %v3688
      %v3705 = vunpack.c.l.b16 %v3689
      %v3706 = vunpack.c.l.b16 %v3690
      %v3707 = vunpack.c.l.b16 %v3691
      %v3708 = vunpack.c.l.b16 %v3692
      %v3709 = vunpack.c.l.b16 %v3693
      %v3710 = vpack.c.b16 %v3703, %v3702
      %v3711 = vpack.c.b16 %v3705, %v3704
      %v3712 = vpack.c.b16 %v3707, %v3706
      %v3713 = vpack.c.b16 %v3709, %v3708
      %v3715 = vsel %vm2642, %v3710, 0
      %v3718 = vsel %vm2642, %v3711, 0
      %v3721 = vsel %vm2642, %v3712, 0
      %v3724 = vsel %vm2642, %v3713, 0
      %3726 = vmatprep.subr.bf16.mxu0 0
      %3727 = vmatpush1.bf16.msra.mxu0 %v3336
      %3728 = vmatprep.subr.bf16.mxu0 0
      %3729 = vmatpush1.bf16.msra.mxu0 %v3337
      %3730 = vmatprep.subr.bf16.mxu0 0
      %3731 = vmatpush1.bf16.msra.mxu0 %v3338
      %3732 = vmatprep.subr.bf16.mxu0 0
      %3733 = vmatpush1.bf16.msra.mxu0 %v3339
      %3734 = vmatprep.subr.bf16.mxu0 0
      %3735 = vmatpush1.bf16.msra.mxu0 0
      %3736 = vmatprep.subr.bf16.mxu0 0
      %3737 = vmatpush1.bf16.msra.mxu0 0
      %3738 = vmatprep.subr.bf16.mxu0 0
      %3739 = vmatpush1.bf16.msra.mxu0 0
      %3740 = vmatprep.subr.bf16.mxu0 0
      %3741 = vmatpush1.bf16.msra.mxu0 0
      %3742 = vmatprep.subr.bf16.mxu0 0
      %3743 = vmatpush1.bf16.msra.mxu0 0
      %3744 = vmatprep.subr.bf16.mxu0 0
      %3745 = vmatpush1.bf16.msra.mxu0 0
      %3746 = vmatprep.subr.bf16.mxu0 0
      %3747 = vmatpush1.bf16.msra.mxu0 0
      %3748 = vmatprep.subr.bf16.mxu0 0
      %3749 = vmatpush1.bf16.msra.mxu0 0
      %3750 = vmatprep.subr.bf16.mxu0 0
      %3751 = vmatpush1.bf16.msra.mxu0 0
      %3752 = vmatprep.subr.bf16.mxu0 0
      %3753 = vmatpush1.bf16.msra.mxu0 0
      %3754 = vmatprep.subr.bf16.mxu0 0
      %3755 = vmatpush1.bf16.msra.mxu0 0
      %3756 = vmatprep.subr.bf16.mxu0 0
      %3757 = vmatpush1.bf16.msra.mxu0 0
      %3758 = vmatprep.mubr.bf16.mxu0 0
      %3759 = vmatmul.mubr.bf16.gmra.mrb[0].mxu0 %v3715
      %v3760 = vpop.f32.mrb[0].mxu0
      %v3761 = vadd.f32 0.0, %v3760
      %v3762 = vpop.f32.mrb[0].mxu0
      %v3763 = vpop.f32.mrb[0].mxu0
      %v3764 = vadd.f32 0.0, %v3763
      %v3765 = vpop.f32.mrb[0].mxu0
      %3766 = vmatprep.mubr.bf16.mxu0 0
      %3767 = vmatmul.mubr.bf16.gmra.mrb[0].mxu0 %v3718
      %v3768 = vpop.f32.mrb[0].mxu0
      %v3769 = vadd.f32 0.0, %v3768
      %v3770 = vpop.f32.mrb[0].mxu0
      %v3771 = vpop.f32.mrb[0].mxu0
      %v3772 = vadd.f32 0.0, %v3771
      %v3773 = vpop.f32.mrb[0].mxu0
      %3774 = vmatprep.mubr.bf16.mxu0 0
      %3775 = vmatmul.mubr.bf16.gmra.mrb[0].mxu0 %v3721
      %v3776 = vpop.f32.mrb[0].mxu0
      %v3777 = vadd.f32 0.0, %v3776
      %v3778 = vpop.f32.mrb[0].mxu0
      %v3779 = vpop.f32.mrb[0].mxu0
      %v3780 = vadd.f32 0.0, %v3779
      %v3781 = vpop.f32.mrb[0].mxu0
      %3782 = vmatprep.mubr.bf16.mxu0 0
      %3783 = vmatmul.mubr.bf16.gmra.mrb[0].mxu0 %v3724
      %v3784 = vpop.f32.mrb[0].mxu0
      %v3785 = vadd.f32 0.0, %v3784
      %v3786 = vpop.f32.mrb[0].mxu0
      %v3787 = vpop.f32.mrb[0].mxu0
      %v3788 = vadd.f32 0.0, %v3787
      %v3789 = vpop.f32.mrb[0].mxu0
      %3790 = vdwg.mxu0
      %v3791 = vpack.c.bf16 %v3764, %v3761
      %v3792 = vpack.c.bf16 %v3772, %v3769
      %v3793 = vpack.c.bf16 %v3780, %v3777
      %v3794 = vpack.c.bf16 %v3788, %v3785
      %s3795 = scalar_lea.vmem %s20, 192
      %v3796 = vld [vmem:[%s3795] sm:$0xf]
      %v3797 = vld [vmem:[%s3795 + $0x4] sm:$0xf]
      %v3798 = vld [vmem:[%s3795 + $0x8] sm:$0xf]
      %v3799 = vld [vmem:[%s3795 + $0xc] sm:$0xf]
      %v3800 = vld [vmem:[%s3795 + $0x10] sm:$0xf]
      %v3801 = vld [vmem:[%s3795 + $0x14] sm:$0xf]
      %v3802 = vld [vmem:[%s3795 + $0x18] sm:$0xf]
      %v3803 = vld [vmem:[%s3795 + $0x1c] sm:$0xf]
      %v3804 = vld [vmem:[%s3795 + $0x20] sm:$0xf]
      %v3805 = vld [vmem:[%s3795 + $0x24] sm:$0xf]
      %v3806 = vld [vmem:[%s3795 + $0x28] sm:$0xf]
      %v3807 = vld [vmem:[%s3795 + $0x2c] sm:$0xf]
      %v3808 = vld [vmem:[%s3795 + $0x30] sm:$0xf]
      %v3809 = vld [vmem:[%s3795 + $0x34] sm:$0xf]
      %v3810 = vld [vmem:[%s3795 + $0x38] sm:$0xf]
      %v3811 = vld [vmem:[%s3795 + $0x3c] sm:$0xf]
      %v3828 = vunpack.c.l.b16 %v3796
      %v3829 = vunpack.c.l.b16 %v3797
      %v3830 = vunpack.c.l.b16 %v3798
      %v3831 = vunpack.c.l.b16 %v3799
      %v3832 = vunpack.c.l.b16 %v3800
      %v3833 = vunpack.c.l.b16 %v3801
      %v3834 = vunpack.c.l.b16 %v3802
      %v3835 = vunpack.c.l.b16 %v3803
      %v3836 = vunpack.c.l.b16 %v3804
      %v3837 = vunpack.c.l.b16 %v3805
      %v3838 = vunpack.c.l.b16 %v3806
      %v3839 = vunpack.c.l.b16 %v3807
      %v3840 = vunpack.c.l.b16 %v3808
      %v3841 = vunpack.c.l.b16 %v3809
      %v3842 = vunpack.c.l.b16 %v3810
      %v3843 = vunpack.c.l.b16 %v3811
      %v3844 = vpack.c.b16 %v3829, %v3828
      %v3845 = vpack.c.b16 %v3831, %v3830
      %v3846 = vpack.c.b16 %v3833, %v3832
      %v3847 = vpack.c.b16 %v3835, %v3834
      %v3848 = vpack.c.b16 %v3837, %v3836
      %v3849 = vpack.c.b16 %v3839, %v3838
      %v3850 = vpack.c.b16 %v3841, %v3840
      %v3851 = vpack.c.b16 %v3843, %v3842
      %3860 = vmatprep.subr.bf16.mxu0 0
      %3861 = vmatpush1.bf16.msra.mxu0 %v3844
      %3862 = vmatprep.subr.bf16.mxu0 0
      %3863 = vmatpush1.bf16.msra.mxu0 %v3845
      %3864 = vmatprep.subr.bf16.mxu0 0
      %3865 = vmatpush1.bf16.msra.mxu0 %v3846
      %3866 = vmatprep.subr.bf16.mxu0 0
      %3867 = vmatpush1.bf16.msra.mxu0 %v3847
      %3868 = vmatprep.subr.bf16.mxu0 0
      %3869 = vmatpush1.bf16.msra.mxu0 %v3848
      %3870 = vmatprep.subr.bf16.mxu0 0
      %3871 = vmatpush1.bf16.msra.mxu0 %v3849
      %3872 = vmatprep.subr.bf16.mxu0 0
      %3873 = vmatpush1.bf16.msra.mxu0 %v3850
      %3874 = vmatprep.subr.bf16.mxu0 0
      %3875 = vmatpush1.bf16.msra.mxu0 %v3851
      %3876 = vmatprep.subr.bf16.mxu0 0
      %3877 = vmatpush1.bf16.msra.mxu0 0
      %3878 = vmatprep.subr.bf16.mxu0 0
      %3879 = vmatpush1.bf16.msra.mxu0 0
      %3880 = vmatprep.subr.bf16.mxu0 0
      %3881 = vmatpush1.bf16.msra.mxu0 0
      %3882 = vmatprep.subr.bf16.mxu0 0
      %3883 = vmatpush1.bf16.msra.mxu0 0
      %3884 = vmatprep.subr.bf16.mxu0 0
      %3885 = vmatpush1.bf16.msra.mxu0 0
      %3886 = vmatprep.subr.bf16.mxu0 0
      %3887 = vmatpush1.bf16.msra.mxu0 0
      %3888 = vmatprep.subr.bf16.mxu0 0
      %3889 = vmatpush1.bf16.msra.mxu0 0
      %3890 = vmatprep.subr.bf16.mxu0 0
      %3891 = vmatpush1.bf16.msra.mxu0 0
      %3892 = vmatprep.mubr.bf16.mxu0 0
      %3893 = vmatmul.mubr.bf16.gmra.mrb[0].mxu0 %v3791
      %v3894 = vpop.f32.mrb[0].mxu0
      %v3895 = vadd.f32 0.0, %v3894
      %v3896 = vpop.f32.mrb[0].mxu0
      %v3897 = vpop.f32.mrb[0].mxu0
      %v3898 = vadd.f32 0.0, %v3897
      %v3899 = vpop.f32.mrb[0].mxu0
      %3900 = vmatprep.mubr.bf16.mxu0 0
      %3901 = vmatmul.mubr.bf16.gmra.mrb[0].mxu0 %v3792
      %v3902 = vpop.f32.mrb[0].mxu0
      %v3903 = vadd.f32 0.0, %v3902
      %v3904 = vpop.f32.mrb[0].mxu0
      %v3905 = vpop.f32.mrb[0].mxu0
      %v3906 = vadd.f32 0.0, %v3905
      %v3907 = vpop.f32.mrb[0].mxu0
      %3908 = vmatprep.mubr.bf16.mxu0 0
      %3909 = vmatmul.mubr.bf16.gmra.mrb[0].mxu0 %v3793
      %v3910 = vpop.f32.mrb[0].mxu0
      %v3911 = vadd.f32 0.0, %v3910
      %v3912 = vpop.f32.mrb[0].mxu0
      %v3913 = vpop.f32.mrb[0].mxu0
      %v3914 = vadd.f32 0.0, %v3913
      %v3915 = vpop.f32.mrb[0].mxu0
      %3916 = vmatprep.mubr.bf16.mxu0 0
      %3917 = vmatmul.mubr.bf16.gmra.mrb[0].mxu0 %v3794
      %v3918 = vpop.f32.mrb[0].mxu0
      %v3919 = vadd.f32 0.0, %v3918
      %v3920 = vpop.f32.mrb[0].mxu0
      %v3921 = vpop.f32.mrb[0].mxu0
      %v3922 = vadd.f32 0.0, %v3921
      %v3923 = vpop.f32.mrb[0].mxu0
      %3924 = vdwg.mxu0
      %v3925 = vadd.f32 %v3655, %v3895
      %v3926 = vadd.f32 %v3658, %v3898
      %v3927 = vadd.f32 %v3663, %v3903
      %v3928 = vadd.f32 %v3666, %v3906
      %v3929 = vadd.f32 %v3671, %v3911
      %v3930 = vadd.f32 %v3674, %v3914
      %v3931 = vadd.f32 %v3679, %v3919
      %v3932 = vadd.f32 %v3682, %v3922
      %v3933 = vld [vmem:[%s13] sm:$0xff]
      %v3934 = vld [vmem:[%s13 + $0x8] sm:$0xff]
      %v3935 = vld [vmem:[%s13 + $0x10] sm:$0xff]
      %v3936 = vld [vmem:[%s13 + $0x18] sm:$0xff]
      %v3937 = vld [vmem:[%s13 + $0x20] sm:$0xff]
      %v3938 = vld [vmem:[%s13 + $0x28] sm:$0xff]
      %v3939 = vld [vmem:[%s13 + $0x30] sm:$0xff]
      %v3940 = vld [vmem:[%s13 + $0x38] sm:$0xff]
      %3942 = vset.pattern.permute.xlu0 0
      %3943 = vperm.xlu0 %3942, %v3933
      %v3944 = vpop.permute.xlu0 %3943
      %3947 = vset.pattern.permute.xlu0 0
      %3948 = vperm.xlu0 %3947, %v3934
      %v3949 = vpop.permute.xlu0 %3948
      %3952 = vset.pattern.permute.xlu0 0
      %3953 = vperm.xlu0 %3952, %v3935
      %v3954 = vpop.permute.xlu0 %3953
      %3957 = vset.pattern.permute.xlu0 0
      %3958 = vperm.xlu0 %3957, %v3936
      %v3959 = vpop.permute.xlu0 %3958
      %3962 = vset.pattern.permute.xlu0 0
      %3963 = vperm.xlu0 %3962, %v3937
      %v3964 = vpop.permute.xlu0 %3963
      %3967 = vset.pattern.permute.xlu0 0
      %3968 = vperm.xlu0 %3967, %v3938
      %v3969 = vpop.permute.xlu0 %3968
      %3972 = vset.pattern.permute.xlu0 0
      %3973 = vperm.xlu0 %3972, %v3939
      %v3974 = vpop.permute.xlu0 %3973
      %3977 = vset.pattern.permute.xlu0 0
      %3978 = vperm.xlu0 %3977, %v3940
      %v3979 = vpop.permute.xlu0 %3978
      %v3981 = vadd.f32 %v3925, %v3944
      %v3982 = vadd.f32 %v3926, %v3949
      %v3983 = vadd.f32 %v3927, %v3954
      %v3984 = vadd.f32 %v3928, %v3959
      %v3985 = vadd.f32 %v3929, %v3964
      %v3986 = vadd.f32 %v3930, %v3969
      %v3987 = vadd.f32 %v3931, %v3974
      %v3988 = vadd.f32 %v3932, %v3979
      %v3989 = vmul.f32 %v3981, %v3138
      %v3990 = vmul.f32 %v3982, %v3138
      %v3991 = vmul.f32 %v3983, %v3138
      %v3992 = vmul.f32 %v3984, %v3138
      %v3993 = vmul.f32 %v3985, %v3138
      %v3994 = vmul.f32 %v3986, %v3138
      %v3995 = vmul.f32 %v3987, %v3138
      %v3996 = vmul.f32 %v3988, %v3138
      %vm3997 = vcmp.ge.f32.partialorder %v3989, 0.0
      %vm3998 = vcmp.ge.f32.partialorder %v3990, 0.0
      %vm3999 = vcmp.ge.f32.partialorder %v3991, 0.0
      %vm4000 = vcmp.ge.f32.partialorder %v3992, 0.0
      %vm4001 = vcmp.ge.f32.partialorder %v3993, 0.0
      %vm4002 = vcmp.ge.f32.partialorder %v3994, 0.0
      %vm4003 = vcmp.ge.f32.partialorder %v3995, 0.0
      %vm4004 = vcmp.ge.f32.partialorder %v3996, 0.0
      %v4005 = vmul.f32 %v3989, 0.01
      %v4006 = vmul.f32 %v3990, 0.01
      %v4007 = vmul.f32 %v3991, 0.01
      %v4008 = vmul.f32 %v3992, 0.01
      %v4009 = vmul.f32 %v3993, 0.01
      %v4010 = vmul.f32 %v3994, 0.01
      %v4011 = vmul.f32 %v3995, 0.01
      %v4012 = vmul.f32 %v3996, 0.01
      %v4013 = vsel %vm3997, %v3989, %v4005
      %v4014 = vsel %vm3998, %v3990, %v4006
      %v4015 = vsel %vm3999, %v3991, %v4007
      %v4016 = vsel %vm4000, %v3992, %v4008
      %v4017 = vsel %vm4001, %v3993, %v4009
      %v4018 = vsel %vm4002, %v3994, %v4010
      %v4019 = vsel %vm4003, %v3995, %v4011
      %v4020 = vsel %vm4004, %v3996, %v4012
      %v4021 = vpack.c.bf16 %v4014, %v4013
      %v4022 = vpack.c.bf16 %v4016, %v4015
      %v4023 = vpack.c.bf16 %v4018, %v4017
      %v4024 = vpack.c.bf16 %v4020, %v4019
      %v4025 = vld [vmem:[%s14] sm:$0xf]
      %v4026 = vld [vmem:[%s14 + $0x4] sm:$0xf]
      %v4027 = vld [vmem:[%s14 + $0x8] sm:$0xf]
      %v4028 = vld [vmem:[%s14 + $0xc] sm:$0xf]
      %v4029 = vld [vmem:[%s14 + $0x10] sm:$0xf]
      %v4030 = vld [vmem:[%s14 + $0x14] sm:$0xf]
      %v4031 = vld [vmem:[%s14 + $0x18] sm:$0xf]
      %v4032 = vld [vmem:[%s14 + $0x1c] sm:$0xf]
      %v4041 = vunpack.c.l.b16 %v4025
      %v4042 = vunpack.c.l.b16 %v4026
      %v4043 = vunpack.c.l.b16 %v4027
      %v4044 = vunpack.c.l.b16 %v4028
      %v4045 = vunpack.c.l.b16 %v4029
      %v4046 = vunpack.c.l.b16 %v4030
      %v4047 = vunpack.c.l.b16 %v4031
      %v4048 = vunpack.c.l.b16 %v4032
      %v4049 = vpack.c.b16 %v4042, %v4041
      %v4050 = vpack.c.b16 %v4044, %v4043
      %v4051 = vpack.c.b16 %v4046, %v4045
      %v4052 = vpack.c.b16 %v4048, %v4047
      %v4054 = vsel %vm2642, %v4049, 0
      %v4057 = vsel %vm2642, %v4050, 0
      %v4060 = vsel %vm2642, %v4051, 0
      %v4063 = vsel %vm2642, %v4052, 0
      %4065 = vmatprep.subr.bf16.mxu0 0
      %4066 = vmatpush1.bf16.msra.mxu0 %v4021
      %4067 = vmatprep.subr.bf16.mxu0 0
      %4068 = vmatpush1.bf16.msra.mxu0 %v4022
      %4069 = vmatprep.subr.bf16.mxu0 0
      %4070 = vmatpush1.bf16.msra.mxu0 %v4023
      %4071 = vmatprep.subr.bf16.mxu0 0
      %4072 = vmatpush1.bf16.msra.mxu0 %v4024
      %4073 = vmatprep.subr.bf16.mxu0 0
      %4074 = vmatpush1.bf16.msra.mxu0 0
      %4075 = vmatprep.subr.bf16.mxu0 0
      %4076 = vmatpush1.bf16.msra.mxu0 0
      %4077 = vmatprep.subr.bf16.mxu0 0
      %4078 = vmatpush1.bf16.msra.mxu0 0
      %4079 = vmatprep.subr.bf16.mxu0 0
      %4080 = vmatpush1.bf16.msra.mxu0 0
      %4081 = vmatprep.subr.bf16.mxu0 0
      %4082 = vmatpush1.bf16.msra.mxu0 0
      %4083 = vmatprep.subr.bf16.mxu0 0
      %4084 = vmatpush1.bf16.msra.mxu0 0
      %4085 = vmatprep.subr.bf16.mxu0 0
      %4086 = vmatpush1.bf16.msra.mxu0 0
      %4087 = vmatprep.subr.bf16.mxu0 0
      %4088 = vmatpush1.bf16.msra.mxu0 0
      %4089 = vmatprep.subr.bf16.mxu0 0
      %4090 = vmatpush1.bf16.msra.mxu0 0
      %4091 = vmatprep.subr.bf16.mxu0 0
      %4092 = vmatpush1.bf16.msra.mxu0 0
      %4093 = vmatprep.subr.bf16.mxu0 0
      %4094 = vmatpush1.bf16.msra.mxu0 0
      %4095 = vmatprep.subr.bf16.mxu0 0
      %4096 = vmatpush1.bf16.msra.mxu0 0
      %4097 = vmatprep.mubr.bf16.mxu0 0
      %4098 = vmatmul.mubr.bf16.gmra.mrb[0].mxu0 %v4054
      %v4099 = vpop.f32.mrb[0].mxu0
      %v4100 = vadd.f32 0.0, %v4099
      %v4101 = vpop.f32.mrb[0].mxu0
      %v4102 = vpop.f32.mrb[0].mxu0
      %v4103 = vadd.f32 0.0, %v4102
      %v4104 = vpop.f32.mrb[0].mxu0
      %4105 = vmatprep.mubr.bf16.mxu0 0
      %4106 = vmatmul.mubr.bf16.gmra.mrb[0].mxu0 %v4057
      %v4107 = vpop.f32.mrb[0].mxu0
      %v4108 = vadd.f32 0.0, %v4107
      %v4109 = vpop.f32.mrb[0].mxu0
      %v4110 = vpop.f32.mrb[0].mxu0
      %v4111 = vadd.f32 0.0, %v4110
      %v4112 = vpop.f32.mrb[0].mxu0
      %4113 = vmatprep.mubr.bf16.mxu0 0
      %4114 = vmatmul.mubr.bf16.gmra.mrb[0].mxu0 %v4060
      %v4115 = vpop.f32.mrb[0].mxu0
      %v4116 = vadd.f32 0.0, %v4115
      %v4117 = vpop.f32.mrb[0].mxu0
      %v4118 = vpop.f32.mrb[0].mxu0
      %v4119 = vadd.f32 0.0, %v4118
      %v4120 = vpop.f32.mrb[0].mxu0
      %4121 = vmatprep.mubr.bf16.mxu0 0
      %4122 = vmatmul.mubr.bf16.gmra.mrb[0].mxu0 %v4063
      %v4123 = vpop.f32.mrb[0].mxu0
      %v4124 = vadd.f32 0.0, %v4123
      %v4125 = vpop.f32.mrb[0].mxu0
      %v4126 = vpop.f32.mrb[0].mxu0
      %v4127 = vadd.f32 0.0, %v4126
      %v4128 = vpop.f32.mrb[0].mxu0
      %4129 = vdwg.mxu0
      %v4130 = vpack.c.bf16 %v4103, %v4100
      %v4131 = vpack.c.bf16 %v4111, %v4108
      %v4132 = vpack.c.bf16 %v4119, %v4116
      %v4133 = vpack.c.bf16 %v4127, %v4124
      %s4134 = scalar_lea.vmem %s14, 32
      %v4135 = vld [vmem:[%s4134] sm:$0xf]
      %v4136 = vld [vmem:[%s4134 + $0x4] sm:$0xf]
      %v4137 = vld [vmem:[%s4134 + $0x8] sm:$0xf]
      %v4138 = vld [vmem:[%s4134 + $0xc] sm:$0xf]
      %v4139 = vld [vmem:[%s4134 + $0x10] sm:$0xf]
      %v4140 = vld [vmem:[%s4134 + $0x14] sm:$0xf]
      %v4141 = vld [vmem:[%s4134 + $0x18] sm:$0xf]
      %v4142 = vld [vmem:[%s4134 + $0x1c] sm:$0xf]
      %v4151 = vunpack.c.l.b16 %v4135
      %v4152 = vunpack.c.l.b16 %v4136
      %v4153 = vunpack.c.l.b16 %v4137
      %v4154 = vunpack.c.l.b16 %v4138
      %v4155 = vunpack.c.l.b16 %v4139
      %v4156 = vunpack.c.l.b16 %v4140
      %v4157 = vunpack.c.l.b16 %v4141
      %v4158 = vunpack.c.l.b16 %v4142
      %v4159 = vpack.c.b16 %v4152, %v4151
      %v4160 = vpack.c.b16 %v4154, %v4153
      %v4161 = vpack.c.b16 %v4156, %v4155
      %v4162 = vpack.c.b16 %v4158, %v4157
      %v4164 = vsel %vm2642, %v4159, 0
      %v4167 = vsel %vm2642, %v4160, 0
      %v4170 = vsel %vm2642, %v4161, 0
      %v4173 = vsel %vm2642, %v4162, 0
      %4175 = vmatprep.subr.bf16.mxu0 0
      %4176 = vmatpush1.bf16.msra.mxu0 %v4021
      %4177 = vmatprep.subr.bf16.mxu0 0
      %4178 = vmatpush1.bf16.msra.mxu0 %v4022
      %4179 = vmatprep.subr.bf16.mxu0 0
      %4180 = vmatpush1.bf16.msra.mxu0 %v4023
      %4181 = vmatprep.subr.bf16.mxu0 0
      %4182 = vmatpush1.bf16.msra.mxu0 %v4024
      %4183 = vmatprep.subr.bf16.mxu0 0
      %4184 = vmatpush1.bf16.msra.mxu0 0
      %4185 = vmatprep.subr.bf16.mxu0 0
      %4186 = vmatpush1.bf16.msra.mxu0 0
      %4187 = vmatprep.subr.bf16.mxu0 0
      %4188 = vmatpush1.bf16.msra.mxu0 0
      %4189 = vmatprep.subr.bf16.mxu0 0
      %4190 = vmatpush1.bf16.msra.mxu0 0
      %4191 = vmatprep.subr.bf16.mxu0 0
      %4192 = vmatpush1.bf16.msra.mxu0 0
      %4193 = vmatprep.subr.bf16.mxu0 0
      %4194 = vmatpush1.bf16.msra.mxu0 0
      %4195 = vmatprep.subr.bf16.mxu0 0
      %4196 = vmatpush1.bf16.msra.mxu0 0
      %4197 = vmatprep.subr.bf16.mxu0 0
      %4198 = vmatpush1.bf16.msra.mxu0 0
      %4199 = vmatprep.subr.bf16.mxu0 0
      %4200 = vmatpush1.bf16.msra.mxu0 0
      %4201 = vmatprep.subr.bf16.mxu0 0
      %4202 = vmatpush1.bf16.msra.mxu0 0
      %4203 = vmatprep.subr.bf16.mxu0 0
      %4204 = vmatpush1.bf16.msra.mxu0 0
      %4205 = vmatprep.subr.bf16.mxu0 0
      %4206 = vmatpush1.bf16.msra.mxu0 0
      %4207 = vmatprep.mubr.bf16.mxu0 0
      %4208 = vmatmul.mubr.bf16.gmra.mrb[0].mxu0 %v4164
      %v4209 = vpop.f32.mrb[0].mxu0
      %v4210 = vadd.f32 0.0, %v4209
      %v4211 = vpop.f32.mrb[0].mxu0
      %v4212 = vpop.f32.mrb[0].mxu0
      %v4213 = vadd.f32 0.0, %v4212
      %v4214 = vpop.f32.mrb[0].mxu0
      %4215 = vmatprep.mubr.bf16.mxu0 0
      %4216 = vmatmul.mubr.bf16.gmra.mrb[0].mxu0 %v4167
      %v4217 = vpop.f32.mrb[0].mxu0
      %v4218 = vadd.f32 0.0, %v4217
      %v4219 = vpop.f32.mrb[0].mxu0
      %v4220 = vpop.f32.mrb[0].mxu0
      %v4221 = vadd.f32 0.0, %v4220
      %v4222 = vpop.f32.mrb[0].mxu0
      %4223 = vmatprep.mubr.bf16.mxu0 0
      %4224 = vmatmul.mubr.bf16.gmra.mrb[0].mxu0 %v4170
      %v4225 = vpop.f32.mrb[0].mxu0
      %v4226 = vadd.f32 0.0, %v4225
      %v4227 = vpop.f32.mrb[0].mxu0
      %v4228 = vpop.f32.mrb[0].mxu0
      %v4229 = vadd.f32 0.0, %v4228
      %v4230 = vpop.f32.mrb[0].mxu0
      %4231 = vmatprep.mubr.bf16.mxu0 0
      %4232 = vmatmul.mubr.bf16.gmra.mrb[0].mxu0 %v4173
      %v4233 = vpop.f32.mrb[0].mxu0
      %v4234 = vadd.f32 0.0, %v4233
      %v4235 = vpop.f32.mrb[0].mxu0
      %v4236 = vpop.f32.mrb[0].mxu0
      %v4237 = vadd.f32 0.0, %v4236
      %v4238 = vpop.f32.mrb[0].mxu0
      %4239 = vdwg.mxu0
      %4240 = vmatprep.subr.bf16.mxu0 0
      %4241 = vmatpush1.bf16.msra.mxu0 %v946
      %4242 = vmatprep.subr.bf16.mxu0 0
      %4243 = vmatpush1.bf16.msra.mxu0 %v947
      %4244 = vmatprep.subr.bf16.mxu0 0
      %4245 = vmatpush1.bf16.msra.mxu0 %v948
      %4246 = vmatprep.subr.bf16.mxu0 0
      %4247 = vmatpush1.bf16.msra.mxu0 %v949
      %4248 = vmatprep.subr.bf16.mxu0 0
      %4249 = vmatpush1.bf16.msra.mxu0 %v950
      %4250 = vmatprep.subr.bf16.mxu0 0
      %4251 = vmatpush1.bf16.msra.mxu0 %v951
      %4252 = vmatprep.subr.bf16.mxu0 0
      %4253 = vmatpush1.bf16.msra.mxu0 %v952
      %4254 = vmatprep.subr.bf16.mxu0 0
      %4255 = vmatpush1.bf16.msra.mxu0 %v953
      %4256 = vmatprep.subr.bf16.mxu0 0
      %4257 = vmatpush1.bf16.msra.mxu0 0
      %4258 = vmatprep.subr.bf16.mxu0 0
      %4259 = vmatpush1.bf16.msra.mxu0 0
      %4260 = vmatprep.subr.bf16.mxu0 0
      %4261 = vmatpush1.bf16.msra.mxu0 0
      %4262 = vmatprep.subr.bf16.mxu0 0
      %4263 = vmatpush1.bf16.msra.mxu0 0
      %4264 = vmatprep.subr.bf16.mxu0 0
      %4265 = vmatpush1.bf16.msra.mxu0 0
      %4266 = vmatprep.subr.bf16.mxu0 0
      %4267 = vmatpush1.bf16.msra.mxu0 0
      %4268 = vmatprep.subr.bf16.mxu0 0
      %4269 = vmatpush1.bf16.msra.mxu0 0
      %4270 = vmatprep.subr.bf16.mxu0 0
      %4271 = vmatpush1.bf16.msra.mxu0 0
      %4272 = vmatprep.mubr.bf16.mxu0 0
      %4273 = vmatmul.mubr.bf16.gmra.mrb[0].mxu0 %v4130
      %v4274 = vpop.f32.mrb[0].mxu0
      %v4275 = vadd.f32 %v4210, %v4274
      %v4276 = vpop.f32.mrb[0].mxu0
      %v4277 = vpop.f32.mrb[0].mxu0
      %v4278 = vadd.f32 %v4213, %v4277
      %v4279 = vpop.f32.mrb[0].mxu0
      %4280 = vmatprep.mubr.bf16.mxu0 0
      %4281 = vmatmul.mubr.bf16.gmra.mrb[0].mxu0 %v4131
      %v4282 = vpop.f32.mrb[0].mxu0
      %v4283 = vadd.f32 %v4218, %v4282
      %v4284 = vpop.f32.mrb[0].mxu0
      %v4285 = vpop.f32.mrb[0].mxu0
      %v4286 = vadd.f32 %v4221, %v4285
      %v4287 = vpop.f32.mrb[0].mxu0
      %4288 = vmatprep.mubr.bf16.mxu0 0
      %4289 = vmatmul.mubr.bf16.gmra.mrb[0].mxu0 %v4132
      %v4290 = vpop.f32.mrb[0].mxu0
      %v4291 = vadd.f32 %v4226, %v4290
      %v4292 = vpop.f32.mrb[0].mxu0
      %v4293 = vpop.f32.mrb[0].mxu0
      %v4294 = vadd.f32 %v4229, %v4293
      %v4295 = vpop.f32.mrb[0].mxu0
      %4296 = vmatprep.mubr.bf16.mxu0 0
      %4297 = vmatmul.mubr.bf16.gmra.mrb[0].mxu0 %v4133
      %v4298 = vpop.f32.mrb[0].mxu0
      %v4299 = vadd.f32 %v4234, %v4298
      %v4300 = vpop.f32.mrb[0].mxu0
      %v4301 = vpop.f32.mrb[0].mxu0
      %v4302 = vadd.f32 %v4237, %v4301
      %v4303 = vpop.f32.mrb[0].mxu0
      %4304 = vdwg.mxu0
      %s4305 = scalar_lea.vmem %s14, 64
      %v4306 = vld [vmem:[%s4305] sm:$0xf]
      %v4307 = vld [vmem:[%s4305 + $0x4] sm:$0xf]
      %v4308 = vld [vmem:[%s4305 + $0x8] sm:$0xf]
      %v4309 = vld [vmem:[%s4305 + $0xc] sm:$0xf]
      %v4310 = vld [vmem:[%s4305 + $0x10] sm:$0xf]
      %v4311 = vld [vmem:[%s4305 + $0x14] sm:$0xf]
      %v4312 = vld [vmem:[%s4305 + $0x18] sm:$0xf]
      %v4313 = vld [vmem:[%s4305 + $0x1c] sm:$0xf]
      %v4322 = vunpack.c.l.b16 %v4306
      %v4323 = vunpack.c.l.b16 %v4307
      %v4324 = vunpack.c.l.b16 %v4308
      %v4325 = vunpack.c.l.b16 %v4309
      %v4326 = vunpack.c.l.b16 %v4310
      %v4327 = vunpack.c.l.b16 %v4311
      %v4328 = vunpack.c.l.b16 %v4312
      %v4329 = vunpack.c.l.b16 %v4313
      %v4330 = vpack.c.b16 %v4323, %v4322
      %v4331 = vpack.c.b16 %v4325, %v4324
      %v4332 = vpack.c.b16 %v4327, %v4326
      %v4333 = vpack.c.b16 %v4329, %v4328
      %v4335 = vsel %vm2642, %v4330, 0
      %v4338 = vsel %vm2642, %v4331, 0
      %v4341 = vsel %vm2642, %v4332, 0
      %v4344 = vsel %vm2642, %v4333, 0
      %4346 = vmatprep.subr.bf16.mxu0 0
      %4347 = vmatpush1.bf16.msra.mxu0 %v4021
      %4348 = vmatprep.subr.bf16.mxu0 0
      %4349 = vmatpush1.bf16.msra.mxu0 %v4022
      %4350 = vmatprep.subr.bf16.mxu0 0
      %4351 = vmatpush1.bf16.msra.mxu0 %v4023
      %4352 = vmatprep.subr.bf16.mxu0 0
      %4353 = vmatpush1.bf16.msra.mxu0 %v4024
      %4354 = vmatprep.subr.bf16.mxu0 0
      %4355 = vmatpush1.bf16.msra.mxu0 0
      %4356 = vmatprep.subr.bf16.mxu0 0
      %4357 = vmatpush1.bf16.msra.mxu0 0
      %4358 = vmatprep.subr.bf16.mxu0 0
      %4359 = vmatpush1.bf16.msra.mxu0 0
      %4360 = vmatprep.subr.bf16.mxu0 0
      %4361 = vmatpush1.bf16.msra.mxu0 0
      %4362 = vmatprep.subr.bf16.mxu0 0
      %4363 = vmatpush1.bf16.msra.mxu0 0
      %4364 = vmatprep.subr.bf16.mxu0 0
      %4365 = vmatpush1.bf16.msra.mxu0 0
      %4366 = vmatprep.subr.bf16.mxu0 0
      %4367 = vmatpush1.bf16.msra.mxu0 0
      %4368 = vmatprep.subr.bf16.mxu0 0
      %4369 = vmatpush1.bf16.msra.mxu0 0
      %4370 = vmatprep.subr.bf16.mxu0 0
      %4371 = vmatpush1.bf16.msra.mxu0 0
      %4372 = vmatprep.subr.bf16.mxu0 0
      %4373 = vmatpush1.bf16.msra.mxu0 0
      %4374 = vmatprep.subr.bf16.mxu0 0
      %4375 = vmatpush1.bf16.msra.mxu0 0
      %4376 = vmatprep.subr.bf16.mxu0 0
      %4377 = vmatpush1.bf16.msra.mxu0 0
      %4378 = vmatprep.mubr.bf16.mxu0 0
      %4379 = vmatmul.mubr.bf16.gmra.mrb[0].mxu0 %v4335
      %v4380 = vpop.f32.mrb[0].mxu0
      %v4381 = vadd.f32 0.0, %v4380
      %v4382 = vpop.f32.mrb[0].mxu0
      %v4383 = vpop.f32.mrb[0].mxu0
      %v4384 = vadd.f32 0.0, %v4383
      %v4385 = vpop.f32.mrb[0].mxu0
      %4386 = vmatprep.mubr.bf16.mxu0 0
      %4387 = vmatmul.mubr.bf16.gmra.mrb[0].mxu0 %v4338
      %v4388 = vpop.f32.mrb[0].mxu0
      %v4389 = vadd.f32 0.0, %v4388
      %v4390 = vpop.f32.mrb[0].mxu0
      %v4391 = vpop.f32.mrb[0].mxu0
      %v4392 = vadd.f32 0.0, %v4391
      %v4393 = vpop.f32.mrb[0].mxu0
      %4394 = vmatprep.mubr.bf16.mxu0 0
      %4395 = vmatmul.mubr.bf16.gmra.mrb[0].mxu0 %v4341
      %v4396 = vpop.f32.mrb[0].mxu0
      %v4397 = vadd.f32 0.0, %v4396
      %v4398 = vpop.f32.mrb[0].mxu0
      %v4399 = vpop.f32.mrb[0].mxu0
      %v4400 = vadd.f32 0.0, %v4399
      %v4401 = vpop.f32.mrb[0].mxu0
      %4402 = vmatprep.mubr.bf16.mxu0 0
      %4403 = vmatmul.mubr.bf16.gmra.mrb[0].mxu0 %v4344
      %v4404 = vpop.f32.mrb[0].mxu0
      %v4405 = vadd.f32 0.0, %v4404
      %v4406 = vpop.f32.mrb[0].mxu0
      %v4407 = vpop.f32.mrb[0].mxu0
      %v4408 = vadd.f32 0.0, %v4407
      %v4409 = vpop.f32.mrb[0].mxu0
      %4410 = vdwg.mxu0
      %v4411 = vpack.c.bf16 %v4384, %v4381
      %v4412 = vpack.c.bf16 %v4392, %v4389
      %v4413 = vpack.c.bf16 %v4400, %v4397
      %v4414 = vpack.c.bf16 %v4408, %v4405
      %4415 = vmatprep.subr.bf16.mxu0 0
      %4416 = vmatpush1.bf16.msra.mxu0 %v1132
      %4417 = vmatprep.subr.bf16.mxu0 0
      %4418 = vmatpush1.bf16.msra.mxu0 %v1133
      %4419 = vmatprep.subr.bf16.mxu0 0
      %4420 = vmatpush1.bf16.msra.mxu0 %v1134
      %4421 = vmatprep.subr.bf16.mxu0 0
      %4422 = vmatpush1.bf16.msra.mxu0 %v1135
      %4423 = vmatprep.subr.bf16.mxu0 0
      %4424 = vmatpush1.bf16.msra.mxu0 %v1136
      %4425 = vmatprep.subr.bf16.mxu0 0
      %4426 = vmatpush1.bf16.msra.mxu0 %v1137
      %4427 = vmatprep.subr.bf16.mxu0 0
      %4428 = vmatpush1.bf16.msra.mxu0 %v1138
      %4429 = vmatprep.subr.bf16.mxu0 0
      %4430 = vmatpush1.bf16.msra.mxu0 %v1139
      %4431 = vmatprep.subr.bf16.mxu0 0
      %4432 = vmatpush1.bf16.msra.mxu0 0
      %4433 = vmatprep.subr.bf16.mxu0 0
      %4434 = vmatpush1.bf16.msra.mxu0 0
      %4435 = vmatprep.subr.bf16.mxu0 0
      %4436 = vmatpush1.bf16.msra.mxu0 0
      %4437 = vmatprep.subr.bf16.mxu0 0
      %4438 = vmatpush1.bf16.msra.mxu0 0
      %4439 = vmatprep.subr.bf16.mxu0 0
      %4440 = vmatpush1.bf16.msra.mxu0 0
      %4441 = vmatprep.subr.bf16.mxu0 0
      %4442 = vmatpush1.bf16.msra.mxu0 0
      %4443 = vmatprep.subr.bf16.mxu0 0
      %4444 = vmatpush1.bf16.msra.mxu0 0
      %4445 = vmatprep.subr.bf16.mxu0 0
      %4446 = vmatpush1.bf16.msra.mxu0 0
      %4447 = vmatprep.mubr.bf16.mxu0 0
      %4448 = vmatmul.mubr.bf16.gmra.mrb[0].mxu0 %v4411
      %v4449 = vpop.f32.mrb[0].mxu0
      %v4450 = vadd.f32 0.0, %v4449
      %v4451 = vpop.f32.mrb[0].mxu0
      %v4452 = vpop.f32.mrb[0].mxu0
      %v4453 = vadd.f32 0.0, %v4452
      %v4454 = vpop.f32.mrb[0].mxu0
      %4455 = vmatprep.mubr.bf16.mxu0 0
      %4456 = vmatmul.mubr.bf16.gmra.mrb[0].mxu0 %v4412
      %v4457 = vpop.f32.mrb[0].mxu0
      %v4458 = vadd.f32 0.0, %v4457
      %v4459 = vpop.f32.mrb[0].mxu0
      %v4460 = vpop.f32.mrb[0].mxu0
      %v4461 = vadd.f32 0.0, %v4460
      %v4462 = vpop.f32.mrb[0].mxu0
      %4463 = vmatprep.mubr.bf16.mxu0 0
      %4464 = vmatmul.mubr.bf16.gmra.mrb[0].mxu0 %v4413
      %v4465 = vpop.f32.mrb[0].mxu0
      %v4466 = vadd.f32 0.0, %v4465
      %v4467 = vpop.f32.mrb[0].mxu0
      %v4468 = vpop.f32.mrb[0].mxu0
      %v4469 = vadd.f32 0.0, %v4468
      %v4470 = vpop.f32.mrb[0].mxu0
      %4471 = vmatprep.mubr.bf16.mxu0 0
      %4472 = vmatmul.mubr.bf16.gmra.mrb[0].mxu0 %v4414
      %v4473 = vpop.f32.mrb[0].mxu0
      %v4474 = vadd.f32 0.0, %v4473
      %v4475 = vpop.f32.mrb[0].mxu0
      %v4476 = vpop.f32.mrb[0].mxu0
      %v4477 = vadd.f32 0.0, %v4476
      %v4478 = vpop.f32.mrb[0].mxu0
      %4479 = vdwg.mxu0
      %v4480 = vadd.f32 %v4275, %v4450
      %v4481 = vadd.f32 %v4278, %v4453
      %v4482 = vadd.f32 %v4283, %v4458
      %v4483 = vadd.f32 %v4286, %v4461
      %v4484 = vadd.f32 %v4291, %v4466
      %v4485 = vadd.f32 %v4294, %v4469
      %v4486 = vadd.f32 %v4299, %v4474
      %v4487 = vadd.f32 %v4302, %v4477
      %v4488 = vld [vmem:[%s15] sm:$0xff]
      %v4489 = vld [vmem:[%s15 + $0x8] sm:$0xff]
      %v4490 = vld [vmem:[%s15 + $0x10] sm:$0xff]
      %v4491 = vld [vmem:[%s15 + $0x18] sm:$0xff]
      %v4492 = vld [vmem:[%s15 + $0x20] sm:$0xff]
      %v4493 = vld [vmem:[%s15 + $0x28] sm:$0xff]
      %v4494 = vld [vmem:[%s15 + $0x30] sm:$0xff]
      %v4495 = vld [vmem:[%s15 + $0x38] sm:$0xff]
      %4497 = vset.pattern.permute.xlu0 0
      %4498 = vperm.xlu0 %4497, %v4488
      %v4499 = vpop.permute.xlu0 %4498
      %4502 = vset.pattern.permute.xlu0 0
      %4503 = vperm.xlu0 %4502, %v4489
      %v4504 = vpop.permute.xlu0 %4503
      %4507 = vset.pattern.permute.xlu0 0
      %4508 = vperm.xlu0 %4507, %v4490
      %v4509 = vpop.permute.xlu0 %4508
      %4512 = vset.pattern.permute.xlu0 0
      %4513 = vperm.xlu0 %4512, %v4491
      %v4514 = vpop.permute.xlu0 %4513
      %4517 = vset.pattern.permute.xlu0 0
      %4518 = vperm.xlu0 %4517, %v4492
      %v4519 = vpop.permute.xlu0 %4518
      %4522 = vset.pattern.permute.xlu0 0
      %4523 = vperm.xlu0 %4522, %v4493
      %v4524 = vpop.permute.xlu0 %4523
      %4527 = vset.pattern.permute.xlu0 0
      %4528 = vperm.xlu0 %4527, %v4494
      %v4529 = vpop.permute.xlu0 %4528
      %4532 = vset.pattern.permute.xlu0 0
      %4533 = vperm.xlu0 %4532, %v4495
      %v4534 = vpop.permute.xlu0 %4533
      %v4536 = vadd.f32 %v4480, %v4499
      %v4537 = vadd.f32 %v4481, %v4504
      %v4538 = vadd.f32 %v4482, %v4509
      %v4539 = vadd.f32 %v4483, %v4514
      %v4540 = vadd.f32 %v4484, %v4519
      %v4541 = vadd.f32 %v4485, %v4524
      %v4542 = vadd.f32 %v4486, %v4529
      %v4543 = vadd.f32 %v4487, %v4534
      %v4544 = vmul.f32 %v4536, %v3138
      %v4545 = vmul.f32 %v4537, %v3138
      %v4546 = vmul.f32 %v4538, %v3138
      %v4547 = vmul.f32 %v4539, %v3138
      %v4548 = vmul.f32 %v4540, %v3138
      %v4549 = vmul.f32 %v4541, %v3138
      %v4550 = vmul.f32 %v4542, %v3138
      %v4551 = vmul.f32 %v4543, %v3138
      %vm4552 = vcmp.ge.f32.partialorder %v4544, 0.0
      %vm4553 = vcmp.ge.f32.partialorder %v4545, 0.0
      %vm4554 = vcmp.ge.f32.partialorder %v4546, 0.0
      %vm4555 = vcmp.ge.f32.partialorder %v4547, 0.0
      %vm4556 = vcmp.ge.f32.partialorder %v4548, 0.0
      %vm4557 = vcmp.ge.f32.partialorder %v4549, 0.0
      %vm4558 = vcmp.ge.f32.partialorder %v4550, 0.0
      %vm4559 = vcmp.ge.f32.partialorder %v4551, 0.0
      %v4560 = vmul.f32 %v4544, 0.01
      %v4561 = vmul.f32 %v4545, 0.01
      %v4562 = vmul.f32 %v4546, 0.01
      %v4563 = vmul.f32 %v4547, 0.01
      %v4564 = vmul.f32 %v4548, 0.01
      %v4565 = vmul.f32 %v4549, 0.01
      %v4566 = vmul.f32 %v4550, 0.01
      %v4567 = vmul.f32 %v4551, 0.01
      %v4568 = vsel %vm4552, %v4544, %v4560
      %v4569 = vsel %vm4553, %v4545, %v4561
      %v4570 = vsel %vm4554, %v4546, %v4562
      %v4571 = vsel %vm4555, %v4547, %v4563
      %v4572 = vsel %vm4556, %v4548, %v4564
      %v4573 = vsel %vm4557, %v4549, %v4565
      %v4574 = vsel %vm4558, %v4550, %v4566
      %v4575 = vsel %vm4559, %v4551, %v4567
      %v4576 = vld [vmem:[%s16] sm:$0xf]
      %v4577 = vld [vmem:[%s16 + $0x4] sm:$0xf]
      %v4578 = vld [vmem:[%s16 + $0x8] sm:$0xf]
      %v4579 = vld [vmem:[%s16 + $0xc] sm:$0xf]
      %v4580 = vld [vmem:[%s16 + $0x10] sm:$0xf]
      %v4581 = vld [vmem:[%s16 + $0x14] sm:$0xf]
      %v4582 = vld [vmem:[%s16 + $0x18] sm:$0xf]
      %v4583 = vld [vmem:[%s16 + $0x1c] sm:$0xf]
      %v4592 = vunpack.c.l.b16 %v4576
      %v4593 = vunpack.c.l.b16 %v4577
      %v4594 = vunpack.c.l.b16 %v4578
      %v4595 = vunpack.c.l.b16 %v4579
      %v4596 = vunpack.c.l.b16 %v4580
      %v4597 = vunpack.c.l.b16 %v4581
      %v4598 = vunpack.c.l.b16 %v4582
      %v4599 = vunpack.c.l.b16 %v4583
      %v4600 = vpack.c.b16 %v4593, %v4592
      %v4601 = vpack.c.b16 %v4595, %v4594
      %v4602 = vpack.c.b16 %v4597, %v4596
      %v4603 = vpack.c.b16 %v4599, %v4598
      %v4605 = vsel %vm770, %v4600, 0
      %v4608 = vsel %vm770, %v4601, 0
      %v4611 = vsel %vm770, %v4602, 0
      %v4614 = vsel %vm770, %v4603, 0
      %4616 = vmatprep.subr.bf16.mxu0 0
      %4617 = vmatpush1.bf16.msra.mxu0 %v766
      %4618 = vmatprep.subr.bf16.mxu0 0
      %4619 = vmatpush1.bf16.msra.mxu0 %v767
      %4620 = vmatprep.subr.bf16.mxu0 0
      %4621 = vmatpush1.bf16.msra.mxu0 0
      %4622 = vmatprep.subr.bf16.mxu0 0
      %4623 = vmatpush1.bf16.msra.mxu0 0
      %4624 = vmatprep.subr.bf16.mxu0 0
      %4625 = vmatpush1.bf16.msra.mxu0 0
      %4626 = vmatprep.subr.bf16.mxu0 0
      %4627 = vmatpush1.bf16.msra.mxu0 0
      %4628 = vmatprep.subr.bf16.mxu0 0
      %4629 = vmatpush1.bf16.msra.mxu0 0
      %4630 = vmatprep.subr.bf16.mxu0 0
      %4631 = vmatpush1.bf16.msra.mxu0 0
      %4632 = vmatprep.subr.bf16.mxu0 0
      %4633 = vmatpush1.bf16.msra.mxu0 0
      %4634 = vmatprep.subr.bf16.mxu0 0
      %4635 = vmatpush1.bf16.msra.mxu0 0
      %4636 = vmatprep.subr.bf16.mxu0 0
      %4637 = vmatpush1.bf16.msra.mxu0 0
      %4638 = vmatprep.subr.bf16.mxu0 0
      %4639 = vmatpush1.bf16.msra.mxu0 0
      %4640 = vmatprep.subr.bf16.mxu0 0
      %4641 = vmatpush1.bf16.msra.mxu0 0
      %4642 = vmatprep.subr.bf16.mxu0 0
      %4643 = vmatpush1.bf16.msra.mxu0 0
      %4644 = vmatprep.subr.bf16.mxu0 0
      %4645 = vmatpush1.bf16.msra.mxu0 0
      %4646 = vmatprep.subr.bf16.mxu0 0
      %4647 = vmatpush1.bf16.msra.mxu0 0
      %4648 = vmatprep.mubr.bf16.mxu0 0
      %4649 = vmatmul.mubr.bf16.gmra.mrb[0].mxu0 %v4605
      %v4650 = vpop.f32.mrb[0].mxu0
      %v4651 = vadd.f32 0.0, %v4650
      %v4652 = vpop.f32.mrb[0].mxu0
      %v4653 = vpop.f32.mrb[0].mxu0
      %v4654 = vadd.f32 0.0, %v4653
      %v4655 = vpop.f32.mrb[0].mxu0
      %4656 = vmatprep.mubr.bf16.mxu0 0
      %4657 = vmatmul.mubr.bf16.gmra.mrb[0].mxu0 %v4608
      %v4658 = vpop.f32.mrb[0].mxu0
      %v4659 = vadd.f32 0.0, %v4658
      %v4660 = vpop.f32.mrb[0].mxu0
      %v4661 = vpop.f32.mrb[0].mxu0
      %v4662 = vadd.f32 0.0, %v4661
      %v4663 = vpop.f32.mrb[0].mxu0
      %4664 = vmatprep.mubr.bf16.mxu0 0
      %4665 = vmatmul.mubr.bf16.gmra.mrb[0].mxu0 %v4611
      %v4666 = vpop.f32.mrb[0].mxu0
      %v4667 = vadd.f32 0.0, %v4666
      %v4668 = vpop.f32.mrb[0].mxu0
      %v4669 = vpop.f32.mrb[0].mxu0
      %v4670 = vadd.f32 0.0, %v4669
      %v4671 = vpop.f32.mrb[0].mxu0
      %4672 = vmatprep.mubr.bf16.mxu0 0
      %4673 = vmatmul.mubr.bf16.gmra.mrb[0].mxu0 %v4614
      %v4674 = vpop.f32.mrb[0].mxu0
      %v4675 = vadd.f32 0.0, %v4674
      %v4676 = vpop.f32.mrb[0].mxu0
      %v4677 = vpop.f32.mrb[0].mxu0
      %v4678 = vadd.f32 0.0, %v4677
      %v4679 = vpop.f32.mrb[0].mxu0
      %4680 = vdwg.mxu0
      %v4681 = vpack.c.bf16 %v4654, %v4651
      %v4682 = vpack.c.bf16 %v4662, %v4659
      %v4683 = vpack.c.bf16 %v4670, %v4667
      %v4684 = vpack.c.bf16 %v4678, %v4675
      %v4685 = vld [vmem:[%s17] sm:$0xf]
      %v4686 = vld [vmem:[%s17 + $0x4] sm:$0xf]
      %v4687 = vld [vmem:[%s17 + $0x8] sm:$0xf]
      %v4688 = vld [vmem:[%s17 + $0xc] sm:$0xf]
      %v4689 = vld [vmem:[%s17 + $0x10] sm:$0xf]
      %v4690 = vld [vmem:[%s17 + $0x14] sm:$0xf]
      %v4691 = vld [vmem:[%s17 + $0x18] sm:$0xf]
      %v4692 = vld [vmem:[%s17 + $0x1c] sm:$0xf]
      %v4693 = vld [vmem:[%s17 + $0x20] sm:$0xf]
      %v4694 = vld [vmem:[%s17 + $0x24] sm:$0xf]
      %v4695 = vld [vmem:[%s17 + $0x28] sm:$0xf]
      %v4696 = vld [vmem:[%s17 + $0x2c] sm:$0xf]
      %v4697 = vld [vmem:[%s17 + $0x30] sm:$0xf]
      %v4698 = vld [vmem:[%s17 + $0x34] sm:$0xf]
      %v4699 = vld [vmem:[%s17 + $0x38] sm:$0xf]
      %v4700 = vld [vmem:[%s17 + $0x3c] sm:$0xf]
      %v4717 = vunpack.c.l.b16 %v4685
      %v4718 = vunpack.c.l.b16 %v4686
      %v4719 = vunpack.c.l.b16 %v4687
      %v4720 = vunpack.c.l.b16 %v4688
      %v4721 = vunpack.c.l.b16 %v4689
      %v4722 = vunpack.c.l.b16 %v4690
      %v4723 = vunpack.c.l.b16 %v4691
      %v4724 = vunpack.c.l.b16 %v4692
      %v4725 = vunpack.c.l.b16 %v4693
      %v4726 = vunpack.c.l.b16 %v4694
      %v4727 = vunpack.c.l.b16 %v4695
      %v4728 = vunpack.c.l.b16 %v4696
      %v4729 = vunpack.c.l.b16 %v4697
      %v4730 = vunpack.c.l.b16 %v4698
      %v4731 = vunpack.c.l.b16 %v4699
      %v4732 = vunpack.c.l.b16 %v4700
      %v4733 = vpack.c.b16 %v4718, %v4717
      %v4734 = vpack.c.b16 %v4720, %v4719
      %v4735 = vpack.c.b16 %v4722, %v4721
      %v4736 = vpack.c.b16 %v4724, %v4723
      %v4737 = vpack.c.b16 %v4726, %v4725
      %v4738 = vpack.c.b16 %v4728, %v4727
      %v4739 = vpack.c.b16 %v4730, %v4729
      %v4740 = vpack.c.b16 %v4732, %v4731
      %4749 = vmatprep.subr.bf16.mxu0 0
      %4750 = vmatpush1.bf16.msra.mxu0 %v4733
      %4751 = vmatprep.subr.bf16.mxu0 0
      %4752 = vmatpush1.bf16.msra.mxu0 %v4734
      %4753 = vmatprep.subr.bf16.mxu0 0
      %4754 = vmatpush1.bf16.msra.mxu0 %v4735
      %4755 = vmatprep.subr.bf16.mxu0 0
      %4756 = vmatpush1.bf16.msra.mxu0 %v4736
      %4757 = vmatprep.subr.bf16.mxu0 0
      %4758 = vmatpush1.bf16.msra.mxu0 %v4737
      %4759 = vmatprep.subr.bf16.mxu0 0
      %4760 = vmatpush1.bf16.msra.mxu0 %v4738
      %4761 = vmatprep.subr.bf16.mxu0 0
      %4762 = vmatpush1.bf16.msra.mxu0 %v4739
      %4763 = vmatprep.subr.bf16.mxu0 0
      %4764 = vmatpush1.bf16.msra.mxu0 %v4740
      %4765 = vmatprep.subr.bf16.mxu0 0
      %4766 = vmatpush1.bf16.msra.mxu0 0
      %4767 = vmatprep.subr.bf16.mxu0 0
      %4768 = vmatpush1.bf16.msra.mxu0 0
      %4769 = vmatprep.subr.bf16.mxu0 0
      %4770 = vmatpush1.bf16.msra.mxu0 0
      %4771 = vmatprep.subr.bf16.mxu0 0
      %4772 = vmatpush1.bf16.msra.mxu0 0
      %4773 = vmatprep.subr.bf16.mxu0 0
      %4774 = vmatpush1.bf16.msra.mxu0 0
      %4775 = vmatprep.subr.bf16.mxu0 0
      %4776 = vmatpush1.bf16.msra.mxu0 0
      %4777 = vmatprep.subr.bf16.mxu0 0
      %4778 = vmatpush1.bf16.msra.mxu0 0
      %4779 = vmatprep.subr.bf16.mxu0 0
      %4780 = vmatpush1.bf16.msra.mxu0 0
      %4781 = vmatprep.mubr.bf16.mxu0 0
      %4782 = vmatmul.mubr.bf16.gmra.mrb[0].mxu0 %v4681
      %v4783 = vpop.f32.mrb[0].mxu0
      %v4784 = vadd.f32 0.0, %v4783
      %v4785 = vpop.f32.mrb[0].mxu0
      %v4786 = vpop.f32.mrb[0].mxu0
      %v4787 = vadd.f32 0.0, %v4786
      %v4788 = vpop.f32.mrb[0].mxu0
      %4789 = vmatprep.mubr.bf16.mxu0 0
      %4790 = vmatmul.mubr.bf16.gmra.mrb[0].mxu0 %v4682
      %v4791 = vpop.f32.mrb[0].mxu0
      %v4792 = vadd.f32 0.0, %v4791
      %v4793 = vpop.f32.mrb[0].mxu0
      %v4794 = vpop.f32.mrb[0].mxu0
      %v4795 = vadd.f32 0.0, %v4794
      %v4796 = vpop.f32.mrb[0].mxu0
      %4797 = vmatprep.mubr.bf16.mxu0 0
      %4798 = vmatmul.mubr.bf16.gmra.mrb[0].mxu0 %v4683
      %v4799 = vpop.f32.mrb[0].mxu0
      %v4800 = vadd.f32 0.0, %v4799
      %v4801 = vpop.f32.mrb[0].mxu0
      %v4802 = vpop.f32.mrb[0].mxu0
      %v4803 = vadd.f32 0.0, %v4802
      %v4804 = vpop.f32.mrb[0].mxu0
      %4805 = vmatprep.mubr.bf16.mxu0 0
      %4806 = vmatmul.mubr.bf16.gmra.mrb[0].mxu0 %v4684
      %v4807 = vpop.f32.mrb[0].mxu0
      %v4808 = vadd.f32 0.0, %v4807
      %v4809 = vpop.f32.mrb[0].mxu0
      %v4810 = vpop.f32.mrb[0].mxu0
      %v4811 = vadd.f32 0.0, %v4810
      %v4812 = vpop.f32.mrb[0].mxu0
      %4813 = vdwg.mxu0
      %v4814 = vpack.c.bf16 %v4787, %v4784
      %v4815 = vpack.c.bf16 %v4795, %v4792
      %v4816 = vpack.c.bf16 %v4803, %v4800
      %v4817 = vpack.c.bf16 %v4811, %v4808
      %v4818 = vld [vmem:[%s18] sm:$0xf]
      %v4819 = vld [vmem:[%s18 + $0x4] sm:$0xf]
      %v4820 = vld [vmem:[%s18 + $0x8] sm:$0xf]
      %v4821 = vld [vmem:[%s18 + $0xc] sm:$0xf]
      %v4822 = vld [vmem:[%s18 + $0x10] sm:$0xf]
      %v4823 = vld [vmem:[%s18 + $0x14] sm:$0xf]
      %v4824 = vld [vmem:[%s18 + $0x18] sm:$0xf]
      %v4825 = vld [vmem:[%s18 + $0x1c] sm:$0xf]
      %v4834 = vunpack.c.l.b16 %v4818
      %v4835 = vunpack.c.l.b16 %v4819
      %v4836 = vunpack.c.l.b16 %v4820
      %v4837 = vunpack.c.l.b16 %v4821
      %v4838 = vunpack.c.l.b16 %v4822
      %v4839 = vunpack.c.l.b16 %v4823
      %v4840 = vunpack.c.l.b16 %v4824
      %v4841 = vunpack.c.l.b16 %v4825
      %v4842 = vpack.c.b16 %v4835, %v4834
      %v4843 = vpack.c.b16 %v4837, %v4836
      %v4844 = vpack.c.b16 %v4839, %v4838
      %v4845 = vpack.c.b16 %v4841, %v4840
      %v4847 = vsel %vm2642, %v4842, 0
      %v4850 = vsel %vm2642, %v4843, 0
      %v4853 = vsel %vm2642, %v4844, 0
      %v4856 = vsel %vm2642, %v4845, 0
      %4858 = vmatprep.subr.bf16.mxu0 0
      %4859 = vmatpush1.bf16.msra.mxu0 %v4814
      %4860 = vmatprep.subr.bf16.mxu0 0
      %4861 = vmatpush1.bf16.msra.mxu0 %v4815
      %4862 = vmatprep.subr.bf16.mxu0 0
      %4863 = vmatpush1.bf16.msra.mxu0 %v4816
      %4864 = vmatprep.subr.bf16.mxu0 0
      %4865 = vmatpush1.bf16.msra.mxu0 %v4817
      %4866 = vmatprep.subr.bf16.mxu0 0
      %4867 = vmatpush1.bf16.msra.mxu0 0
      %4868 = vmatprep.subr.bf16.mxu0 0
      %4869 = vmatpush1.bf16.msra.mxu0 0
      %4870 = vmatprep.subr.bf16.mxu0 0
      %4871 = vmatpush1.bf16.msra.mxu0 0
      %4872 = vmatprep.subr.bf16.mxu0 0
      %4873 = vmatpush1.bf16.msra.mxu0 0
      %4874 = vmatprep.subr.bf16.mxu0 0
      %4875 = vmatpush1.bf16.msra.mxu0 0
      %4876 = vmatprep.subr.bf16.mxu0 0
      %4877 = vmatpush1.bf16.msra.mxu0 0
      %4878 = vmatprep.subr.bf16.mxu0 0
      %4879 = vmatpush1.bf16.msra.mxu0 0
      %4880 = vmatprep.subr.bf16.mxu0 0
      %4881 = vmatpush1.bf16.msra.mxu0 0
      %4882 = vmatprep.subr.bf16.mxu0 0
      %4883 = vmatpush1.bf16.msra.mxu0 0
      %4884 = vmatprep.subr.bf16.mxu0 0
      %4885 = vmatpush1.bf16.msra.mxu0 0
      %4886 = vmatprep.subr.bf16.mxu0 0
      %4887 = vmatpush1.bf16.msra.mxu0 0
      %4888 = vmatprep.subr.bf16.mxu0 0
      %4889 = vmatpush1.bf16.msra.mxu0 0
      %4890 = vmatprep.mubr.bf16.mxu0 0
      %4891 = vmatmul.mubr.bf16.gmra.mrb[0].mxu0 %v4847
      %v4892 = vpop.f32.mrb[0].mxu0
      %v4893 = vadd.f32 0.0, %v4892
      %v4894 = vpop.f32.mrb[0].mxu0
      %v4895 = vpop.f32.mrb[0].mxu0
      %v4896 = vadd.f32 0.0, %v4895
      %v4897 = vpop.f32.mrb[0].mxu0
      %4898 = vmatprep.mubr.bf16.mxu0 0
      %4899 = vmatmul.mubr.bf16.gmra.mrb[0].mxu0 %v4850
      %v4900 = vpop.f32.mrb[0].mxu0
      %v4901 = vadd.f32 0.0, %v4900
      %v4902 = vpop.f32.mrb[0].mxu0
      %v4903 = vpop.f32.mrb[0].mxu0
      %v4904 = vadd.f32 0.0, %v4903
      %v4905 = vpop.f32.mrb[0].mxu0
      %4906 = vmatprep.mubr.bf16.mxu0 0
      %4907 = vmatmul.mubr.bf16.gmra.mrb[0].mxu0 %v4853
      %v4908 = vpop.f32.mrb[0].mxu0
      %v4909 = vadd.f32 0.0, %v4908
      %v4910 = vpop.f32.mrb[0].mxu0
      %v4911 = vpop.f32.mrb[0].mxu0
      %v4912 = vadd.f32 0.0, %v4911
      %v4913 = vpop.f32.mrb[0].mxu0
      %4914 = vmatprep.mubr.bf16.mxu0 0
      %4915 = vmatmul.mubr.bf16.gmra.mrb[0].mxu0 %v4856
      %v4916 = vpop.f32.mrb[0].mxu0
      %v4917 = vadd.f32 0.0, %v4916
      %v4918 = vpop.f32.mrb[0].mxu0
      %v4919 = vpop.f32.mrb[0].mxu0
      %v4920 = vadd.f32 0.0, %v4919
      %v4921 = vpop.f32.mrb[0].mxu0
      %4922 = vdwg.mxu0
      %v4923 = vpack.c.bf16 %v4896, %v4893
      %v4924 = vpack.c.bf16 %v4904, %v4901
      %v4925 = vpack.c.bf16 %v4912, %v4909
      %v4926 = vpack.c.bf16 %v4920, %v4917
      %s4927 = scalar_lea.vmem %s18, 32
      %v4928 = vld [vmem:[%s4927] sm:$0xf]
      %v4929 = vld [vmem:[%s4927 + $0x4] sm:$0xf]
      %v4930 = vld [vmem:[%s4927 + $0x8] sm:$0xf]
      %v4931 = vld [vmem:[%s4927 + $0xc] sm:$0xf]
      %v4932 = vld [vmem:[%s4927 + $0x10] sm:$0xf]
      %v4933 = vld [vmem:[%s4927 + $0x14] sm:$0xf]
      %v4934 = vld [vmem:[%s4927 + $0x18] sm:$0xf]
      %v4935 = vld [vmem:[%s4927 + $0x1c] sm:$0xf]
      %v4944 = vunpack.c.l.b16 %v4928
      %v4945 = vunpack.c.l.b16 %v4929
      %v4946 = vunpack.c.l.b16 %v4930
      %v4947 = vunpack.c.l.b16 %v4931
      %v4948 = vunpack.c.l.b16 %v4932
      %v4949 = vunpack.c.l.b16 %v4933
      %v4950 = vunpack.c.l.b16 %v4934
      %v4951 = vunpack.c.l.b16 %v4935
      %v4952 = vpack.c.b16 %v4945, %v4944
      %v4953 = vpack.c.b16 %v4947, %v4946
      %v4954 = vpack.c.b16 %v4949, %v4948
      %v4955 = vpack.c.b16 %v4951, %v4950
      %v4957 = vsel %vm2642, %v4952, 0
      %v4960 = vsel %vm2642, %v4953, 0
      %v4963 = vsel %vm2642, %v4954, 0
      %v4966 = vsel %vm2642, %v4955, 0
      %4968 = vmatprep.subr.bf16.mxu0 0
      %4969 = vmatpush1.bf16.msra.mxu0 %v4814
      %4970 = vmatprep.subr.bf16.mxu0 0
      %4971 = vmatpush1.bf16.msra.mxu0 %v4815
      %4972 = vmatprep.subr.bf16.mxu0 0
      %4973 = vmatpush1.bf16.msra.mxu0 %v4816
      %4974 = vmatprep.subr.bf16.mxu0 0
      %4975 = vmatpush1.bf16.msra.mxu0 %v4817
      %4976 = vmatprep.subr.bf16.mxu0 0
      %4977 = vmatpush1.bf16.msra.mxu0 0
      %4978 = vmatprep.subr.bf16.mxu0 0
      %4979 = vmatpush1.bf16.msra.mxu0 0
      %4980 = vmatprep.subr.bf16.mxu0 0
      %4981 = vmatpush1.bf16.msra.mxu0 0
      %4982 = vmatprep.subr.bf16.mxu0 0
      %4983 = vmatpush1.bf16.msra.mxu0 0
      %4984 = vmatprep.subr.bf16.mxu0 0
      %4985 = vmatpush1.bf16.msra.mxu0 0
      %4986 = vmatprep.subr.bf16.mxu0 0
      %4987 = vmatpush1.bf16.msra.mxu0 0
      %4988 = vmatprep.subr.bf16.mxu0 0
      %4989 = vmatpush1.bf16.msra.mxu0 0
      %4990 = vmatprep.subr.bf16.mxu0 0
      %4991 = vmatpush1.bf16.msra.mxu0 0
      %4992 = vmatprep.subr.bf16.mxu0 0
      %4993 = vmatpush1.bf16.msra.mxu0 0
      %4994 = vmatprep.subr.bf16.mxu0 0
      %4995 = vmatpush1.bf16.msra.mxu0 0
      %4996 = vmatprep.subr.bf16.mxu0 0
      %4997 = vmatpush1.bf16.msra.mxu0 0
      %4998 = vmatprep.subr.bf16.mxu0 0
      %4999 = vmatpush1.bf16.msra.mxu0 0
      %5000 = vmatprep.mubr.bf16.mxu0 0
      %5001 = vmatmul.mubr.bf16.gmra.mrb[0].mxu0 %v4957
      %v5002 = vpop.f32.mrb[0].mxu0
      %v5003 = vadd.f32 0.0, %v5002
      %v5004 = vpop.f32.mrb[0].mxu0
      %v5005 = vpop.f32.mrb[0].mxu0
      %v5006 = vadd.f32 0.0, %v5005
      %v5007 = vpop.f32.mrb[0].mxu0
      %5008 = vmatprep.mubr.bf16.mxu0 0
      %5009 = vmatmul.mubr.bf16.gmra.mrb[0].mxu0 %v4960
      %v5010 = vpop.f32.mrb[0].mxu0
      %v5011 = vadd.f32 0.0, %v5010
      %v5012 = vpop.f32.mrb[0].mxu0
      %v5013 = vpop.f32.mrb[0].mxu0
      %v5014 = vadd.f32 0.0, %v5013
      %v5015 = vpop.f32.mrb[0].mxu0
      %5016 = vmatprep.mubr.bf16.mxu0 0
      %5017 = vmatmul.mubr.bf16.gmra.mrb[0].mxu0 %v4963
      %v5018 = vpop.f32.mrb[0].mxu0
      %v5019 = vadd.f32 0.0, %v5018
      %v5020 = vpop.f32.mrb[0].mxu0
      %v5021 = vpop.f32.mrb[0].mxu0
      %v5022 = vadd.f32 0.0, %v5021
      %v5023 = vpop.f32.mrb[0].mxu0
      %5024 = vmatprep.mubr.bf16.mxu0 0
      %5025 = vmatmul.mubr.bf16.gmra.mrb[0].mxu0 %v4966
      %v5026 = vpop.f32.mrb[0].mxu0
      %v5027 = vadd.f32 0.0, %v5026
      %v5028 = vpop.f32.mrb[0].mxu0
      %v5029 = vpop.f32.mrb[0].mxu0
      %v5030 = vadd.f32 0.0, %v5029
      %v5031 = vpop.f32.mrb[0].mxu0
      %5032 = vdwg.mxu0
      %5033 = vmatprep.subr.bf16.mxu0 0
      %5034 = vmatpush1.bf16.msra.mxu0 %v946
      %5035 = vmatprep.subr.bf16.mxu0 0
      %5036 = vmatpush1.bf16.msra.mxu0 %v947
      %5037 = vmatprep.subr.bf16.mxu0 0
      %5038 = vmatpush1.bf16.msra.mxu0 %v948
      %5039 = vmatprep.subr.bf16.mxu0 0
      %5040 = vmatpush1.bf16.msra.mxu0 %v949
      %5041 = vmatprep.subr.bf16.mxu0 0
      %5042 = vmatpush1.bf16.msra.mxu0 %v950
      %5043 = vmatprep.subr.bf16.mxu0 0
      %5044 = vmatpush1.bf16.msra.mxu0 %v951
      %5045 = vmatprep.subr.bf16.mxu0 0
      %5046 = vmatpush1.bf16.msra.mxu0 %v952
      %5047 = vmatprep.subr.bf16.mxu0 0
      %5048 = vmatpush1.bf16.msra.mxu0 %v953
      %5049 = vmatprep.subr.bf16.mxu0 0
      %5050 = vmatpush1.bf16.msra.mxu0 0
      %5051 = vmatprep.subr.bf16.mxu0 0
      %5052 = vmatpush1.bf16.msra.mxu0 0
      %5053 = vmatprep.subr.bf16.mxu0 0
      %5054 = vmatpush1.bf16.msra.mxu0 0
      %5055 = vmatprep.subr.bf16.mxu0 0
      %5056 = vmatpush1.bf16.msra.mxu0 0
      %5057 = vmatprep.subr.bf16.mxu0 0
      %5058 = vmatpush1.bf16.msra.mxu0 0
      %5059 = vmatprep.subr.bf16.mxu0 0
      %5060 = vmatpush1.bf16.msra.mxu0 0
      %5061 = vmatprep.subr.bf16.mxu0 0
      %5062 = vmatpush1.bf16.msra.mxu0 0
      %5063 = vmatprep.subr.bf16.mxu0 0
      %5064 = vmatpush1.bf16.msra.mxu0 0
      %5065 = vmatprep.mubr.bf16.mxu0 0
      %5066 = vmatmul.mubr.bf16.gmra.mrb[0].mxu0 %v4923
      %v5067 = vpop.f32.mrb[0].mxu0
      %v5068 = vadd.f32 %v5003, %v5067
      %v5069 = vpop.f32.mrb[0].mxu0
      %v5070 = vpop.f32.mrb[0].mxu0
      %v5071 = vadd.f32 %v5006, %v5070
      %v5072 = vpop.f32.mrb[0].mxu0
      %5073 = vmatprep.mubr.bf16.mxu0 0
      %5074 = vmatmul.mubr.bf16.gmra.mrb[0].mxu0 %v4924
      %v5075 = vpop.f32.mrb[0].mxu0
      %v5076 = vadd.f32 %v5011, %v5075
      %v5077 = vpop.f32.mrb[0].mxu0
      %v5078 = vpop.f32.mrb[0].mxu0
      %v5079 = vadd.f32 %v5014, %v5078
      %v5080 = vpop.f32.mrb[0].mxu0
      %5081 = vmatprep.mubr.bf16.mxu0 0
      %5082 = vmatmul.mubr.bf16.gmra.mrb[0].mxu0 %v4925
      %v5083 = vpop.f32.mrb[0].mxu0
      %v5084 = vadd.f32 %v5019, %v5083
      %v5085 = vpop.f32.mrb[0].mxu0
      %v5086 = vpop.f32.mrb[0].mxu0
      %v5087 = vadd.f32 %v5022, %v5086
      %v5088 = vpop.f32.mrb[0].mxu0
      %5089 = vmatprep.mubr.bf16.mxu0 0
      %5090 = vmatmul.mubr.bf16.gmra.mrb[0].mxu0 %v4926
      %v5091 = vpop.f32.mrb[0].mxu0
      %v5092 = vadd.f32 %v5027, %v5091
      %v5093 = vpop.f32.mrb[0].mxu0
      %v5094 = vpop.f32.mrb[0].mxu0
      %v5095 = vadd.f32 %v5030, %v5094
      %v5096 = vpop.f32.mrb[0].mxu0
      %5097 = vdwg.mxu0
      %s5098 = scalar_lea.vmem %s18, 64
      %v5099 = vld [vmem:[%s5098] sm:$0xf]
      %v5100 = vld [vmem:[%s5098 + $0x4] sm:$0xf]
      %v5101 = vld [vmem:[%s5098 + $0x8] sm:$0xf]
      %v5102 = vld [vmem:[%s5098 + $0xc] sm:$0xf]
      %v5103 = vld [vmem:[%s5098 + $0x10] sm:$0xf]
      %v5104 = vld [vmem:[%s5098 + $0x14] sm:$0xf]
      %v5105 = vld [vmem:[%s5098 + $0x18] sm:$0xf]
      %v5106 = vld [vmem:[%s5098 + $0x1c] sm:$0xf]
      %v5115 = vunpack.c.l.b16 %v5099
      %v5116 = vunpack.c.l.b16 %v5100
      %v5117 = vunpack.c.l.b16 %v5101
      %v5118 = vunpack.c.l.b16 %v5102
      %v5119 = vunpack.c.l.b16 %v5103
      %v5120 = vunpack.c.l.b16 %v5104
      %v5121 = vunpack.c.l.b16 %v5105
      %v5122 = vunpack.c.l.b16 %v5106
      %v5123 = vpack.c.b16 %v5116, %v5115
      %v5124 = vpack.c.b16 %v5118, %v5117
      %v5125 = vpack.c.b16 %v5120, %v5119
      %v5126 = vpack.c.b16 %v5122, %v5121
      %v5128 = vsel %vm2642, %v5123, 0
      %v5131 = vsel %vm2642, %v5124, 0
      %v5134 = vsel %vm2642, %v5125, 0
      %v5137 = vsel %vm2642, %v5126, 0
      %5139 = vmatprep.subr.bf16.mxu0 0
      %5140 = vmatpush1.bf16.msra.mxu0 %v4814
      %5141 = vmatprep.subr.bf16.mxu0 0
      %5142 = vmatpush1.bf16.msra.mxu0 %v4815
      %5143 = vmatprep.subr.bf16.mxu0 0
      %5144 = vmatpush1.bf16.msra.mxu0 %v4816
      %5145 = vmatprep.subr.bf16.mxu0 0
      %5146 = vmatpush1.bf16.msra.mxu0 %v4817
      %5147 = vmatprep.subr.bf16.mxu0 0
      %5148 = vmatpush1.bf16.msra.mxu0 0
      %5149 = vmatprep.subr.bf16.mxu0 0
      %5150 = vmatpush1.bf16.msra.mxu0 0
      %5151 = vmatprep.subr.bf16.mxu0 0
      %5152 = vmatpush1.bf16.msra.mxu0 0
      %5153 = vmatprep.subr.bf16.mxu0 0
      %5154 = vmatpush1.bf16.msra.mxu0 0
      %5155 = vmatprep.subr.bf16.mxu0 0
      %5156 = vmatpush1.bf16.msra.mxu0 0
      %5157 = vmatprep.subr.bf16.mxu0 0
      %5158 = vmatpush1.bf16.msra.mxu0 0
      %5159 = vmatprep.subr.bf16.mxu0 0
      %5160 = vmatpush1.bf16.msra.mxu0 0
      %5161 = vmatprep.subr.bf16.mxu0 0
      %5162 = vmatpush1.bf16.msra.mxu0 0
      %5163 = vmatprep.subr.bf16.mxu0 0
      %5164 = vmatpush1.bf16.msra.mxu0 0
      %5165 = vmatprep.subr.bf16.mxu0 0
      %5166 = vmatpush1.bf16.msra.mxu0 0
      %5167 = vmatprep.subr.bf16.mxu0 0
      %5168 = vmatpush1.bf16.msra.mxu0 0
      %5169 = vmatprep.subr.bf16.mxu0 0
      %5170 = vmatpush1.bf16.msra.mxu0 0
      %5171 = vmatprep.mubr.bf16.mxu0 0
      %5172 = vmatmul.mubr.bf16.gmra.mrb[0].mxu0 %v5128
      %v5173 = vpop.f32.mrb[0].mxu0
      %v5174 = vadd.f32 0.0, %v5173
      %v5175 = vpop.f32.mrb[0].mxu0
      %v5176 = vpop.f32.mrb[0].mxu0
      %v5177 = vadd.f32 0.0, %v5176
      %v5178 = vpop.f32.mrb[0].mxu0
      %5179 = vmatprep.mubr.bf16.mxu0 0
      %5180 = vmatmul.mubr.bf16.gmra.mrb[0].mxu0 %v5131
      %v5181 = vpop.f32.mrb[0].mxu0
      %v5182 = vadd.f32 0.0, %v5181
      %v5183 = vpop.f32.mrb[0].mxu0
      %v5184 = vpop.f32.mrb[0].mxu0
      %v5185 = vadd.f32 0.0, %v5184
      %v5186 = vpop.f32.mrb[0].mxu0
      %5187 = vmatprep.mubr.bf16.mxu0 0
      %5188 = vmatmul.mubr.bf16.gmra.mrb[0].mxu0 %v5134
      %v5189 = vpop.f32.mrb[0].mxu0
      %v5190 = vadd.f32 0.0, %v5189
      %v5191 = vpop.f32.mrb[0].mxu0
      %v5192 = vpop.f32.mrb[0].mxu0
      %v5193 = vadd.f32 0.0, %v5192
      %v5194 = vpop.f32.mrb[0].mxu0
      %5195 = vmatprep.mubr.bf16.mxu0 0
      %5196 = vmatmul.mubr.bf16.gmra.mrb[0].mxu0 %v5137
      %v5197 = vpop.f32.mrb[0].mxu0
      %v5198 = vadd.f32 0.0, %v5197
      %v5199 = vpop.f32.mrb[0].mxu0
      %v5200 = vpop.f32.mrb[0].mxu0
      %v5201 = vadd.f32 0.0, %v5200
      %v5202 = vpop.f32.mrb[0].mxu0
      %5203 = vdwg.mxu0
      %v5204 = vpack.c.bf16 %v5177, %v5174
      %v5205 = vpack.c.bf16 %v5185, %v5182
      %v5206 = vpack.c.bf16 %v5193, %v5190
      %v5207 = vpack.c.bf16 %v5201, %v5198
      %5208 = vmatprep.subr.bf16.mxu0 0
      %5209 = vmatpush1.bf16.msra.mxu0 %v1132
      %5210 = vmatprep.subr.bf16.mxu0 0
      %5211 = vmatpush1.bf16.msra.mxu0 %v1133
      %5212 = vmatprep.subr.bf16.mxu0 0
      %5213 = vmatpush1.bf16.msra.mxu0 %v1134
      %5214 = vmatprep.subr.bf16.mxu0 0
      %5215 = vmatpush1.bf16.msra.mxu0 %v1135
      %5216 = vmatprep.subr.bf16.mxu0 0
      %5217 = vmatpush1.bf16.msra.mxu0 %v1136
      %5218 = vmatprep.subr.bf16.mxu0 0
      %5219 = vmatpush1.bf16.msra.mxu0 %v1137
      %5220 = vmatprep.subr.bf16.mxu0 0
      %5221 = vmatpush1.bf16.msra.mxu0 %v1138
      %5222 = vmatprep.subr.bf16.mxu0 0
      %5223 = vmatpush1.bf16.msra.mxu0 %v1139
      %5224 = vmatprep.subr.bf16.mxu0 0
      %5225 = vmatpush1.bf16.msra.mxu0 0
      %5226 = vmatprep.subr.bf16.mxu0 0
      %5227 = vmatpush1.bf16.msra.mxu0 0
      %5228 = vmatprep.subr.bf16.mxu0 0
      %5229 = vmatpush1.bf16.msra.mxu0 0
      %5230 = vmatprep.subr.bf16.mxu0 0
      %5231 = vmatpush1.bf16.msra.mxu0 0
      %5232 = vmatprep.subr.bf16.mxu0 0
      %5233 = vmatpush1.bf16.msra.mxu0 0
      %5234 = vmatprep.subr.bf16.mxu0 0
      %5235 = vmatpush1.bf16.msra.mxu0 0
      %5236 = vmatprep.subr.bf16.mxu0 0
      %5237 = vmatpush1.bf16.msra.mxu0 0
      %5238 = vmatprep.subr.bf16.mxu0 0
      %5239 = vmatpush1.bf16.msra.mxu0 0
      %5240 = vmatprep.mubr.bf16.mxu0 0
      %5241 = vmatmul.mubr.bf16.gmra.mrb[0].mxu0 %v5204
      %v5242 = vpop.f32.mrb[0].mxu0
      %v5243 = vadd.f32 0.0, %v5242
      %v5244 = vpop.f32.mrb[0].mxu0
      %v5245 = vpop.f32.mrb[0].mxu0
      %v5246 = vadd.f32 0.0, %v5245
      %v5247 = vpop.f32.mrb[0].mxu0
      %5248 = vmatprep.mubr.bf16.mxu0 0
      %5249 = vmatmul.mubr.bf16.gmra.mrb[0].mxu0 %v5205
      %v5250 = vpop.f32.mrb[0].mxu0
      %v5251 = vadd.f32 0.0, %v5250
      %v5252 = vpop.f32.mrb[0].mxu0
      %v5253 = vpop.f32.mrb[0].mxu0
      %v5254 = vadd.f32 0.0, %v5253
      %v5255 = vpop.f32.mrb[0].mxu0
      %5256 = vmatprep.mubr.bf16.mxu0 0
      %5257 = vmatmul.mubr.bf16.gmra.mrb[0].mxu0 %v5206
      %v5258 = vpop.f32.mrb[0].mxu0
      %v5259 = vadd.f32 0.0, %v5258
      %v5260 = vpop.f32.mrb[0].mxu0
      %v5261 = vpop.f32.mrb[0].mxu0
      %v5262 = vadd.f32 0.0, %v5261
      %v5263 = vpop.f32.mrb[0].mxu0
      %5264 = vmatprep.mubr.bf16.mxu0 0
      %5265 = vmatmul.mubr.bf16.gmra.mrb[0].mxu0 %v5207
      %v5266 = vpop.f32.mrb[0].mxu0
      %v5267 = vadd.f32 0.0, %v5266
      %v5268 = vpop.f32.mrb[0].mxu0
      %v5269 = vpop.f32.mrb[0].mxu0
      %v5270 = vadd.f32 0.0, %v5269
      %v5271 = vpop.f32.mrb[0].mxu0
      %5272 = vdwg.mxu0
      %v5273 = vadd.f32 %v5068, %v5243
      %v5274 = vadd.f32 %v5071, %v5246
      %v5275 = vadd.f32 %v5076, %v5251
      %v5276 = vadd.f32 %v5079, %v5254
      %v5277 = vadd.f32 %v5084, %v5259
      %v5278 = vadd.f32 %v5087, %v5262
      %v5279 = vadd.f32 %v5092, %v5267
      %v5280 = vadd.f32 %v5095, %v5270
      %v5281 = vld [vmem:[%s19] sm:$0xff]
      %v5282 = vld [vmem:[%s19 + $0x8] sm:$0xff]
      %v5283 = vld [vmem:[%s19 + $0x10] sm:$0xff]
      %v5284 = vld [vmem:[%s19 + $0x18] sm:$0xff]
      %v5285 = vld [vmem:[%s19 + $0x20] sm:$0xff]
      %v5286 = vld [vmem:[%s19 + $0x28] sm:$0xff]
      %v5287 = vld [vmem:[%s19 + $0x30] sm:$0xff]
      %v5288 = vld [vmem:[%s19 + $0x38] sm:$0xff]
      %5290 = vset.pattern.permute.xlu0 0
      %5291 = vperm.xlu0 %5290, %v5281
      %v5292 = vpop.permute.xlu0 %5291
      %5295 = vset.pattern.permute.xlu0 0
      %5296 = vperm.xlu0 %5295, %v5282
      %v5297 = vpop.permute.xlu0 %5296
      %5300 = vset.pattern.permute.xlu0 0
      %5301 = vperm.xlu0 %5300, %v5283
      %v5302 = vpop.permute.xlu0 %5301
      %5305 = vset.pattern.permute.xlu0 0
      %5306 = vperm.xlu0 %5305, %v5284
      %v5307 = vpop.permute.xlu0 %5306
      %5310 = vset.pattern.permute.xlu0 0
      %5311 = vperm.xlu0 %5310, %v5285
      %v5312 = vpop.permute.xlu0 %5311
      %5315 = vset.pattern.permute.xlu0 0
      %5316 = vperm.xlu0 %5315, %v5286
      %v5317 = vpop.permute.xlu0 %5316
      %5320 = vset.pattern.permute.xlu0 0
      %5321 = vperm.xlu0 %5320, %v5287
      %v5322 = vpop.permute.xlu0 %5321
      %5325 = vset.pattern.permute.xlu0 0
      %5326 = vperm.xlu0 %5325, %v5288
      %v5327 = vpop.permute.xlu0 %5326
      %v5329 = vadd.f32 %v5273, %v5292
      %v5330 = vadd.f32 %v5274, %v5297
      %v5331 = vadd.f32 %v5275, %v5302
      %v5332 = vadd.f32 %v5276, %v5307
      %v5333 = vadd.f32 %v5277, %v5312
      %v5334 = vadd.f32 %v5278, %v5317
      %v5335 = vadd.f32 %v5279, %v5322
      %v5336 = vadd.f32 %v5280, %v5327
      %v5337 = vmul.f32 %v5329, %v3138
      %v5338 = vmul.f32 %v5330, %v3138
      %v5339 = vmul.f32 %v5331, %v3138
      %v5340 = vmul.f32 %v5332, %v3138
      %v5341 = vmul.f32 %v5333, %v3138
      %v5342 = vmul.f32 %v5334, %v3138
      %v5343 = vmul.f32 %v5335, %v3138
      %v5344 = vmul.f32 %v5336, %v3138
      %v5345 = vadd.f32 %v5337, %v4784
      %v5346 = vadd.f32 %v5338, %v4787
      %v5347 = vadd.f32 %v5339, %v4792
      %v5348 = vadd.f32 %v5340, %v4795
      %v5349 = vadd.f32 %v5341, %v4800
      %v5350 = vadd.f32 %v5342, %v4803
      %v5351 = vadd.f32 %v5343, %v4808
      %v5352 = vadd.f32 %v5344, %v4811
      %v5353 = vadd.f32 %v4568, %v5345
      %v5354 = vadd.f32 %v4569, %v5346
      %v5355 = vadd.f32 %v4570, %v5347
      %v5356 = vadd.f32 %v4571, %v5348
      %v5357 = vadd.f32 %v4572, %v5349
      %v5358 = vadd.f32 %v4573, %v5350
      %v5359 = vadd.f32 %v4574, %v5351
      %v5360 = vadd.f32 %v4575, %v5352
      %5361 = vst [vmem:[%s730] sm:$0xff] %v5353
      %5362 = vst [vmem:[%s730 + $0x8] sm:$0xff] %v5354
      %5363 = vst [vmem:[%s730 + $0x10] sm:$0xff] %v5355
      %5364 = vst [vmem:[%s730 + $0x18] sm:$0xff] %v5356
      %5365 = vst [vmem:[%s730 + $0x20] sm:$0xff] %v5357
      %5366 = vst [vmem:[%s730 + $0x28] sm:$0xff] %v5358
      %5367 = vst [vmem:[%s730 + $0x30] sm:$0xff] %v5359
      %5368 = vst [vmem:[%s730 + $0x38] sm:$0xff] %v5360
      %p5369 = scmp.lt.s32.totalorder %s34, 1
      %s5370 = scalar_select %p5369, %s34, 1
      %s5371 = smul.addr %s5370, 8
      %s5372 = smul.addr %s5371, 8
      %s5373 = scalar_lea.vmem %s23, %s5372
      // Predicated region
      $region113: #{_lambda_.1} parent=111 // pred_check
        %p5374 = pneg %p545
      $region114: #{_lambda_.1} parent=111 // pred_check_branch
        %5376 = sbr.rel (%p5374) target = $region116
      $region115: #{_lambda_.1} parent=111 // pred_region
        _
      $region116: #{_lambda_.1} parent=111 // pred_fallthru
        _
    $region112: #{_lambda_.1} parent=5 // pred_fallthru
      _
    %p5377 = scmp.le.s32.totalorder 2, %s29
    // Predicated region
    $region117: #{_lambda_.1} parent=5 // pred_check
      %p5378 = pneg %p5377
    $region118: #{_lambda_.1} parent=5 // pred_check_branch
      %5380 = sbr.rel (%p5378) target = $region120
    $region119: #{_lambda_.1} parent=5 // pred_region
      %s5381 = ssub.s32 %s29, 2
      // Predicated region
      $region121: #{_lambda_.1} parent=119 // pred_check
        %p5382 = pneg %p551
      $region122: #{_lambda_.1} parent=119 // pred_check_branch
        %5384 = sbr.rel (%p5382) target = $region124
      $region123: #{_lambda_.1} parent=119 // pred_region
        %p5385 = scmp.lt.s32.totalorder %s35, 1
        %s5386 = scalar_select %p5385, %s35, 1
        %s5387 = smul.addr %s5386, 8
        %s5388 = smul.addr %s5387, 8
        %s5389 = scalar_lea.vmem %s23, %s5388
      $region124: #{_lambda_.1} parent=119 // pred_fallthru
        _
    $region120: #{_lambda_.1} parent=5 // pred_fallthru
      _
  $region6: #{_lambda_.1} parent=0 // loop_footer
    %s33 = sadd.s32 1, %s29
  $region7: #{_lambda_.1} parent=0 // loop_footer_branch
    %28 = sbr.rel target = $region3
  $region8: #{_lambda_.1} parent=0 // loop_exit
    _

</llo_original>
